<compile_context>
chip_gen: v7x
topology: tpu7x:2x2x1
jax: 0.10.0
libtpu: 0.0.40
codegen_flags: <defaults>
</compile_context>

<pallas_src>
import functools

import jax
import jax.numpy as jnp
from jax.experimental import pallas as pl
from jax.experimental.pallas import tpu as pltpu

_NEG_BIG = -1e30


# ----------------------------------------------------------------------------
# In-kernel LSTM cell on packed weights
# ----------------------------------------------------------------------------
def _lstm_cell(x, h, c, w_ref, b_ref):
    """One LSTM cell step with gate-packed weights.

    x     : (B, In)         input
    h, c  : (B, H)          previous hidden / cell state
    w_ref : (In+H, 4H) Ref  rows [0:In] = W_ih^T, rows [In:] = W_hh^T,
                            gate order along lanes: i, f, g, o
    b_ref : (1, 4H)   Ref   combined bias (b_ih + b_hh)
    """
    in_dim = x.shape[-1]
    hid = h.shape[-1]
    gates = (jnp.dot(x, w_ref[0:in_dim, :], preferred_element_type=jnp.float32)
             + jnp.dot(h, w_ref[in_dim:in_dim + hid, :],
                       preferred_element_type=jnp.float32)
             + b_ref[...])                                   # (B, 4H)
    i = jax.nn.sigmoid(gates[:, 0:hid])
    f = jax.nn.sigmoid(gates[:, hid:2 * hid])
    g = jnp.tanh(gates[:, 2 * hid:3 * hid])
    o = jax.nn.sigmoid(gates[:, 3 * hid:4 * hid])
    c_new = f * c + i * g
    h_new = o * jnp.tanh(c_new)
    return h_new, c_new


# ----------------------------------------------------------------------------
# Encoder: one bidirectional layer, whole sequence in a single pallas_call
# ----------------------------------------------------------------------------
def _bidir_lstm_layer_kernel(xf_ref, xb_ref, wf_ref, bf_ref, wb_ref, bb_ref,
                             ysf_ref, ysb_ref, cfo_ref, cbo_ref,
                             hf_scr, cf_scr, hb_scr, cb_scr):
    t = pl.program_id(0)

    @pl.when(t == 0)
    def _():
        hf_scr[...] = jnp.zeros_like(hf_scr)
        cf_scr[...] = jnp.zeros_like(cf_scr)
        hb_scr[...] = jnp.zeros_like(hb_scr)
        cb_scr[...] = jnp.zeros_like(cb_scr)

    # forward direction consumes x[t], backward consumes x[L-1-t]
    hf, cf = _lstm_cell(xf_ref[0], hf_scr[...], cf_scr[...], wf_ref, bf_ref)
    hb, cb = _lstm_cell(xb_ref[0], hb_scr[...], cb_scr[...], wb_ref, bb_ref)

    hf_scr[...] = hf
    cf_scr[...] = cf
    hb_scr[...] = hb
    cb_scr[...] = cb

    ysf_ref[0] = hf
    ysb_ref[0] = hb
    cfo_ref[...] = cf      # final value (after last grid step) is what persists
    cbo_ref[...] = cb


def bidir_lstm_layer(xs, wf, bf, wb, bb):
    """xs: (L, B, In) -> ys_f, ys_b (L, B, H) and final cell states (B, H)."""
    L, B, In = xs.shape
    H = wf.shape[1] // 4

    out_shape = (
        jax.ShapeDtypeStruct((L, B, H), jnp.float32),   # ys_f
        jax.ShapeDtypeStruct((L, B, H), jnp.float32),   # ys_b
        jax.ShapeDtypeStruct((B, H), jnp.float32),      # c_f final
        jax.ShapeDtypeStruct((B, H), jnp.float32),      # c_b final
    )

    return pl.pallas_call(
        _bidir_lstm_layer_kernel,
        out_shape=out_shape,
        grid_spec=pltpu.PrefetchScalarGridSpec(
            num_scalar_prefetch=0,
            grid=(L,),
            in_specs=[
                pl.BlockSpec((1, B, In), lambda t: (t, 0, 0)),          # x fwd
                pl.BlockSpec((1, B, In), lambda t: (L - 1 - t, 0, 0)),  # x bwd
                pl.BlockSpec((In + H, 4 * H), lambda t: (0, 0)),        # W fwd
                pl.BlockSpec((1, 4 * H), lambda t: (0, 0)),             # b fwd
                pl.BlockSpec((In + H, 4 * H), lambda t: (0, 0)),        # W bwd
                pl.BlockSpec((1, 4 * H), lambda t: (0, 0)),             # b bwd
            ],
            out_specs=[
                pl.BlockSpec((1, B, H), lambda t: (t, 0, 0)),
                pl.BlockSpec((1, B, H), lambda t: (L - 1 - t, 0, 0)),
                pl.BlockSpec((B, H), lambda t: (0, 0)),
                pl.BlockSpec((B, H), lambda t: (0, 0)),
            ],
            scratch_shapes=[pltpu.VMEM((B, H), jnp.float32)] * 4,
        ),
        compiler_params=pltpu.CompilerParams(
            dimension_semantics=("arbitrary",)),
    )(xs, xs, wf, bf, wb, bb)


# ----------------------------------------------------------------------------
# Decoder: fully fused greedy decode (all steps, all layers, h2c, argmax,
# embedding feedback) in a single pallas_call
# ----------------------------------------------------------------------------
def _greedy_decoder_kernel(num_layers, *refs):
    x0_ref, h0_ref, c0_ref = refs[0:3]
    wb_refs = refs[3:3 + 2 * num_layers]
    h2cw_ref, h2cb_ref, emb_ref = refs[3 + 2 * num_layers:6 + 2 * num_layers]
    out_ref = refs[6 + 2 * num_layers]
    x_buf, h_scr, c_scr = refs[7 + 2 * num_layers:]

    t = pl.program_id(0)

    @pl.when(t == 0)
    def _():
        x_buf[...] = x0_ref[...]
        h_scr[...] = h0_ref[...]
        c_scr[...] = c0_ref[...]

    # stacked decoder LSTM (input E -> hidden 2H, num_layers layers)
    inp = x_buf[...]
    for l in range(num_layers):                       # static python unroll
        h_new, c_new = _lstm_cell(inp, h_scr[l], c_scr[l],
                                  wb_refs[2 * l], wb_refs[2 * l + 1])
        h_scr[l] = h_new
        c_scr[l] = c_new
        inp = h_new

    # hidden2char + log-softmax (padded vocab lanes carry -1e30 bias)
    logits = (jnp.dot(inp, h2cw_ref[...], preferred_element_type=jnp.float32)
              + h2cb_ref[...])                        # (B, Vp)
    m = jnp.max(logits, axis=-1, keepdims=True)
    s = logits - m
    logp = s - jnp.log(jnp.sum(jnp.exp(s), axis=-1, keepdims=True))
    out_ref[0] = logp

    # greedy feedback: argmax (first-max tie-break) -> one-hot -> emb matmul
    B, Vp = logits.shape
    lane = jax.lax.broadcasted_iota(jnp.int32, (B, Vp), 1)
    is_max = logits == m
    idx = jnp.min(jnp.where(is_max, lane, Vp), axis=-1, keepdims=True)  # (B,1)
    onehot = (lane == idx).astype(jnp.float32)                          # (B,Vp)
    x_buf[...] = jnp.dot(onehot, emb_ref[...],
                         preferred_element_type=jnp.float32)            # (B,E)


def greedy_decode(x0, h0, c0, dec_ws, dec_bs, h2c_w_pad, h2c_b_pad, emb_pad,
                  target_length):
    NL, B, H2 = h0.shape
    E = x0.shape[1]
    Vp = h2c_w_pad.shape[1]

    in_specs = [
        pl.BlockSpec((B, E), lambda t: (0, 0)),
        pl.BlockSpec((NL, B, H2), lambda t: (0, 0, 0)),
        pl.BlockSpec((NL, B, H2), lambda t: (0, 0, 0)),
    ]
    operands = [x0, h0, c0]
    for w, b in zip(dec_ws, dec_bs):
        in_specs.append(pl.BlockSpec(w.shape, lambda t: (0, 0)))
        in_specs.append(pl.BlockSpec(b.shape, lambda t: (0, 0)))
        operands += [w, b]
    in_specs += [
        pl.BlockSpec(h2c_w_pad.shape, lambda t: (0, 0)),
        pl.BlockSpec(h2c_b_pad.shape, lambda t: (0, 0)),
        pl.BlockSpec(emb_pad.shape, lambda t: (0, 0)),
    ]
    operands += [h2c_w_pad, h2c_b_pad, emb_pad]

    return pl.pallas_call(
        functools.partial(_greedy_decoder_kernel, NL),
        out_shape=jax.ShapeDtypeStruct((target_length, B, Vp), jnp.float32),
        grid_spec=pltpu.PrefetchScalarGridSpec(
            num_scalar_prefetch=0,
            grid=(target_length,),
            in_specs=in_specs,
            out_specs=pl.BlockSpec((1, B, Vp), lambda t: (t, 0, 0)),
            scratch_shapes=[
                pltpu.VMEM((B, E), jnp.float32),        # fed-back embedding
                pltpu.VMEM((NL, B, H2), jnp.float32),   # h state
                pltpu.VMEM((NL, B, H2), jnp.float32),   # c state
            ],
        ),
        compiler_params=pltpu.CompilerParams(
            dimension_semantics=("arbitrary",)),
    )(*operands)


# ----------------------------------------------------------------------------
# Full forward pass (mirrors BiRNNGenerator.forward with targets=None)
# ----------------------------------------------------------------------------
def birnn_forward(params, sentences, *, num_layers, target_length):
    emb = params["emb"]                       # (V, E)
    embed = emb[sentences]                    # (L, B, E)  time-major

    # --- bidirectional multi-layer encoder (one pallas_call per layer) -------
    layer_in = embed
    dec_h = []
    dec_c = []
    for l in range(num_layers):
        wf, bf = params["enc"][l]["fwd"]
        wb, bb = params["enc"][l]["bwd"]
        ys_f, ys_b, c_f, c_b = bidir_lstm_layer(layer_in, wf, bf, wb, bb)
        layer_in = jnp.concatenate([ys_f, ys_b], axis=-1)       # (L, B, 2H)
        # _reshape_hidden: per layer, cat(final fwd, final bwd) -> (B, 2H)
        dec_h.append(jnp.concatenate([ys_f[-1], ys_b[0]], axis=-1))
        dec_c.append(jnp.concatenate([c_f, c_b], axis=-1))

    h0 = jnp.stack(dec_h, axis=0)             # (NL, B, 2H)
    c0 = jnp.stack(dec_c, axis=0)             # (NL, B, 2H)

    # --- fused greedy decoder (targets=None) ----------------------------------
    x0 = emb[sentences[-1]]                   # (B, E); dropout = identity (eval)
    dec_ws = [params["dec"][l][0] for l in range(num_layers)]
    dec_bs = [params["dec"][l][1] for l in range(num_layers)]

    logp_pad = greedy_decode(x0, h0, c0, dec_ws, dec_bs,
                             params["h2c_w_pad"], params["h2c_b_pad"],
                             params["emb_pad"], target_length)
    V = emb.shape[0]
    # Per-step log-softmax(dim=-1) == post-stack LogSoftmax(dim=-1) in PyTorch.
    return logp_pad[:, :, :V]                 # (target_length, B, V)


# ----------------------------------------------------------------------------
# Deterministic synthetic parameter init (gate-packed, vocab-padded layouts)
# ----------------------------------------------------------------------------
def init_params(key, vocab_size, emb_dim, hidden_dim, num_layers):
    scale = 0.1
    counter = [0]

    def nxt(shape):
        counter[0] += 1
        k = jax.random.fold_in(key, counter[0])
        return jax.random.normal(k, shape, jnp.float32) * scale

    def lstm_weights(in_dim, hid_dim):
        # packed: rows [0:in_dim] = W_ih^T, rows [in_dim:] = W_hh^T; lane-packed
        # gates in order i, f, g, o.
        w = nxt((in_dim + hid_dim, 4 * hid_dim))
        b = nxt((1, 4 * hid_dim)) + nxt((1, 4 * hid_dim))   # b_ih + b_hh
        return w, b

    params = {"emb": nxt((vocab_size, emb_dim))}

    vocab_pad = ((vocab_size + 127) // 128) * 128
    params["emb_pad"] = jnp.zeros((vocab_pad, emb_dim), jnp.float32
                                  ).at[:vocab_size].set(params["emb"])

    enc = []
    for l in range(num_layers):
        in_dim = emb_dim if l == 0 else 2 * hidden_dim
        enc.append({"fwd": lstm_weights(in_dim, hidden_dim),
                    "bwd": lstm_weights(in_dim, hidden_dim)})
    params["enc"] = enc

    dec = []
    for l in range(num_layers):
        in_dim = emb_dim if l == 0 else 2 * hidden_dim
        dec.append(lstm_weights(in_dim, 2 * hidden_dim))
    params["dec"] = dec

    h2c_w = nxt((2 * hidden_dim, vocab_size))               # pre-transposed
    h2c_b = nxt((1, vocab_size))
    params["h2c_w_pad"] = jnp.zeros((2 * hidden_dim, vocab_pad), jnp.float32
                                    ).at[:, :vocab_size].set(h2c_w)
    params["h2c_b_pad"] = jnp.full((1, vocab_pad), _NEG_BIG, jnp.float32
                                   ).at[:, :vocab_size].set(h2c_b)
    return params


# ----------------------------------------------------------------------------
if __name__ == "__main__":
    VOCAB = 40
    EMB = 16
    HIDDEN = 32
    NUM_LAYERS = 2
    TARGET_LEN = 8
    SEQ_LEN = 8
    BATCH = 2

    root = jax.random.PRNGKey(0)
    k_params, k_sent = jax.random.split(root)

    params = init_params(k_params, VOCAB, EMB, HIDDEN, NUM_LAYERS)
    sentences = jax.random.randint(k_sent, (SEQ_LEN, BATCH), 0, VOCAB,
                                   dtype=jnp.int32)

    fwd = jax.jit(functools.partial(birnn_forward,
                                    num_layers=NUM_LAYERS,
                                    target_length=TARGET_LEN))
    out = fwd(params, sentences)
    out = jax.block_until_ready(out)

    assert out.shape == (TARGET_LEN, BATCH, VOCAB), out.shape
    assert out.dtype == jnp.float32
    # log-softmax rows must (log-)sum to ~0
    assert bool(jnp.allclose(jnp.sum(jnp.exp(out), axis=-1), 1.0, atol=1e-4))

    print("KERNEL_OK")
</pallas_src>

<mosaic_0001>
module attributes {stable_mosaic.version = 11 : i64} {
  func.func @_bidir_lstm_layer_kernel(%arg0: i32, %arg1: memref<1x2x16xf32, #tpu.memory_space<vmem>>, %arg2: memref<1x2x16xf32, #tpu.memory_space<vmem>>, %arg3: memref<48x128xf32, #tpu.memory_space<vmem>>, %arg4: memref<1x128xf32, #tpu.memory_space<vmem>>, %arg5: memref<48x128xf32, #tpu.memory_space<vmem>>, %arg6: memref<1x128xf32, #tpu.memory_space<vmem>>, %arg7: memref<1x2x32xf32, #tpu.memory_space<vmem>>, %arg8: memref<1x2x32xf32, #tpu.memory_space<vmem>>, %arg9: memref<2x32xf32, #tpu.memory_space<vmem>>, %arg10: memref<2x32xf32, #tpu.memory_space<vmem>>, %arg11: memref<2x32xf32, #tpu.memory_space<vmem>>, %arg12: memref<2x32xf32, #tpu.memory_space<vmem>>, %arg13: memref<2x32xf32, #tpu.memory_space<vmem>>, %arg14: memref<2x32xf32, #tpu.memory_space<vmem>>) attributes {dimension_semantics = [#tpu.dimension_semantics<arbitrary>], iteration_bounds = array<i64: 8>, scalar_prefetch = 0 : i64, scratch_operands = 4 : i64, tpu.core_type = #tpu.core_type<tc>, window_params = [{transform_indices = @transform_0, window_bounds = array<i64: 1, 2, 16>}, {transform_indices = @transform_1, window_bounds = array<i64: 1, 2, 16>}, {pipeline_mode = #tpu.pipeline_mode<synchronous>, transform_indices = @transform_2, window_bounds = array<i64: 48, 128>}, {pipeline_mode = #tpu.pipeline_mode<synchronous>, transform_indices = @transform_3, window_bounds = array<i64: 1, 128>}, {pipeline_mode = #tpu.pipeline_mode<synchronous>, transform_indices = @transform_4, window_bounds = array<i64: 48, 128>}, {pipeline_mode = #tpu.pipeline_mode<synchronous>, transform_indices = @transform_5, window_bounds = array<i64: 1, 128>}, {transform_indices = @transform_6, window_bounds = array<i64: 1, 2, 32>}, {transform_indices = @transform_7, window_bounds = array<i64: 1, 2, 32>}, {pipeline_mode = #tpu.pipeline_mode<synchronous>, transform_indices = @transform_8, window_bounds = array<i64: 2, 32>}, {pipeline_mode = #tpu.pipeline_mode<synchronous>, transform_indices = @transform_9, window_bounds = array<i64: 2, 32>}]} {
    %c0_i32 = arith.constant 0 : i32
    %0 = arith.cmpi eq, %arg0, %c0_i32 : i32
    %1 = arith.extui %0 : i1 to i32
    %c0_i32_0 = arith.constant 0 : i32
    %2 = arith.cmpi ne, %1, %c0_i32_0 : i32
    scf.if %2 {
      %cst_52 = arith.constant 0.000000e+00 : f32
      %89 = vector.broadcast %cst_52 : f32 to vector<2x32xf32>
      %c0_53 = arith.constant 0 : index
      %c0_54 = arith.constant 0 : index
      %90 = vector.load %arg11[%c0_53, %c0_54] : memref<2x32xf32, #tpu.memory_space<vmem>>, vector<2x32xf32>
      tpu.vector_store %arg11[%c0_53, %c0_54], %89 {strides = array<i32>} : memref<2x32xf32, #tpu.memory_space<vmem>>, vector<2x32xf32>,
      %cst_55 = arith.constant 0.000000e+00 : f32
      %91 = vector.broadcast %cst_55 : f32 to vector<2x32xf32>
      %c0_56 = arith.constant 0 : index
      %c0_57 = arith.constant 0 : index
      %92 = vector.load %arg12[%c0_56, %c0_57] : memref<2x32xf32, #tpu.memory_space<vmem>>, vector<2x32xf32>
      tpu.vector_store %arg12[%c0_56, %c0_57], %91 {strides = array<i32>} : memref<2x32xf32, #tpu.memory_space<vmem>>, vector<2x32xf32>,
      %cst_58 = arith.constant 0.000000e+00 : f32
      %93 = vector.broadcast %cst_58 : f32 to vector<2x32xf32>
      %c0_59 = arith.constant 0 : index
      %c0_60 = arith.constant 0 : index
      %94 = vector.load %arg13[%c0_59, %c0_60] : memref<2x32xf32, #tpu.memory_space<vmem>>, vector<2x32xf32>
      tpu.vector_store %arg13[%c0_59, %c0_60], %93 {strides = array<i32>} : memref<2x32xf32, #tpu.memory_space<vmem>>, vector<2x32xf32>,
      %cst_61 = arith.constant 0.000000e+00 : f32
      %95 = vector.broadcast %cst_61 : f32 to vector<2x32xf32>
      %c0_62 = arith.constant 0 : index
      %c0_63 = arith.constant 0 : index
      %96 = vector.load %arg14[%c0_62, %c0_63] : memref<2x32xf32, #tpu.memory_space<vmem>>, vector<2x32xf32>
      tpu.vector_store %arg14[%c0_62, %c0_63], %95 {strides = array<i32>} : memref<2x32xf32, #tpu.memory_space<vmem>>, vector<2x32xf32>,
    } else {
    }
    %c0 = arith.constant 0 : index
    %c0_1 = arith.constant 0 : index
    %c0_2 = arith.constant 0 : index
    %3 = vector.load %arg1[%c0, %c0_1, %c0_2] : memref<1x2x16xf32, #tpu.memory_space<vmem>>, vector<1x2x16xf32>
    %4 = vector.shape_cast %3 : vector<1x2x16xf32> to vector<2x16xf32>
    %c0_3 = arith.constant 0 : index
    %c0_4 = arith.constant 0 : index
    %5 = vector.load %arg11[%c0_3, %c0_4] : memref<2x32xf32, #tpu.memory_space<vmem>>, vector<2x32xf32>
    %c0_5 = arith.constant 0 : index
    %c0_6 = arith.constant 0 : index
    %6 = vector.load %arg12[%c0_5, %c0_6] : memref<2x32xf32, #tpu.memory_space<vmem>>, vector<2x32xf32>
    %c0_7 = arith.constant 0 : index
    %c0_8 = arith.constant 0 : index
    %7 = vector.load %arg3[%c0_7, %c0_8] : memref<48x128xf32, #tpu.memory_space<vmem>>, vector<16x128xf32>
    %cst = arith.constant dense<0.000000e+00> : vector<2x128xf32>
    %8 = tpu.matmul %4, %7, %cst {dimension_numbers = #tpu.dot_dimension_numbers<[1], [0], [0], [1], [0, 0, 1, 1], [], []>} : vector<2x16xf32>, vector<16x128xf32>, vector<2x128xf32> -> vector<2x128xf32>
    %c16 = arith.constant 16 : index
    %c0_9 = arith.constant 0 : index
    %9 = vector.load %arg3[%c16, %c0_9] : memref<48x128xf32, #tpu.memory_space<vmem>>, vector<32x128xf32>
    %cst_10 = arith.constant dense<0.000000e+00> : vector<2x128xf32>
    %10 = tpu.matmul %5, %9, %cst_10 {dimension_numbers = #tpu.dot_dimension_numbers<[1], [0], [0], [1], [0, 0, 1, 1], [], []>} : vector<2x32xf32>, vector<32x128xf32>, vector<2x128xf32> -> vector<2x128xf32>
    %11 = arith.addf %8, %10 : vector<2x128xf32>
    %c0_11 = arith.constant 0 : index
    %c0_12 = arith.constant 0 : index
    %12 = vector.load %arg4[%c0_11, %c0_12] : memref<1x128xf32, #tpu.memory_space<vmem>>, vector<1x128xf32>
    %13 = vector.broadcast %12 : vector<1x128xf32> to vector<2x128xf32>
    %14 = arith.addf %11, %13 : vector<2x128xf32>
    %15 = vector.extract_strided_slice %14 {offsets = [0, 0], sizes = [2, 32], strides = [1, 1]} : vector<2x128xf32> to vector<2x32xf32>
    %16 = arith.negf %15 : vector<2x32xf32>
    %17 = math.exp %16 : vector<2x32xf32>
    %cst_13 = arith.constant 1.000000e+00 : f32
    %18 = vector.broadcast %cst_13 : f32 to vector<2x32xf32>
    %19 = arith.addf %18, %17 : vector<2x32xf32>
    %20 = arith.divf %18, %19 : vector<2x32xf32>
    %21 = vector.extract_strided_slice %14 {offsets = [0, 32], sizes = [2, 32], strides = [1, 1]} : vector<2x128xf32> to vector<2x32xf32>
    %22 = arith.negf %21 : vector<2x32xf32>
    %23 = math.exp %22 : vector<2x32xf32>
    %cst_14 = arith.constant 1.000000e+00 : f32
    %24 = vector.broadcast %cst_14 : f32 to vector<2x32xf32>
    %25 = arith.addf %24, %23 : vector<2x32xf32>
    %26 = arith.divf %24, %25 : vector<2x32xf32>
    %27 = vector.extract_strided_slice %14 {offsets = [0, 64], sizes = [2, 32], strides = [1, 1]} : vector<2x128xf32> to vector<2x32xf32>
    %28 = math.tanh %27 : vector<2x32xf32>
    %29 = vector.extract_strided_slice %14 {offsets = [0, 96], sizes = [2, 32], strides = [1, 1]} : vector<2x128xf32> to vector<2x32xf32>
    %30 = arith.negf %29 : vector<2x32xf32>
    %31 = math.exp %30 : vector<2x32xf32>
    %cst_15 = arith.constant 1.000000e+00 : f32
    %32 = vector.broadcast %cst_15 : f32 to vector<2x32xf32>
    %33 = arith.addf %32, %31 : vector<2x32xf32>
    %34 = arith.divf %32, %33 : vector<2x32xf32>
    %35 = arith.mulf %26, %6 : vector<2x32xf32>
    %36 = arith.mulf %20, %28 : vector<2x32xf32>
    %37 = arith.addf %35, %36 : vector<2x32xf32>
    %38 = math.tanh %37 : vector<2x32xf32>
    %39 = arith.mulf %34, %38 : vector<2x32xf32>
    %c0_16 = arith.constant 0 : index
    %c0_17 = arith.constant 0 : index
    %c0_18 = arith.constant 0 : index
    %40 = vector.load %arg2[%c0_16, %c0_17, %c0_18] : memref<1x2x16xf32, #tpu.memory_space<vmem>>, vector<1x2x16xf32>
    %41 = vector.shape_cast %40 : vector<1x2x16xf32> to vector<2x16xf32>
    %c0_19 = arith.constant 0 : index
    %c0_20 = arith.constant 0 : index
    %42 = vector.load %arg13[%c0_19, %c0_20] : memref<2x32xf32, #tpu.memory_space<vmem>>, vector<2x32xf32>
    %c0_21 = arith.constant 0 : index
    %c0_22 = arith.constant 0 : index
    %43 = vector.load %arg14[%c0_21, %c0_22] : memref<2x32xf32, #tpu.memory_space<vmem>>, vector<2x32xf32>
    %c0_23 = arith.constant 0 : index
    %c0_24 = arith.constant 0 : index
    %44 = vector.load %arg5[%c0_23, %c0_24] : memref<48x128xf32, #tpu.memory_space<vmem>>, vector<16x128xf32>
    %cst_25 = arith.constant dense<0.000000e+00> : vector<2x128xf32>
    %45 = tpu.matmul %41, %44, %cst_25 {dimension_numbers = #tpu.dot_dimension_numbers<[1], [0], [0], [1], [0, 0, 1, 1], [], []>} : vector<2x16xf32>, vector<16x128xf32>, vector<2x128xf32> -> vector<2x128xf32>
    %c16_26 = arith.constant 16 : index
    %c0_27 = arith.constant 0 : index
    %46 = vector.load %arg5[%c16_26, %c0_27] : memref<48x128xf32, #tpu.memory_space<vmem>>, vector<32x128xf32>
    %cst_28 = arith.constant dense<0.000000e+00> : vector<2x128xf32>
    %47 = tpu.matmul %42, %46, %cst_28 {dimension_numbers = #tpu.dot_dimension_numbers<[1], [0], [0], [1], [0, 0, 1, 1], [], []>} : vector<2x32xf32>, vector<32x128xf32>, vector<2x128xf32> -> vector<2x128xf32>
    %48 = arith.addf %45, %47 : vector<2x128xf32>
    %c0_29 = arith.constant 0 : index
    %c0_30 = arith.constant 0 : index
    %49 = vector.load %arg6[%c0_29, %c0_30] : memref<1x128xf32, #tpu.memory_space<vmem>>, vector<1x128xf32>
    %50 = vector.broadcast %49 : vector<1x128xf32> to vector<2x128xf32>
    %51 = arith.addf %48, %50 : vector<2x128xf32>
    %52 = vector.extract_strided_slice %51 {offsets = [0, 0], sizes = [2, 32], strides = [1, 1]} : vector<2x128xf32> to vector<2x32xf32>
    %53 = arith.negf %52 : vector<2x32xf32>
    %54 = math.exp %53 : vector<2x32xf32>
    %cst_31 = arith.constant 1.000000e+00 : f32
    %55 = vector.broadcast %cst_31 : f32 to vector<2x32xf32>
    %56 = arith.addf %55, %54 : vector<2x32xf32>
    %57 = arith.divf %55, %56 : vector<2x32xf32>
    %58 = vector.extract_strided_slice %51 {offsets = [0, 32], sizes = [2, 32], strides = [1, 1]} : vector<2x128xf32> to vector<2x32xf32>
    %59 = arith.negf %58 : vector<2x32xf32>
    %60 = math.exp %59 : vector<2x32xf32>
    %cst_32 = arith.constant 1.000000e+00 : f32
    %61 = vector.broadcast %cst_32 : f32 to vector<2x32xf32>
    %62 = arith.addf %61, %60 : vector<2x32xf32>
    %63 = arith.divf %61, %62 : vector<2x32xf32>
    %64 = vector.extract_strided_slice %51 {offsets = [0, 64], sizes = [2, 32], strides = [1, 1]} : vector<2x128xf32> to vector<2x32xf32>
    %65 = math.tanh %64 : vector<2x32xf32>
    %66 = vector.extract_strided_slice %51 {offsets = [0, 96], sizes = [2, 32], strides = [1, 1]} : vector<2x128xf32> to vector<2x32xf32>
    %67 = arith.negf %66 : vector<2x32xf32>
    %68 = math.exp %67 : vector<2x32xf32>
    %cst_33 = arith.constant 1.000000e+00 : f32
    %69 = vector.broadcast %cst_33 : f32 to vector<2x32xf32>
    %70 = arith.addf %69, %68 : vector<2x32xf32>
    %71 = arith.divf %69, %70 : vector<2x32xf32>
    %72 = arith.mulf %63, %43 : vector<2x32xf32>
    %73 = arith.mulf %57, %65 : vector<2x32xf32>
    %74 = arith.addf %72, %73 : vector<2x32xf32>
    %75 = math.tanh %74 : vector<2x32xf32>
    %76 = arith.mulf %71, %75 : vector<2x32xf32>
    %c0_34 = arith.constant 0 : index
    %c0_35 = arith.constant 0 : index
    %77 = vector.load %arg11[%c0_34, %c0_35] : memref<2x32xf32, #tpu.memory_space<vmem>>, vector<2x32xf32>
    tpu.vector_store %arg11[%c0_34, %c0_35], %39 {strides = array<i32>} : memref<2x32xf32, #tpu.memory_space<vmem>>, vector<2x32xf32>,
    %c0_36 = arith.constant 0 : index
    %c0_37 = arith.constant 0 : index
    %78 = vector.load %arg12[%c0_36, %c0_37] : memref<2x32xf32, #tpu.memory_space<vmem>>, vector<2x32xf32>
    tpu.vector_store %arg12[%c0_36, %c0_37], %37 {strides = array<i32>} : memref<2x32xf32, #tpu.memory_space<vmem>>, vector<2x32xf32>,
    %c0_38 = arith.constant 0 : index
    %c0_39 = arith.constant 0 : index
    %79 = vector.load %arg13[%c0_38, %c0_39] : memref<2x32xf32, #tpu.memory_space<vmem>>, vector<2x32xf32>
    tpu.vector_store %arg13[%c0_38, %c0_39], %76 {strides = array<i32>} : memref<2x32xf32, #tpu.memory_space<vmem>>, vector<2x32xf32>,
    %c0_40 = arith.constant 0 : index
    %c0_41 = arith.constant 0 : index
    %80 = vector.load %arg14[%c0_40, %c0_41] : memref<2x32xf32, #tpu.memory_space<vmem>>, vector<2x32xf32>
    tpu.vector_store %arg14[%c0_40, %c0_41], %74 {strides = array<i32>} : memref<2x32xf32, #tpu.memory_space<vmem>>, vector<2x32xf32>,
    %c0_42 = arith.constant 0 : index
    %c0_43 = arith.constant 0 : index
    %c0_44 = arith.constant 0 : index
    %81 = vector.load %arg7[%c0_42, %c0_43, %c0_44] : memref<1x2x32xf32, #tpu.memory_space<vmem>>, vector<1x2x32xf32>
    %82 = vector.shape_cast %81 : vector<1x2x32xf32> to vector<2x32xf32>
    %83 = vector.shape_cast %39 : vector<2x32xf32> to vector<1x2x32xf32>
    tpu.vector_store %arg7[%c0_42, %c0_43, %c0_44], %83 {strides = array<i32>} : memref<1x2x32xf32, #tpu.memory_space<vmem>>, vector<1x2x32xf32>,
    %c0_45 = arith.constant 0 : index
    %c0_46 = arith.constant 0 : index
    %c0_47 = arith.constant 0 : index
    %84 = vector.load %arg8[%c0_45, %c0_46, %c0_47] : memref<1x2x32xf32, #tpu.memory_space<vmem>>, vector<1x2x32xf32>
    %85 = vector.shape_cast %84 : vector<1x2x32xf32> to vector<2x32xf32>
    %86 = vector.shape_cast %76 : vector<2x32xf32> to vector<1x2x32xf32>
    tpu.vector_store %arg8[%c0_45, %c0_46, %c0_47], %86 {strides = array<i32>} : memref<1x2x32xf32, #tpu.memory_space<vmem>>, vector<1x2x32xf32>,
    %c0_48 = arith.constant 0 : index
    %c0_49 = arith.constant 0 : index
    %87 = vector.load %arg9[%c0_48, %c0_49] : memref<2x32xf32, #tpu.memory_space<vmem>>, vector<2x32xf32>
    tpu.vector_store %arg9[%c0_48, %c0_49], %37 {strides = array<i32>} : memref<2x32xf32, #tpu.memory_space<vmem>>, vector<2x32xf32>,
    %c0_50 = arith.constant 0 : index
    %c0_51 = arith.constant 0 : index
    %88 = vector.load %arg10[%c0_50, %c0_51] : memref<2x32xf32, #tpu.memory_space<vmem>>, vector<2x32xf32>
    tpu.vector_store %arg10[%c0_50, %c0_51], %74 {strides = array<i32>} : memref<2x32xf32, #tpu.memory_space<vmem>>, vector<2x32xf32>,
    return
  }
  func.func @transform_0(%arg0: i32) -> (i32, i32, i32) {
    %c0_i32 = arith.constant 0 : i32
    %c0_i32_0 = arith.constant 0 : i32
    %c0_i32_1 = arith.constant 0 : i32
    return %arg0, %c0_i32, %c0_i32_0 : i32, i32, i32
  }
  func.func @transform_1(%arg0: i32) -> (i32, i32, i32) {
    %c7_i32 = arith.constant 7 : i32
    %0 = arith.subi %c7_i32, %arg0 : i32
    %c0_i32 = arith.constant 0 : i32
    %c0_i32_0 = arith.constant 0 : i32
    %c0_i32_1 = arith.constant 0 : i32
    return %0, %c0_i32, %c0_i32_0 : i32, i32, i32
  }
  func.func @transform_2(%arg0: i32) -> (i32, i32) {
    %c0_i32 = arith.constant 0 : i32
    %c0_i32_0 = arith.constant 0 : i32
    %c0_i32_1 = arith.constant 0 : i32
    return %c0_i32, %c0_i32_0 : i32, i32
  }
  func.func @transform_3(%arg0: i32) -> (i32, i32) {
    %c0_i32 = arith.constant 0 : i32
    %c0_i32_0 = arith.constant 0 : i32
    %c0_i32_1 = arith.constant 0 : i32
    return %c0_i32, %c0_i32_0 : i32, i32
  }
  func.func @transform_4(%arg0: i32) -> (i32, i32) {
    %c0_i32 = arith.constant 0 : i32
    %c0_i32_0 = arith.constant 0 : i32
    %c0_i32_1 = arith.constant 0 : i32
    return %c0_i32, %c0_i32_0 : i32, i32
  }
  func.func @transform_5(%arg0: i32) -> (i32, i32) {
    %c0_i32 = arith.constant 0 : i32
    %c0_i32_0 = arith.constant 0 : i32
    %c0_i32_1 = arith.constant 0 : i32
    return %c0_i32, %c0_i32_0 : i32, i32
  }
  func.func @transform_6(%arg0: i32) -> (i32, i32, i32) {
    %c0_i32 = arith.constant 0 : i32
    %c0_i32_0 = arith.constant 0 : i32
    %c0_i32_1 = arith.constant 0 : i32
    return %arg0, %c0_i32, %c0_i32_0 : i32, i32, i32
  }
  func.func @transform_7(%arg0: i32) -> (i32, i32, i32) {
    %c7_i32 = arith.constant 7 : i32
    %0 = arith.subi %c7_i32, %arg0 : i32
    %c0_i32 = arith.constant 0 : i32
    %c0_i32_0 = arith.constant 0 : i32
    %c0_i32_1 = arith.constant 0 : i32
    return %0, %c0_i32, %c0_i32_0 : i32, i32, i32
  }
  func.func @transform_8(%arg0: i32) -> (i32, i32) {
    %c0_i32 = arith.constant 0 : i32
    %c0_i32_0 = arith.constant 0 : i32
    %c0_i32_1 = arith.constant 0 : i32
    return %c0_i32, %c0_i32_0 : i32, i32
  }
  func.func @transform_9(%arg0: i32) -> (i32, i32) {
    %c0_i32 = arith.constant 0 : i32
    %c0_i32_0 = arith.constant 0 : i32
    %c0_i32_1 = arith.constant 0 : i32
    return %c0_i32, %c0_i32_0 : i32, i32
  }
}

module attributes {stable_mosaic.version = 11 : i64} {
  func.func @_bidir_lstm_layer_kernel(%arg0: i32, %arg1: memref<1x2x64xf32, #tpu.memory_space<vmem>>, %arg2: memref<1x2x64xf32, #tpu.memory_space<vmem>>, %arg3: memref<96x128xf32, #tpu.memory_space<vmem>>, %arg4: memref<1x128xf32, #tpu.memory_space<vmem>>, %arg5: memref<96x128xf32, #tpu.memory_space<vmem>>, %arg6: memref<1x128xf32, #tpu.memory_space<vmem>>, %arg7: memref<1x2x32xf32, #tpu.memory_space<vmem>>, %arg8: memref<1x2x32xf32, #tpu.memory_space<vmem>>, %arg9: memref<2x32xf32, #tpu.memory_space<vmem>>, %arg10: memref<2x32xf32, #tpu.memory_space<vmem>>, %arg11: memref<2x32xf32, #tpu.memory_space<vmem>>, %arg12: memref<2x32xf32, #tpu.memory_space<vmem>>, %arg13: memref<2x32xf32, #tpu.memory_space<vmem>>, %arg14: memref<2x32xf32, #tpu.memory_space<vmem>>) attributes {dimension_semantics = [#tpu.dimension_semantics<arbitrary>], iteration_bounds = array<i64: 8>, scalar_prefetch = 0 : i64, scratch_operands = 4 : i64, tpu.core_type = #tpu.core_type<tc>, window_params = [{transform_indices = @transform_0, window_bounds = array<i64: 1, 2, 64>}, {transform_indices = @transform_1, window_bounds = array<i64: 1, 2, 64>}, {pipeline_mode = #tpu.pipeline_mode<synchronous>, transform_indices = @transform_2, window_bounds = array<i64: 96, 128>}, {pipeline_mode = #tpu.pipeline_mode<synchronous>, transform_indices = @transform_3, window_bounds = array<i64: 1, 128>}, {pipeline_mode = #tpu.pipeline_mode<synchronous>, transform_indices = @transform_4, window_bounds = array<i64: 96, 128>}, {pipeline_mode = #tpu.pipeline_mode<synchronous>, transform_indices = @transform_5, window_bounds = array<i64: 1, 128>}, {transform_indices = @transform_6, window_bounds = array<i64: 1, 2, 32>}, {transform_indices = @transform_7, window_bounds = array<i64: 1, 2, 32>}, {pipeline_mode = #tpu.pipeline_mode<synchronous>, transform_indices = @transform_8, window_bounds = array<i64: 2, 32>}, {pipeline_mode = #tpu.pipeline_mode<synchronous>, transform_indices = @transform_9, window_bounds = array<i64: 2, 32>}]} {
    %c0_i32 = arith.constant 0 : i32
    %0 = arith.cmpi eq, %arg0, %c0_i32 : i32
    %1 = arith.extui %0 : i1 to i32
    %c0_i32_0 = arith.constant 0 : i32
    %2 = arith.cmpi ne, %1, %c0_i32_0 : i32
    scf.if %2 {
      %cst_52 = arith.constant 0.000000e+00 : f32
      %89 = vector.broadcast %cst_52 : f32 to vector<2x32xf32>
      %c0_53 = arith.constant 0 : index
      %c0_54 = arith.constant 0 : index
      %90 = vector.load %arg11[%c0_53, %c0_54] : memref<2x32xf32, #tpu.memory_space<vmem>>, vector<2x32xf32>
      tpu.vector_store %arg11[%c0_53, %c0_54], %89 {strides = array<i32>} : memref<2x32xf32, #tpu.memory_space<vmem>>, vector<2x32xf32>,
      %cst_55 = arith.constant 0.000000e+00 : f32
      %91 = vector.broadcast %cst_55 : f32 to vector<2x32xf32>
      %c0_56 = arith.constant 0 : index
      %c0_57 = arith.constant 0 : index
      %92 = vector.load %arg12[%c0_56, %c0_57] : memref<2x32xf32, #tpu.memory_space<vmem>>, vector<2x32xf32>
      tpu.vector_store %arg12[%c0_56, %c0_57], %91 {strides = array<i32>} : memref<2x32xf32, #tpu.memory_space<vmem>>, vector<2x32xf32>,
      %cst_58 = arith.constant 0.000000e+00 : f32
      %93 = vector.broadcast %cst_58 : f32 to vector<2x32xf32>
      %c0_59 = arith.constant 0 : index
      %c0_60 = arith.constant 0 : index
      %94 = vector.load %arg13[%c0_59, %c0_60] : memref<2x32xf32, #tpu.memory_space<vmem>>, vector<2x32xf32>
      tpu.vector_store %arg13[%c0_59, %c0_60], %93 {strides = array<i32>} : memref<2x32xf32, #tpu.memory_space<vmem>>, vector<2x32xf32>,
      %cst_61 = arith.constant 0.000000e+00 : f32
      %95 = vector.broadcast %cst_61 : f32 to vector<2x32xf32>
      %c0_62 = arith.constant 0 : index
      %c0_63 = arith.constant 0 : index
      %96 = vector.load %arg14[%c0_62, %c0_63] : memref<2x32xf32, #tpu.memory_space<vmem>>, vector<2x32xf32>
      tpu.vector_store %arg14[%c0_62, %c0_63], %95 {strides = array<i32>} : memref<2x32xf32, #tpu.memory_space<vmem>>, vector<2x32xf32>,
    } else {
    }
    %c0 = arith.constant 0 : index
    %c0_1 = arith.constant 0 : index
    %c0_2 = arith.constant 0 : index
    %3 = vector.load %arg1[%c0, %c0_1, %c0_2] : memref<1x2x64xf32, #tpu.memory_space<vmem>>, vector<1x2x64xf32>
    %4 = vector.shape_cast %3 : vector<1x2x64xf32> to vector<2x64xf32>
    %c0_3 = arith.constant 0 : index
    %c0_4 = arith.constant 0 : index
    %5 = vector.load %arg11[%c0_3, %c0_4] : memref<2x32xf32, #tpu.memory_space<vmem>>, vector<2x32xf32>
    %c0_5 = arith.constant 0 : index
    %c0_6 = arith.constant 0 : index
    %6 = vector.load %arg12[%c0_5, %c0_6] : memref<2x32xf32, #tpu.memory_space<vmem>>, vector<2x32xf32>
    %c0_7 = arith.constant 0 : index
    %c0_8 = arith.constant 0 : index
    %7 = vector.load %arg3[%c0_7, %c0_8] : memref<96x128xf32, #tpu.memory_space<vmem>>, vector<64x128xf32>
    %cst = arith.constant dense<0.000000e+00> : vector<2x128xf32>
    %8 = tpu.matmul %4, %7, %cst {dimension_numbers = #tpu.dot_dimension_numbers<[1], [0], [0], [1], [0, 0, 1, 1], [], []>} : vector<2x64xf32>, vector<64x128xf32>, vector<2x128xf32> -> vector<2x128xf32>
    %c64 = arith.constant 64 : index
    %c0_9 = arith.constant 0 : index
    %9 = vector.load %arg3[%c64, %c0_9] : memref<96x128xf32, #tpu.memory_space<vmem>>, vector<32x128xf32>
    %cst_10 = arith.constant dense<0.000000e+00> : vector<2x128xf32>
    %10 = tpu.matmul %5, %9, %cst_10 {dimension_numbers = #tpu.dot_dimension_numbers<[1], [0], [0], [1], [0, 0, 1, 1], [], []>} : vector<2x32xf32>, vector<32x128xf32>, vector<2x128xf32> -> vector<2x128xf32>
    %11 = arith.addf %8, %10 : vector<2x128xf32>
    %c0_11 = arith.constant 0 : index
    %c0_12 = arith.constant 0 : index
    %12 = vector.load %arg4[%c0_11, %c0_12] : memref<1x128xf32, #tpu.memory_space<vmem>>, vector<1x128xf32>
    %13 = vector.broadcast %12 : vector<1x128xf32> to vector<2x128xf32>
    %14 = arith.addf %11, %13 : vector<2x128xf32>
    %15 = vector.extract_strided_slice %14 {offsets = [0, 0], sizes = [2, 32], strides = [1, 1]} : vector<2x128xf32> to vector<2x32xf32>
    %16 = arith.negf %15 : vector<2x32xf32>
    %17 = math.exp %16 : vector<2x32xf32>
    %cst_13 = arith.constant 1.000000e+00 : f32
    %18 = vector.broadcast %cst_13 : f32 to vector<2x32xf32>
    %19 = arith.addf %18, %17 : vector<2x32xf32>
    %20 = arith.divf %18, %19 : vector<2x32xf32>
    %21 = vector.extract_strided_slice %14 {offsets = [0, 32], sizes = [2, 32], strides = [1, 1]} : vector<2x128xf32> to vector<2x32xf32>
    %22 = arith.negf %21 : vector<2x32xf32>
    %23 = math.exp %22 : vector<2x32xf32>
    %cst_14 = arith.constant 1.000000e+00 : f32
    %24 = vector.broadcast %cst_14 : f32 to vector<2x32xf32>
    %25 = arith.addf %24, %23 : vector<2x32xf32>
    %26 = arith.divf %24, %25 : vector<2x32xf32>
    %27 = vector.extract_strided_slice %14 {offsets = [0, 64], sizes = [2, 32], strides = [1, 1]} : vector<2x128xf32> to vector<2x32xf32>
    %28 = math.tanh %27 : vector<2x32xf32>
    %29 = vector.extract_strided_slice %14 {offsets = [0, 96], sizes = [2, 32], strides = [1, 1]} : vector<2x128xf32> to vector<2x32xf32>
    %30 = arith.negf %29 : vector<2x32xf32>
    %31 = math.exp %30 : vector<2x32xf32>
    %cst_15 = arith.constant 1.000000e+00 : f32
    %32 = vector.broadcast %cst_15 : f32 to vector<2x32xf32>
    %33 = arith.addf %32, %31 : vector<2x32xf32>
    %34 = arith.divf %32, %33 : vector<2x32xf32>
    %35 = arith.mulf %26, %6 : vector<2x32xf32>
    %36 = arith.mulf %20, %28 : vector<2x32xf32>
    %37 = arith.addf %35, %36 : vector<2x32xf32>
    %38 = math.tanh %37 : vector<2x32xf32>
    %39 = arith.mulf %34, %38 : vector<2x32xf32>
    %c0_16 = arith.constant 0 : index
    %c0_17 = arith.constant 0 : index
    %c0_18 = arith.constant 0 : index
    %40 = vector.load %arg2[%c0_16, %c0_17, %c0_18] : memref<1x2x64xf32, #tpu.memory_space<vmem>>, vector<1x2x64xf32>
    %41 = vector.shape_cast %40 : vector<1x2x64xf32> to vector<2x64xf32>
    %c0_19 = arith.constant 0 : index
    %c0_20 = arith.constant 0 : index
    %42 = vector.load %arg13[%c0_19, %c0_20] : memref<2x32xf32, #tpu.memory_space<vmem>>, vector<2x32xf32>
    %c0_21 = arith.constant 0 : index
    %c0_22 = arith.constant 0 : index
    %43 = vector.load %arg14[%c0_21, %c0_22] : memref<2x32xf32, #tpu.memory_space<vmem>>, vector<2x32xf32>
    %c0_23 = arith.constant 0 : index
    %c0_24 = arith.constant 0 : index
    %44 = vector.load %arg5[%c0_23, %c0_24] : memref<96x128xf32, #tpu.memory_space<vmem>>, vector<64x128xf32>
    %cst_25 = arith.constant dense<0.000000e+00> : vector<2x128xf32>
    %45 = tpu.matmul %41, %44, %cst_25 {dimension_numbers = #tpu.dot_dimension_numbers<[1], [0], [0], [1], [0, 0, 1, 1], [], []>} : vector<2x64xf32>, vector<64x128xf32>, vector<2x128xf32> -> vector<2x128xf32>
    %c64_26 = arith.constant 64 : index
    %c0_27 = arith.constant 0 : index
    %46 = vector.load %arg5[%c64_26, %c0_27] : memref<96x128xf32, #tpu.memory_space<vmem>>, vector<32x128xf32>
    %cst_28 = arith.constant dense<0.000000e+00> : vector<2x128xf32>
    %47 = tpu.matmul %42, %46, %cst_28 {dimension_numbers = #tpu.dot_dimension_numbers<[1], [0], [0], [1], [0, 0, 1, 1], [], []>} : vector<2x32xf32>, vector<32x128xf32>, vector<2x128xf32> -> vector<2x128xf32>
    %48 = arith.addf %45, %47 : vector<2x128xf32>
    %c0_29 = arith.constant 0 : index
    %c0_30 = arith.constant 0 : index
    %49 = vector.load %arg6[%c0_29, %c0_30] : memref<1x128xf32, #tpu.memory_space<vmem>>, vector<1x128xf32>
    %50 = vector.broadcast %49 : vector<1x128xf32> to vector<2x128xf32>
    %51 = arith.addf %48, %50 : vector<2x128xf32>
    %52 = vector.extract_strided_slice %51 {offsets = [0, 0], sizes = [2, 32], strides = [1, 1]} : vector<2x128xf32> to vector<2x32xf32>
    %53 = arith.negf %52 : vector<2x32xf32>
    %54 = math.exp %53 : vector<2x32xf32>
    %cst_31 = arith.constant 1.000000e+00 : f32
    %55 = vector.broadcast %cst_31 : f32 to vector<2x32xf32>
    %56 = arith.addf %55, %54 : vector<2x32xf32>
    %57 = arith.divf %55, %56 : vector<2x32xf32>
    %58 = vector.extract_strided_slice %51 {offsets = [0, 32], sizes = [2, 32], strides = [1, 1]} : vector<2x128xf32> to vector<2x32xf32>
    %59 = arith.negf %58 : vector<2x32xf32>
    %60 = math.exp %59 : vector<2x32xf32>
    %cst_32 = arith.constant 1.000000e+00 : f32
    %61 = vector.broadcast %cst_32 : f32 to vector<2x32xf32>
    %62 = arith.addf %61, %60 : vector<2x32xf32>
    %63 = arith.divf %61, %62 : vector<2x32xf32>
    %64 = vector.extract_strided_slice %51 {offsets = [0, 64], sizes = [2, 32], strides = [1, 1]} : vector<2x128xf32> to vector<2x32xf32>
    %65 = math.tanh %64 : vector<2x32xf32>
    %66 = vector.extract_strided_slice %51 {offsets = [0, 96], sizes = [2, 32], strides = [1, 1]} : vector<2x128xf32> to vector<2x32xf32>
    %67 = arith.negf %66 : vector<2x32xf32>
    %68 = math.exp %67 : vector<2x32xf32>
    %cst_33 = arith.constant 1.000000e+00 : f32
    %69 = vector.broadcast %cst_33 : f32 to vector<2x32xf32>
    %70 = arith.addf %69, %68 : vector<2x32xf32>
    %71 = arith.divf %69, %70 : vector<2x32xf32>
    %72 = arith.mulf %63, %43 : vector<2x32xf32>
    %73 = arith.mulf %57, %65 : vector<2x32xf32>
    %74 = arith.addf %72, %73 : vector<2x32xf32>
    %75 = math.tanh %74 : vector<2x32xf32>
    %76 = arith.mulf %71, %75 : vector<2x32xf32>
    %c0_34 = arith.constant 0 : index
    %c0_35 = arith.constant 0 : index
    %77 = vector.load %arg11[%c0_34, %c0_35] : memref<2x32xf32, #tpu.memory_space<vmem>>, vector<2x32xf32>
    tpu.vector_store %arg11[%c0_34, %c0_35], %39 {strides = array<i32>} : memref<2x32xf32, #tpu.memory_space<vmem>>, vector<2x32xf32>,
    %c0_36 = arith.constant 0 : index
    %c0_37 = arith.constant 0 : index
    %78 = vector.load %arg12[%c0_36, %c0_37] : memref<2x32xf32, #tpu.memory_space<vmem>>, vector<2x32xf32>
    tpu.vector_store %arg12[%c0_36, %c0_37], %37 {strides = array<i32>} : memref<2x32xf32, #tpu.memory_space<vmem>>, vector<2x32xf32>,
    %c0_38 = arith.constant 0 : index
    %c0_39 = arith.constant 0 : index
    %79 = vector.load %arg13[%c0_38, %c0_39] : memref<2x32xf32, #tpu.memory_space<vmem>>, vector<2x32xf32>
    tpu.vector_store %arg13[%c0_38, %c0_39], %76 {strides = array<i32>} : memref<2x32xf32, #tpu.memory_space<vmem>>, vector<2x32xf32>,
    %c0_40 = arith.constant 0 : index
    %c0_41 = arith.constant 0 : index
    %80 = vector.load %arg14[%c0_40, %c0_41] : memref<2x32xf32, #tpu.memory_space<vmem>>, vector<2x32xf32>
    tpu.vector_store %arg14[%c0_40, %c0_41], %74 {strides = array<i32>} : memref<2x32xf32, #tpu.memory_space<vmem>>, vector<2x32xf32>,
    %c0_42 = arith.constant 0 : index
    %c0_43 = arith.constant 0 : index
    %c0_44 = arith.constant 0 : index
    %81 = vector.load %arg7[%c0_42, %c0_43, %c0_44] : memref<1x2x32xf32, #tpu.memory_space<vmem>>, vector<1x2x32xf32>
    %82 = vector.shape_cast %81 : vector<1x2x32xf32> to vector<2x32xf32>
    %83 = vector.shape_cast %39 : vector<2x32xf32> to vector<1x2x32xf32>
    tpu.vector_store %arg7[%c0_42, %c0_43, %c0_44], %83 {strides = array<i32>} : memref<1x2x32xf32, #tpu.memory_space<vmem>>, vector<1x2x32xf32>,
    %c0_45 = arith.constant 0 : index
    %c0_46 = arith.constant 0 : index
    %c0_47 = arith.constant 0 : index
    %84 = vector.load %arg8[%c0_45, %c0_46, %c0_47] : memref<1x2x32xf32, #tpu.memory_space<vmem>>, vector<1x2x32xf32>
    %85 = vector.shape_cast %84 : vector<1x2x32xf32> to vector<2x32xf32>
    %86 = vector.shape_cast %76 : vector<2x32xf32> to vector<1x2x32xf32>
    tpu.vector_store %arg8[%c0_45, %c0_46, %c0_47], %86 {strides = array<i32>} : memref<1x2x32xf32, #tpu.memory_space<vmem>>, vector<1x2x32xf32>,
    %c0_48 = arith.constant 0 : index
    %c0_49 = arith.constant 0 : index
    %87 = vector.load %arg9[%c0_48, %c0_49] : memref<2x32xf32, #tpu.memory_space<vmem>>, vector<2x32xf32>
    tpu.vector_store %arg9[%c0_48, %c0_49], %37 {strides = array<i32>} : memref<2x32xf32, #tpu.memory_space<vmem>>, vector<2x32xf32>,
    %c0_50 = arith.constant 0 : index
    %c0_51 = arith.constant 0 : index
    %88 = vector.load %arg10[%c0_50, %c0_51] : memref<2x32xf32, #tpu.memory_space<vmem>>, vector<2x32xf32>
    tpu.vector_store %arg10[%c0_50, %c0_51], %74 {strides = array<i32>} : memref<2x32xf32, #tpu.memory_space<vmem>>, vector<2x32xf32>,
    return
  }
  func.func @transform_0(%arg0: i32) -> (i32, i32, i32) {
    %c0_i32 = arith.constant 0 : i32
    %c0_i32_0 = arith.constant 0 : i32
    %c0_i32_1 = arith.constant 0 : i32
    return %arg0, %c0_i32, %c0_i32_0 : i32, i32, i32
  }
  func.func @transform_1(%arg0: i32) -> (i32, i32, i32) {
    %c7_i32 = arith.constant 7 : i32
    %0 = arith.subi %c7_i32, %arg0 : i32
    %c0_i32 = arith.constant 0 : i32
    %c0_i32_0 = arith.constant 0 : i32
    %c0_i32_1 = arith.constant 0 : i32
    return %0, %c0_i32, %c0_i32_0 : i32, i32, i32
  }
  func.func @transform_2(%arg0: i32) -> (i32, i32) {
    %c0_i32 = arith.constant 0 : i32
    %c0_i32_0 = arith.constant 0 : i32
    %c0_i32_1 = arith.constant 0 : i32
    return %c0_i32, %c0_i32_0 : i32, i32
  }
  func.func @transform_3(%arg0: i32) -> (i32, i32) {
    %c0_i32 = arith.constant 0 : i32
    %c0_i32_0 = arith.constant 0 : i32
    %c0_i32_1 = arith.constant 0 : i32
    return %c0_i32, %c0_i32_0 : i32, i32
  }
  func.func @transform_4(%arg0: i32) -> (i32, i32) {
    %c0_i32 = arith.constant 0 : i32
    %c0_i32_0 = arith.constant 0 : i32
    %c0_i32_1 = arith.constant 0 : i32
    return %c0_i32, %c0_i32_0 : i32, i32
  }
  func.func @transform_5(%arg0: i32) -> (i32, i32) {
    %c0_i32 = arith.constant 0 : i32
    %c0_i32_0 = arith.constant 0 : i32
    %c0_i32_1 = arith.constant 0 : i32
    return %c0_i32, %c0_i32_0 : i32, i32
  }
  func.func @transform_6(%arg0: i32) -> (i32, i32, i32) {
    %c0_i32 = arith.constant 0 : i32
    %c0_i32_0 = arith.constant 0 : i32
    %c0_i32_1 = arith.constant 0 : i32
    return %arg0, %c0_i32, %c0_i32_0 : i32, i32, i32
  }
  func.func @transform_7(%arg0: i32) -> (i32, i32, i32) {
    %c7_i32 = arith.constant 7 : i32
    %0 = arith.subi %c7_i32, %arg0 : i32
    %c0_i32 = arith.constant 0 : i32
    %c0_i32_0 = arith.constant 0 : i32
    %c0_i32_1 = arith.constant 0 : i32
    return %0, %c0_i32, %c0_i32_0 : i32, i32, i32
  }
  func.func @transform_8(%arg0: i32) -> (i32, i32) {
    %c0_i32 = arith.constant 0 : i32
    %c0_i32_0 = arith.constant 0 : i32
    %c0_i32_1 = arith.constant 0 : i32
    return %c0_i32, %c0_i32_0 : i32, i32
  }
  func.func @transform_9(%arg0: i32) -> (i32, i32) {
    %c0_i32 = arith.constant 0 : i32
    %c0_i32_0 = arith.constant 0 : i32
    %c0_i32_1 = arith.constant 0 : i32
    return %c0_i32, %c0_i32_0 : i32, i32
  }
}

module attributes {stable_mosaic.version = 11 : i64} {
  func.func @_greedy_decoder_kernel(%arg0: i32, %arg1: memref<2x16xf32, #tpu.memory_space<vmem>>, %arg2: memref<2x2x64xf32, #tpu.memory_space<vmem>>, %arg3: memref<2x2x64xf32, #tpu.memory_space<vmem>>, %arg4: memref<80x256xf32, #tpu.memory_space<vmem>>, %arg5: memref<1x256xf32, #tpu.memory_space<vmem>>, %arg6: memref<128x256xf32, #tpu.memory_space<vmem>>, %arg7: memref<1x256xf32, #tpu.memory_space<vmem>>, %arg8: memref<64x128xf32, #tpu.memory_space<vmem>>, %arg9: memref<1x128xf32, #tpu.memory_space<vmem>>, %arg10: memref<128x16xf32, #tpu.memory_space<vmem>>, %arg11: memref<1x2x128xf32, #tpu.memory_space<vmem>>, %arg12: memref<2x16xf32, #tpu.memory_space<vmem>>, %arg13: memref<2x2x64xf32, #tpu.memory_space<vmem>>, %arg14: memref<2x2x64xf32, #tpu.memory_space<vmem>>) attributes {dimension_semantics = [#tpu.dimension_semantics<arbitrary>], iteration_bounds = array<i64: 8>, scalar_prefetch = 0 : i64, scratch_operands = 3 : i64, tpu.core_type = #tpu.core_type<tc>, window_params = [{pipeline_mode = #tpu.pipeline_mode<synchronous>, transform_indices = @transform_0, window_bounds = array<i64: 2, 16>}, {pipeline_mode = #tpu.pipeline_mode<synchronous>, transform_indices = @transform_1, window_bounds = array<i64: 2, 2, 64>}, {pipeline_mode = #tpu.pipeline_mode<synchronous>, transform_indices = @transform_2, window_bounds = array<i64: 2, 2, 64>}, {pipeline_mode = #tpu.pipeline_mode<synchronous>, transform_indices = @transform_3, window_bounds = array<i64: 80, 256>}, {pipeline_mode = #tpu.pipeline_mode<synchronous>, transform_indices = @transform_4, window_bounds = array<i64: 1, 256>}, {pipeline_mode = #tpu.pipeline_mode<synchronous>, transform_indices = @transform_5, window_bounds = array<i64: 128, 256>}, {pipeline_mode = #tpu.pipeline_mode<synchronous>, transform_indices = @transform_6, window_bounds = array<i64: 1, 256>}, {pipeline_mode = #tpu.pipeline_mode<synchronous>, transform_indices = @transform_7, window_bounds = array<i64: 64, 128>}, {pipeline_mode = #tpu.pipeline_mode<synchronous>, transform_indices = @transform_8, window_bounds = array<i64: 1, 128>}, {pipeline_mode = #tpu.pipeline_mode<synchronous>, transform_indices = @transform_9, window_bounds = array<i64: 128, 16>}, {transform_indices = @transform_10, window_bounds = array<i64: 1, 2, 128>}]} {
    %c0_i32 = arith.constant 0 : i32
    %0 = arith.cmpi eq, %arg0, %c0_i32 : i32
    %1 = arith.extui %0 : i1 to i32
    %c0_i32_0 = arith.constant 0 : i32
    %2 = arith.cmpi ne, %1, %c0_i32_0 : i32
    scf.if %2 {
      %c0_60 = arith.constant 0 : index
      %c0_61 = arith.constant 0 : index
      %122 = vector.load %arg1[%c0_60, %c0_61] : memref<2x16xf32, #tpu.memory_space<vmem>>, vector<2x16xf32>
      %c0_62 = arith.constant 0 : index
      %c0_63 = arith.constant 0 : index
      %123 = vector.load %arg12[%c0_62, %c0_63] : memref<2x16xf32, #tpu.memory_space<vmem>>, vector<2x16xf32>
      tpu.vector_store %arg12[%c0_62, %c0_63], %122 {strides = array<i32>} : memref<2x16xf32, #tpu.memory_space<vmem>>, vector<2x16xf32>,
      %c0_64 = arith.constant 0 : index
      %c0_65 = arith.constant 0 : index
      %c0_66 = arith.constant 0 : index
      %124 = vector.load %arg2[%c0_64, %c0_65, %c0_66] : memref<2x2x64xf32, #tpu.memory_space<vmem>>, vector<2x2x64xf32>
      %c0_67 = arith.constant 0 : index
      %c0_68 = arith.constant 0 : index
      %c0_69 = arith.constant 0 : index
      %125 = vector.load %arg13[%c0_67, %c0_68, %c0_69] : memref<2x2x64xf32, #tpu.memory_space<vmem>>, vector<2x2x64xf32>
      tpu.vector_store %arg13[%c0_67, %c0_68, %c0_69], %124 {strides = array<i32>} : memref<2x2x64xf32, #tpu.memory_space<vmem>>, vector<2x2x64xf32>,
      %c0_70 = arith.constant 0 : index
      %c0_71 = arith.constant 0 : index
      %c0_72 = arith.constant 0 : index
      %126 = vector.load %arg3[%c0_70, %c0_71, %c0_72] : memref<2x2x64xf32, #tpu.memory_space<vmem>>, vector<2x2x64xf32>
      %c0_73 = arith.constant 0 : index
      %c0_74 = arith.constant 0 : index
      %c0_75 = arith.constant 0 : index
      %127 = vector.load %arg14[%c0_73, %c0_74, %c0_75] : memref<2x2x64xf32, #tpu.memory_space<vmem>>, vector<2x2x64xf32>
      tpu.vector_store %arg14[%c0_73, %c0_74, %c0_75], %126 {strides = array<i32>} : memref<2x2x64xf32, #tpu.memory_space<vmem>>, vector<2x2x64xf32>,
    } else {
    }
    %c0 = arith.constant 0 : index
    %c0_1 = arith.constant 0 : index
    %3 = vector.load %arg12[%c0, %c0_1] : memref<2x16xf32, #tpu.memory_space<vmem>>, vector<2x16xf32>
    %c0_2 = arith.constant 0 : index
    %c0_3 = arith.constant 0 : index
    %c0_4 = arith.constant 0 : index
    %4 = vector.load %arg13[%c0_2, %c0_3, %c0_4] : memref<2x2x64xf32, #tpu.memory_space<vmem>>, vector<1x2x64xf32>
    %5 = vector.shape_cast %4 : vector<1x2x64xf32> to vector<2x64xf32>
    %c0_5 = arith.constant 0 : index
    %c0_6 = arith.constant 0 : index
    %c0_7 = arith.constant 0 : index
    %6 = vector.load %arg14[%c0_5, %c0_6, %c0_7] : memref<2x2x64xf32, #tpu.memory_space<vmem>>, vector<1x2x64xf32>
    %7 = vector.shape_cast %6 : vector<1x2x64xf32> to vector<2x64xf32>
    %c0_8 = arith.constant 0 : index
    %c0_9 = arith.constant 0 : index
    %8 = vector.load %arg4[%c0_8, %c0_9] : memref<80x256xf32, #tpu.memory_space<vmem>>, vector<16x256xf32>
    %cst = arith.constant dense<0.000000e+00> : vector<2x256xf32>
    %9 = tpu.matmul %3, %8, %cst {dimension_numbers = #tpu.dot_dimension_numbers<[1], [0], [0], [1], [0, 0, 1, 1], [], []>} : vector<2x16xf32>, vector<16x256xf32>, vector<2x256xf32> -> vector<2x256xf32>
    %c16 = arith.constant 16 : index
    %c0_10 = arith.constant 0 : index
    %10 = vector.load %arg4[%c16, %c0_10] : memref<80x256xf32, #tpu.memory_space<vmem>>, vector<64x256xf32>
    %cst_11 = arith.constant dense<0.000000e+00> : vector<2x256xf32>
    %11 = tpu.matmul %5, %10, %cst_11 {dimension_numbers = #tpu.dot_dimension_numbers<[1], [0], [0], [1], [0, 0, 1, 1], [], []>} : vector<2x64xf32>, vector<64x256xf32>, vector<2x256xf32> -> vector<2x256xf32>
    %12 = arith.addf %9, %11 : vector<2x256xf32>
    %c0_12 = arith.constant 0 : index
    %c0_13 = arith.constant 0 : index
    %13 = vector.load %arg5[%c0_12, %c0_13] : memref<1x256xf32, #tpu.memory_space<vmem>>, vector<1x256xf32>
    %14 = vector.broadcast %13 : vector<1x256xf32> to vector<2x256xf32>
    %15 = arith.addf %12, %14 : vector<2x256xf32>
    %16 = vector.extract_strided_slice %15 {offsets = [0, 0], sizes = [2, 64], strides = [1, 1]} : vector<2x256xf32> to vector<2x64xf32>
    %17 = arith.negf %16 : vector<2x64xf32>
    %18 = math.exp %17 : vector<2x64xf32>
    %cst_14 = arith.constant 1.000000e+00 : f32
    %19 = vector.broadcast %cst_14 : f32 to vector<2x64xf32>
    %20 = arith.addf %19, %18 : vector<2x64xf32>
    %21 = arith.divf %19, %20 : vector<2x64xf32>
    %22 = vector.extract_strided_slice %15 {offsets = [0, 64], sizes = [2, 64], strides = [1, 1]} : vector<2x256xf32> to vector<2x64xf32>
    %23 = arith.negf %22 : vector<2x64xf32>
    %24 = math.exp %23 : vector<2x64xf32>
    %cst_15 = arith.constant 1.000000e+00 : f32
    %25 = vector.broadcast %cst_15 : f32 to vector<2x64xf32>
    %26 = arith.addf %25, %24 : vector<2x64xf32>
    %27 = arith.divf %25, %26 : vector<2x64xf32>
    %28 = vector.extract_strided_slice %15 {offsets = [0, 128], sizes = [2, 64], strides = [1, 1]} : vector<2x256xf32> to vector<2x64xf32>
    %29 = math.tanh %28 : vector<2x64xf32>
    %30 = vector.extract_strided_slice %15 {offsets = [0, 192], sizes = [2, 64], strides = [1, 1]} : vector<2x256xf32> to vector<2x64xf32>
    %31 = arith.negf %30 : vector<2x64xf32>
    %32 = math.exp %31 : vector<2x64xf32>
    %cst_16 = arith.constant 1.000000e+00 : f32
    %33 = vector.broadcast %cst_16 : f32 to vector<2x64xf32>
    %34 = arith.addf %33, %32 : vector<2x64xf32>
    %35 = arith.divf %33, %34 : vector<2x64xf32>
    %36 = arith.mulf %27, %7 : vector<2x64xf32>
    %37 = arith.mulf %21, %29 : vector<2x64xf32>
    %38 = arith.addf %36, %37 : vector<2x64xf32>
    %39 = math.tanh %38 : vector<2x64xf32>
    %40 = arith.mulf %35, %39 : vector<2x64xf32>
    %c0_17 = arith.constant 0 : index
    %c0_18 = arith.constant 0 : index
    %c0_19 = arith.constant 0 : index
    %41 = vector.load %arg13[%c0_17, %c0_18, %c0_19] : memref<2x2x64xf32, #tpu.memory_space<vmem>>, vector<1x2x64xf32>
    %42 = vector.shape_cast %41 : vector<1x2x64xf32> to vector<2x64xf32>
    %43 = vector.shape_cast %40 : vector<2x64xf32> to vector<1x2x64xf32>
    tpu.vector_store %arg13[%c0_17, %c0_18, %c0_19], %43 {strides = array<i32>} : memref<2x2x64xf32, #tpu.memory_space<vmem>>, vector<1x2x64xf32>,
    %c0_20 = arith.constant 0 : index
    %c0_21 = arith.constant 0 : index
    %c0_22 = arith.constant 0 : index
    %44 = vector.load %arg14[%c0_20, %c0_21, %c0_22] : memref<2x2x64xf32, #tpu.memory_space<vmem>>, vector<1x2x64xf32>
    %45 = vector.shape_cast %44 : vector<1x2x64xf32> to vector<2x64xf32>
    %46 = vector.shape_cast %38 : vector<2x64xf32> to vector<1x2x64xf32>
    tpu.vector_store %arg14[%c0_20, %c0_21, %c0_22], %46 {strides = array<i32>} : memref<2x2x64xf32, #tpu.memory_space<vmem>>, vector<1x2x64xf32>,
    %c1 = arith.constant 1 : index
    %c0_23 = arith.constant 0 : index
    %c0_24 = arith.constant 0 : index
    %47 = vector.load %arg13[%c1, %c0_23, %c0_24] : memref<2x2x64xf32, #tpu.memory_space<vmem>>, vector<1x2x64xf32>
    %48 = vector.shape_cast %47 : vector<1x2x64xf32> to vector<2x64xf32>
    %c1_25 = arith.constant 1 : index
    %c0_26 = arith.constant 0 : index
    %c0_27 = arith.constant 0 : index
    %49 = vector.load %arg14[%c1_25, %c0_26, %c0_27] : memref<2x2x64xf32, #tpu.memory_space<vmem>>, vector<1x2x64xf32>
    %50 = vector.shape_cast %49 : vector<1x2x64xf32> to vector<2x64xf32>
    %c0_28 = arith.constant 0 : index
    %c0_29 = arith.constant 0 : index
    %51 = vector.load %arg6[%c0_28, %c0_29] : memref<128x256xf32, #tpu.memory_space<vmem>>, vector<64x256xf32>
    %cst_30 = arith.constant dense<0.000000e+00> : vector<2x256xf32>
    %52 = tpu.matmul %40, %51, %cst_30 {dimension_numbers = #tpu.dot_dimension_numbers<[1], [0], [0], [1], [0, 0, 1, 1], [], []>} : vector<2x64xf32>, vector<64x256xf32>, vector<2x256xf32> -> vector<2x256xf32>
    %c64 = arith.constant 64 : index
    %c0_31 = arith.constant 0 : index
    %53 = vector.load %arg6[%c64, %c0_31] : memref<128x256xf32, #tpu.memory_space<vmem>>, vector<64x256xf32>
    %cst_32 = arith.constant dense<0.000000e+00> : vector<2x256xf32>
    %54 = tpu.matmul %48, %53, %cst_32 {dimension_numbers = #tpu.dot_dimension_numbers<[1], [0], [0], [1], [0, 0, 1, 1], [], []>} : vector<2x64xf32>, vector<64x256xf32>, vector<2x256xf32> -> vector<2x256xf32>
    %55 = arith.addf %52, %54 : vector<2x256xf32>
    %c0_33 = arith.constant 0 : index
    %c0_34 = arith.constant 0 : index
    %56 = vector.load %arg7[%c0_33, %c0_34] : memref<1x256xf32, #tpu.memory_space<vmem>>, vector<1x256xf32>
    %57 = vector.broadcast %56 : vector<1x256xf32> to vector<2x256xf32>
    %58 = arith.addf %55, %57 : vector<2x256xf32>
    %59 = vector.extract_strided_slice %58 {offsets = [0, 0], sizes = [2, 64], strides = [1, 1]} : vector<2x256xf32> to vector<2x64xf32>
    %60 = arith.negf %59 : vector<2x64xf32>
    %61 = math.exp %60 : vector<2x64xf32>
    %cst_35 = arith.constant 1.000000e+00 : f32
    %62 = vector.broadcast %cst_35 : f32 to vector<2x64xf32>
    %63 = arith.addf %62, %61 : vector<2x64xf32>
    %64 = arith.divf %62, %63 : vector<2x64xf32>
    %65 = vector.extract_strided_slice %58 {offsets = [0, 64], sizes = [2, 64], strides = [1, 1]} : vector<2x256xf32> to vector<2x64xf32>
    %66 = arith.negf %65 : vector<2x64xf32>
    %67 = math.exp %66 : vector<2x64xf32>
    %cst_36 = arith.constant 1.000000e+00 : f32
    %68 = vector.broadcast %cst_36 : f32 to vector<2x64xf32>
    %69 = arith.addf %68, %67 : vector<2x64xf32>
    %70 = arith.divf %68, %69 : vector<2x64xf32>
    %71 = vector.extract_strided_slice %58 {offsets = [0, 128], sizes = [2, 64], strides = [1, 1]} : vector<2x256xf32> to vector<2x64xf32>
    %72 = math.tanh %71 : vector<2x64xf32>
    %73 = vector.extract_strided_slice %58 {offsets = [0, 192], sizes = [2, 64], strides = [1, 1]} : vector<2x256xf32> to vector<2x64xf32>
    %74 = arith.negf %73 : vector<2x64xf32>
    %75 = math.exp %74 : vector<2x64xf32>
    %cst_37 = arith.constant 1.000000e+00 : f32
    %76 = vector.broadcast %cst_37 : f32 to vector<2x64xf32>
    %77 = arith.addf %76, %75 : vector<2x64xf32>
    %78 = arith.divf %76, %77 : vector<2x64xf32>
    %79 = arith.mulf %70, %50 : vector<2x64xf32>
    %80 = arith.mulf %64, %72 : vector<2x64xf32>
    %81 = arith.addf %79, %80 : vector<2x64xf32>
    %82 = math.tanh %81 : vector<2x64xf32>
    %83 = arith.mulf %78, %82 : vector<2x64xf32>
    %c1_38 = arith.constant 1 : index
    %c0_39 = arith.constant 0 : index
    %c0_40 = arith.constant 0 : index
    %84 = vector.load %arg13[%c1_38, %c0_39, %c0_40] : memref<2x2x64xf32, #tpu.memory_space<vmem>>, vector<1x2x64xf32>
    %85 = vector.shape_cast %84 : vector<1x2x64xf32> to vector<2x64xf32>
    %86 = vector.shape_cast %83 : vector<2x64xf32> to vector<1x2x64xf32>
    tpu.vector_store %arg13[%c1_38, %c0_39, %c0_40], %86 {strides = array<i32>} : memref<2x2x64xf32, #tpu.memory_space<vmem>>, vector<1x2x64xf32>,
    %c1_41 = arith.constant 1 : index
    %c0_42 = arith.constant 0 : index
    %c0_43 = arith.constant 0 : index
    %87 = vector.load %arg14[%c1_41, %c0_42, %c0_43] : memref<2x2x64xf32, #tpu.memory_space<vmem>>, vector<1x2x64xf32>
    %88 = vector.shape_cast %87 : vector<1x2x64xf32> to vector<2x64xf32>
    %89 = vector.shape_cast %81 : vector<2x64xf32> to vector<1x2x64xf32>
    tpu.vector_store %arg14[%c1_41, %c0_42, %c0_43], %89 {strides = array<i32>} : memref<2x2x64xf32, #tpu.memory_space<vmem>>, vector<1x2x64xf32>,
    %c0_44 = arith.constant 0 : index
    %c0_45 = arith.constant 0 : index
    %90 = vector.load %arg8[%c0_44, %c0_45] : memref<64x128xf32, #tpu.memory_space<vmem>>, vector<64x128xf32>
    %cst_46 = arith.constant dense<0.000000e+00> : vector<2x128xf32>
    %91 = tpu.matmul %83, %90, %cst_46 {dimension_numbers = #tpu.dot_dimension_numbers<[1], [0], [0], [1], [0, 0, 1, 1], [], []>} : vector<2x64xf32>, vector<64x128xf32>, vector<2x128xf32> -> vector<2x128xf32>
    %c0_47 = arith.constant 0 : index
    %c0_48 = arith.constant 0 : index
    %92 = vector.load %arg9[%c0_47, %c0_48] : memref<1x128xf32, #tpu.memory_space<vmem>>, vector<1x128xf32>
    %93 = vector.broadcast %92 : vector<1x128xf32> to vector<2x128xf32>
    %94 = arith.addf %91, %93 : vector<2x128xf32>
    %cst_49 = arith.constant dense<0xFF800000> : vector<2xf32>
    %95 = vector.multi_reduction <maximumf>, %94, %cst_49 [1] : vector<2x128xf32> to vector<2xf32>
    %96 = vector.shape_cast %95 : vector<2xf32> to vector<2x1xf32>
    %97 = vector.broadcast %96 : vector<2x1xf32> to vector<2x128xf32>
    %98 = arith.subf %94, %97 : vector<2x128xf32>
    %99 = math.exp %98 : vector<2x128xf32>
    %cst_50 = arith.constant dense<0.000000e+00> : vector<2xf32>
    %100 = vector.multi_reduction <add>, %99, %cst_50 [1] : vector<2x128xf32> to vector<2xf32>
    %101 = vector.shape_cast %100 : vector<2xf32> to vector<2x1xf32>
    %102 = math.log %101 : vector<2x1xf32>
    %103 = vector.broadcast %102 : vector<2x1xf32> to vector<2x128xf32>
    %104 = arith.subf %98, %103 : vector<2x128xf32>
    %c0_51 = arith.constant 0 : index
    %c0_52 = arith.constant 0 : index
    %c0_53 = arith.constant 0 : index
    %105 = vector.load %arg11[%c0_51, %c0_52, %c0_53] : memref<1x2x128xf32, #tpu.memory_space<vmem>>, vector<1x2x128xf32>
    %106 = vector.shape_cast %105 : vector<1x2x128xf32> to vector<2x128xf32>
    %107 = vector.shape_cast %104 : vector<2x128xf32> to vector<1x2x128xf32>
    tpu.vector_store %arg11[%c0_51, %c0_52, %c0_53], %107 {strides = array<i32>} : memref<1x2x128xf32, #tpu.memory_space<vmem>>, vector<1x2x128xf32>,
    %108 = tpu.iota {dimensions = array<i32: 1>} : vector<2x128xi32>
    %109 = vector.broadcast %96 : vector<2x1xf32> to vector<2x128xf32>
    %110 = arith.cmpf oeq, %94, %109 : vector<2x128xf32>
    %c128_i32 = arith.constant 128 : i32
    %111 = vector.broadcast %c128_i32 : i32 to vector<2x128xi32>
    %112 = arith.select %110, %108, %111 : vector<2x128xi1>, vector<2x128xi32>
    %cst_54 = arith.constant dense<2147483647> : vector<2xi32>
    %113 = vector.multi_reduction <minsi>, %112, %cst_54 [1] : vector<2x128xi32> to vector<2xi32>
    %114 = vector.shape_cast %113 : vector<2xi32> to vector<2x1xi32>
    %115 = vector.broadcast %114 : vector<2x1xi32> to vector<2x128xi32>
    %116 = arith.cmpi eq, %108, %115 : vector<2x128xi32>
    %117 = arith.extui %116 : vector<2x128xi1> to vector<2x128xi32>
    %118 = arith.sitofp %117 : vector<2x128xi32> to vector<2x128xf32>
    %c0_55 = arith.constant 0 : index
    %c0_56 = arith.constant 0 : index
    %119 = vector.load %arg10[%c0_55, %c0_56] : memref<128x16xf32, #tpu.memory_space<vmem>>, vector<128x16xf32>
    %cst_57 = arith.constant dense<0.000000e+00> : vector<2x16xf32>
    %120 = tpu.matmul %118, %119, %cst_57 {dimension_numbers = #tpu.dot_dimension_numbers<[1], [0], [0], [1], [0, 0, 1, 1], [], []>} : vector<2x128xf32>, vector<128x16xf32>, vector<2x16xf32> -> vector<2x16xf32>
    %c0_58 = arith.constant 0 : index
    %c0_59 = arith.constant 0 : index
    %121 = vector.load %arg12[%c0_58, %c0_59] : memref<2x16xf32, #tpu.memory_space<vmem>>, vector<2x16xf32>
    tpu.vector_store %arg12[%c0_58, %c0_59], %120 {strides = array<i32>} : memref<2x16xf32, #tpu.memory_space<vmem>>, vector<2x16xf32>,
    return
  }
  func.func @transform_0(%arg0: i32) -> (i32, i32) {
    %c0_i32 = arith.constant 0 : i32
    %c0_i32_0 = arith.constant 0 : i32
    %c0_i32_1 = arith.constant 0 : i32
    return %c0_i32, %c0_i32_0 : i32, i32
  }
  func.func @transform_1(%arg0: i32) -> (i32, i32, i32) {
    %c0_i32 = arith.constant 0 : i32
    %c0_i32_0 = arith.constant 0 : i32
    %c0_i32_1 = arith.constant 0 : i32
    %c0_i32_2 = arith.constant 0 : i32
    return %c0_i32, %c0_i32_0, %c0_i32_1 : i32, i32, i32
  }
  func.func @transform_2(%arg0: i32) -> (i32, i32, i32) {
    %c0_i32 = arith.constant 0 : i32
    %c0_i32_0 = arith.constant 0 : i32
    %c0_i32_1 = arith.constant 0 : i32
    %c0_i32_2 = arith.constant 0 : i32
    return %c0_i32, %c0_i32_0, %c0_i32_1 : i32, i32, i32
  }
  func.func @transform_3(%arg0: i32) -> (i32, i32) {
    %c0_i32 = arith.constant 0 : i32
    %c0_i32_0 = arith.constant 0 : i32
    %c0_i32_1 = arith.constant 0 : i32
    return %c0_i32, %c0_i32_0 : i32, i32
  }
  func.func @transform_4(%arg0: i32) -> (i32, i32) {
    %c0_i32 = arith.constant 0 : i32
    %c0_i32_0 = arith.constant 0 : i32
    %c0_i32_1 = arith.constant 0 : i32
    return %c0_i32, %c0_i32_0 : i32, i32
  }
  func.func @transform_5(%arg0: i32) -> (i32, i32) {
    %c0_i32 = arith.constant 0 : i32
    %c0_i32_0 = arith.constant 0 : i32
    %c0_i32_1 = arith.constant 0 : i32
    return %c0_i32, %c0_i32_0 : i32, i32
  }
  func.func @transform_6(%arg0: i32) -> (i32, i32) {
    %c0_i32 = arith.constant 0 : i32
    %c0_i32_0 = arith.constant 0 : i32
    %c0_i32_1 = arith.constant 0 : i32
    return %c0_i32, %c0_i32_0 : i32, i32
  }
  func.func @transform_7(%arg0: i32) -> (i32, i32) {
    %c0_i32 = arith.constant 0 : i32
    %c0_i32_0 = arith.constant 0 : i32
    %c0_i32_1 = arith.constant 0 : i32
    return %c0_i32, %c0_i32_0 : i32, i32
  }
  func.func @transform_8(%arg0: i32) -> (i32, i32) {
    %c0_i32 = arith.constant 0 : i32
    %c0_i32_0 = arith.constant 0 : i32
    %c0_i32_1 = arith.constant 0 : i32
    return %c0_i32, %c0_i32_0 : i32, i32
  }
  func.func @transform_9(%arg0: i32) -> (i32, i32) {
    %c0_i32 = arith.constant 0 : i32
    %c0_i32_0 = arith.constant 0 : i32
    %c0_i32_1 = arith.constant 0 : i32
    return %c0_i32, %c0_i32_0 : i32, i32
  }
  func.func @transform_10(%arg0: i32) -> (i32, i32, i32) {
    %c0_i32 = arith.constant 0 : i32
    %c0_i32_0 = arith.constant 0 : i32
    %c0_i32_1 = arith.constant 0 : i32
    return %arg0, %c0_i32, %c0_i32_0 : i32, i32, i32
  }
}

</mosaic_0001>

<llo_original>
// kernel: birnn_forward.3
$region0: #{birnn_forward.3}
  #allocation0 [shape = 'u32[]', space=smem, size = 0x4, offset = 0x4, fixed_abs, tag = 'smem constant byte address 0x4 - core index']
  #allocation1 [shape = 'u32[144,128]{1,0:T(1,128)}', space=vmem, size = 0x12000, scoped, tag = 'internal scratch']
  #allocation2 [shape = 'f32[2,32]{1,0:T(2,128)}', space=vmem, size = 0x400, scoped, tag = 'scratch operand']
  #allocation3 [shape = 'f32[2,32]{1,0:T(2,128)}', space=vmem, size = 0x400, scoped, tag = 'scratch operand']
  #allocation4 [shape = 'f32[2,32]{1,0:T(2,128)}', space=vmem, size = 0x400, scoped, tag = 'scratch operand']
  #allocation5 [shape = 'f32[2,32]{1,0:T(2,128)}', space=vmem, size = 0x400, scoped, tag = 'scratch operand']
  %s0 = inlined_call_operand.vmem [shape: f32[8,2,16], index: 0, kind: input, shape index: {}, may-alias: {0,1}]
  %s1 = inlined_call_operand.vmem [shape: f32[8,2,16], index: 1, kind: input, shape index: {}, may-alias: {0,1}]
  %s2 = inlined_call_operand.vmem [shape: f32[48,128], index: 2, kind: input, shape index: {}]
  %s3 = inlined_call_operand.vmem [shape: f32[1,128], index: 3, kind: input, shape index: {}]
  %s4 = inlined_call_operand.vmem [shape: f32[48,128], index: 4, kind: input, shape index: {}]
  %s5 = inlined_call_operand.vmem [shape: f32[1,128], index: 5, kind: input, shape index: {}]
  %s6 = inlined_call_operand.vmem [shape: f32[8,2,32], index: 6, kind: output, shape index: {0}]
  %s7 = inlined_call_operand.vmem [shape: f32[8,2,32], index: 7, kind: output, shape index: {1}]
  %s8 = inlined_call_operand.vmem [shape: f32[2,32], index: 8, kind: output, shape index: {2}]
  %s9 = inlined_call_operand.vmem [shape: f32[2,32], index: 9, kind: output, shape index: {3}]
  %10 = xla_tuple %s6, %s7, %s8, %s9
  %s11 = sld [smem:[#allocation0]]
  $region85: #{birnn_forward.3} parent=0
    _
  %s13 = ssub.s32 1, %s11
  %s14 = scalar_select 0, %s13, %s11
  loop: start=0, step=1, limit=10
  $region2: #{birnn_forward.3} parent=0 // loop_pre_header
    _
  $region3: #{birnn_forward.3} parent=0 // loop_header
    %s16 = sphi 0, %s20
    %p17 = scmp.ge.s32.totalorder %s16, 10
    %s26 = sphi 0, %s28
    %s29 = sphi 0, %s26
    %s30 = sphi 0, %s29
    %s46 = sphi 0, %s30
    %s54 = sphi 0, %s56
    %s57 = sphi 0, %s54
    %s58 = sphi 0, %s57
    %s74 = sphi 0, %s58
    %s78 = sphi 0, %s78
    %s80 = sphi 0, %s78
    %s81 = sphi 0, %s80
    %s95 = sphi 0, %s81
    %s99 = sphi 0, %s99
    %s101 = sphi 0, %s99
    %s102 = sphi 0, %s101
    %s116 = sphi 0, %s102
    %s120 = sphi 0, %s120
    %s122 = sphi 0, %s120
    %s123 = sphi 0, %s122
    %s137 = sphi 0, %s123
    %s141 = sphi 0, %s141
    %s143 = sphi 0, %s141
    %s144 = sphi 0, %s143
    %s158 = sphi 0, %s144
    %s164 = sphi 0, %s166
    %s167 = sphi 0, %s164
    %s168 = sphi 0, %s167
    %s184 = sphi 0, %s168
    %s192 = sphi 0, %s194
    %s195 = sphi 0, %s192
    %s196 = sphi 0, %s195
    %s212 = sphi 0, %s196
    %s216 = sphi 0, %s216
    %s218 = sphi 0, %s216
    %s219 = sphi 0, %s218
    %s233 = sphi 0, %s219
    %s237 = sphi 0, %s237
    %s239 = sphi 0, %s237
    %s240 = sphi 0, %s239
    %s254 = sphi 0, %s240
  $region4: #{birnn_forward.3} parent=0 // loop_header_branch
    %19 = sbr.rel (%p17) target = $region8
  $region5: #{birnn_forward.3} parent=0 // loop_body
    %s21 = ssub.s32 %s16, 1
    %s22 = ssub.s32 %s16, 2
    %s23 = sadd.s32 %s16, 1
    %s24 = ssub.s32 %s16, %s23
    %p25 = scmp.eq.s32.totalorder %s24, 0
    %s27 = sadd.s32 %s26, 1
    %s28 = scalar_select %p25, %s26, %s27
    %p31 = pneg %p25
    %p32 = scmp.eq.s32.totalorder %s16, 7
    %p33 = por %p31, %p32
    %p34 = scmp.ne.s32.totalorder %s26, %s29
    %p35 = scmp.eq.s32.totalorder %s16, 0
    %p36 = por %p34, %p35
    %p37 = scmp.ne.s32.totalorder %s26, %s29
    %p38 = scmp.eq.s32.totalorder %s21, 7
    %p39 = por %p37, %p38
    %p40 = scmp.ne.s32.totalorder %s29, %s30
    %p41 = scmp.eq.s32.totalorder %s21, 0
    %p42 = por %p40, %p41
    %p43 = scmp.ne.s32.totalorder %s29, %s30
    %p44 = scmp.eq.s32.totalorder %s22, 7
    %p45 = por %p43, %p44
    %p47 = scmp.ne.s32.totalorder %s30, %s46
    %p48 = scmp.eq.s32.totalorder %s22, 0
    %p49 = por %p47, %p48
    %s50 = ssub.s32 7, %s16
    %s51 = ssub.s32 7, %s23
    %s52 = ssub.s32 %s50, %s51
    %p53 = scmp.eq.s32.totalorder %s52, 0
    %s55 = sadd.s32 %s54, 1
    %s56 = scalar_select %p53, %s54, %s55
    %p59 = pneg %p53
    %p60 = scmp.eq.s32.totalorder %s16, 7
    %p61 = por %p59, %p60
    %p62 = scmp.ne.s32.totalorder %s54, %s57
    %p63 = scmp.eq.s32.totalorder %s16, 0
    %p64 = por %p62, %p63
    %p65 = scmp.ne.s32.totalorder %s54, %s57
    %p66 = scmp.eq.s32.totalorder %s21, 7
    %p67 = por %p65, %p66
    %p68 = scmp.ne.s32.totalorder %s57, %s58
    %p69 = scmp.eq.s32.totalorder %s21, 0
    %p70 = por %p68, %p69
    %p71 = scmp.ne.s32.totalorder %s57, %s58
    %p72 = scmp.eq.s32.totalorder %s22, 7
    %p73 = por %p71, %p72
    %p75 = scmp.ne.s32.totalorder %s58, %s74
    %p76 = scmp.eq.s32.totalorder %s22, 0
    %p77 = por %p75, %p76
    %s79 = sadd.s32 %s78, 1
    %p82 = scmp.eq.s32.totalorder %s16, 7
    %p83 = scmp.ne.s32.totalorder %s78, %s80
    %p84 = scmp.eq.s32.totalorder %s16, 0
    %p85 = por %p83, %p84
    %p86 = scmp.ne.s32.totalorder %s78, %s80
    %p87 = scmp.eq.s32.totalorder %s21, 7
    %p88 = por %p86, %p87
    %p89 = scmp.ne.s32.totalorder %s80, %s81
    %p90 = scmp.eq.s32.totalorder %s21, 0
    %p91 = por %p89, %p90
    %p92 = scmp.ne.s32.totalorder %s80, %s81
    %p93 = scmp.eq.s32.totalorder %s22, 7
    %p94 = por %p92, %p93
    %p96 = scmp.ne.s32.totalorder %s81, %s95
    %p97 = scmp.eq.s32.totalorder %s22, 0
    %p98 = por %p96, %p97
    %s100 = sadd.s32 %s99, 1
    %p103 = scmp.eq.s32.totalorder %s16, 7
    %p104 = scmp.ne.s32.totalorder %s99, %s101
    %p105 = scmp.eq.s32.totalorder %s16, 0
    %p106 = por %p104, %p105
    %p107 = scmp.ne.s32.totalorder %s99, %s101
    %p108 = scmp.eq.s32.totalorder %s21, 7
    %p109 = por %p107, %p108
    %p110 = scmp.ne.s32.totalorder %s101, %s102
    %p111 = scmp.eq.s32.totalorder %s21, 0
    %p112 = por %p110, %p111
    %p113 = scmp.ne.s32.totalorder %s101, %s102
    %p114 = scmp.eq.s32.totalorder %s22, 7
    %p115 = por %p113, %p114
    %p117 = scmp.ne.s32.totalorder %s102, %s116
    %p118 = scmp.eq.s32.totalorder %s22, 0
    %p119 = por %p117, %p118
    %s121 = sadd.s32 %s120, 1
    %p124 = scmp.eq.s32.totalorder %s16, 7
    %p125 = scmp.ne.s32.totalorder %s120, %s122
    %p126 = scmp.eq.s32.totalorder %s16, 0
    %p127 = por %p125, %p126
    %p128 = scmp.ne.s32.totalorder %s120, %s122
    %p129 = scmp.eq.s32.totalorder %s21, 7
    %p130 = por %p128, %p129
    %p131 = scmp.ne.s32.totalorder %s122, %s123
    %p132 = scmp.eq.s32.totalorder %s21, 0
    %p133 = por %p131, %p132
    %p134 = scmp.ne.s32.totalorder %s122, %s123
    %p135 = scmp.eq.s32.totalorder %s22, 7
    %p136 = por %p134, %p135
    %p138 = scmp.ne.s32.totalorder %s123, %s137
    %p139 = scmp.eq.s32.totalorder %s22, 0
    %p140 = por %p138, %p139
    %s142 = sadd.s32 %s141, 1
    %p145 = scmp.eq.s32.totalorder %s16, 7
    %p146 = scmp.ne.s32.totalorder %s141, %s143
    %p147 = scmp.eq.s32.totalorder %s16, 0
    %p148 = por %p146, %p147
    %p149 = scmp.ne.s32.totalorder %s141, %s143
    %p150 = scmp.eq.s32.totalorder %s21, 7
    %p151 = por %p149, %p150
    %p152 = scmp.ne.s32.totalorder %s143, %s144
    %p153 = scmp.eq.s32.totalorder %s21, 0
    %p154 = por %p152, %p153
    %p155 = scmp.ne.s32.totalorder %s143, %s144
    %p156 = scmp.eq.s32.totalorder %s22, 7
    %p157 = por %p155, %p156
    %p159 = scmp.ne.s32.totalorder %s144, %s158
    %p160 = scmp.eq.s32.totalorder %s22, 0
    %p161 = por %p159, %p160
    %s162 = ssub.s32 %s16, %s23
    %p163 = scmp.eq.s32.totalorder %s162, 0
    %s165 = sadd.s32 %s164, 1
    %s166 = scalar_select %p163, %s164, %s165
    %p169 = pneg %p163
    %p170 = scmp.eq.s32.totalorder %s16, 7
    %p171 = por %p169, %p170
    %p172 = scmp.ne.s32.totalorder %s164, %s167
    %p173 = scmp.eq.s32.totalorder %s16, 0
    %p174 = por %p172, %p173
    %p175 = scmp.ne.s32.totalorder %s164, %s167
    %p176 = scmp.eq.s32.totalorder %s21, 7
    %p177 = por %p175, %p176
    %p178 = scmp.ne.s32.totalorder %s167, %s168
    %p179 = scmp.eq.s32.totalorder %s21, 0
    %p180 = por %p178, %p179
    %p181 = scmp.ne.s32.totalorder %s167, %s168
    %p182 = scmp.eq.s32.totalorder %s22, 7
    %p183 = por %p181, %p182
    %p185 = scmp.ne.s32.totalorder %s168, %s184
    %p186 = scmp.eq.s32.totalorder %s22, 0
    %p187 = por %p185, %p186
    %s188 = ssub.s32 7, %s16
    %s189 = ssub.s32 7, %s23
    %s190 = ssub.s32 %s188, %s189
    %p191 = scmp.eq.s32.totalorder %s190, 0
    %s193 = sadd.s32 %s192, 1
    %s194 = scalar_select %p191, %s192, %s193
    %p197 = pneg %p191
    %p198 = scmp.eq.s32.totalorder %s16, 7
    %p199 = por %p197, %p198
    %p200 = scmp.ne.s32.totalorder %s192, %s195
    %p201 = scmp.eq.s32.totalorder %s16, 0
    %p202 = por %p200, %p201
    %p203 = scmp.ne.s32.totalorder %s192, %s195
    %p204 = scmp.eq.s32.totalorder %s21, 7
    %p205 = por %p203, %p204
    %p206 = scmp.ne.s32.totalorder %s195, %s196
    %p207 = scmp.eq.s32.totalorder %s21, 0
    %p208 = por %p206, %p207
    %p209 = scmp.ne.s32.totalorder %s195, %s196
    %p210 = scmp.eq.s32.totalorder %s22, 7
    %p211 = por %p209, %p210
    %p213 = scmp.ne.s32.totalorder %s196, %s212
    %p214 = scmp.eq.s32.totalorder %s22, 0
    %p215 = por %p213, %p214
    %s217 = sadd.s32 %s216, 1
    %p220 = scmp.eq.s32.totalorder %s16, 7
    %p221 = scmp.ne.s32.totalorder %s216, %s218
    %p222 = scmp.eq.s32.totalorder %s16, 0
    %p223 = por %p221, %p222
    %p224 = scmp.ne.s32.totalorder %s216, %s218
    %p225 = scmp.eq.s32.totalorder %s21, 7
    %p226 = por %p224, %p225
    %p227 = scmp.ne.s32.totalorder %s218, %s219
    %p228 = scmp.eq.s32.totalorder %s21, 0
    %p229 = por %p227, %p228
    %p230 = scmp.ne.s32.totalorder %s218, %s219
    %p231 = scmp.eq.s32.totalorder %s22, 7
    %p232 = por %p230, %p231
    %p234 = scmp.ne.s32.totalorder %s219, %s233
    %p235 = scmp.eq.s32.totalorder %s22, 0
    %p236 = por %p234, %p235
    %s238 = sadd.s32 %s237, 1
    %p241 = scmp.eq.s32.totalorder %s16, 7
    %p242 = scmp.ne.s32.totalorder %s237, %s239
    %p243 = scmp.eq.s32.totalorder %s16, 0
    %p244 = por %p242, %p243
    %p245 = scmp.ne.s32.totalorder %s237, %s239
    %p246 = scmp.eq.s32.totalorder %s21, 7
    %p247 = por %p245, %p246
    %p248 = scmp.ne.s32.totalorder %s239, %s240
    %p249 = scmp.eq.s32.totalorder %s21, 0
    %p250 = por %p248, %p249
    %p251 = scmp.ne.s32.totalorder %s239, %s240
    %p252 = scmp.eq.s32.totalorder %s22, 7
    %p253 = por %p251, %p252
    %p255 = scmp.ne.s32.totalorder %s240, %s254
    %p256 = scmp.eq.s32.totalorder %s22, 0
    %p257 = por %p255, %p256
    %p258 = scmp.le.s32.totalorder 1, %s16
    %p259 = scmp.lt.s32.totalorder %s16, 9
    %p260 = pnand %p258, %p259
    %p261 = pneg %p260
    // Predicated region
    $region9: #{birnn_forward.3} parent=5 // pred_check
      _
    $region10: #{birnn_forward.3} parent=5 // pred_check_branch
      %263 = sbr.rel (%p260) target = $region12
    $region11: #{birnn_forward.3} parent=5 // pred_region
      %s264 = ssub.s32 %s16, 1
      // Predicated region
      $region13: #{birnn_forward.3} parent=11 // pred_check
        %p265 = pneg %p91
      $region14: #{birnn_forward.3} parent=11 // pred_check_branch
        %267 = sbr.rel (%p265) target = $region16
      $region15: #{birnn_forward.3} parent=11 // pred_region
        _
      $region16: #{birnn_forward.3} parent=11 // pred_fallthru
        _
      // Predicated region
      $region17: #{birnn_forward.3} parent=11 // pred_check
        %p268 = pneg %p112
      $region18: #{birnn_forward.3} parent=11 // pred_check_branch
        %270 = sbr.rel (%p268) target = $region20
      $region19: #{birnn_forward.3} parent=11 // pred_region
        _
      $region20: #{birnn_forward.3} parent=11 // pred_fallthru
        _
      // Predicated region
      $region21: #{birnn_forward.3} parent=11 // pred_check
        %p271 = pneg %p133
      $region22: #{birnn_forward.3} parent=11 // pred_check_branch
        %273 = sbr.rel (%p271) target = $region24
      $region23: #{birnn_forward.3} parent=11 // pred_region
        _
      $region24: #{birnn_forward.3} parent=11 // pred_fallthru
        _
      // Predicated region
      $region25: #{birnn_forward.3} parent=11 // pred_check
        %p274 = pneg %p154
      $region26: #{birnn_forward.3} parent=11 // pred_check_branch
        %276 = sbr.rel (%p274) target = $region28
      $region27: #{birnn_forward.3} parent=11 // pred_region
        _
      $region28: #{birnn_forward.3} parent=11 // pred_fallthru
        _
    $region12: #{birnn_forward.3} parent=5 // pred_fallthru
      _
    %p277 = scmp.lt.s32.totalorder %s16, 8
    // Predicated region
    $region29: #{birnn_forward.3} parent=5 // pred_check
      %p278 = pneg %p277
    $region30: #{birnn_forward.3} parent=5 // pred_check_branch
      %280 = sbr.rel (%p278) target = $region32
    $region31: #{birnn_forward.3} parent=5 // pred_region
      // Predicated region
      $region33: #{birnn_forward.3} parent=31 // pred_check
        %p281 = pneg %p36
      $region34: #{birnn_forward.3} parent=31 // pred_check_branch
        %283 = sbr.rel (%p281) target = $region36
      $region35: #{birnn_forward.3} parent=31 // pred_region
        %p284 = scmp.lt.s32.totalorder %s16, 7
        %s285 = scalar_select %p284, %s16, 7
        %s286 = smul.addr %s285, 2
        %s287 = scalar_lea.vmem %s0, %s286
      $region36: #{birnn_forward.3} parent=31 // pred_fallthru
        _
      // Predicated region
      $region37: #{birnn_forward.3} parent=31 // pred_check
        %p288 = pneg %p64
      $region38: #{birnn_forward.3} parent=31 // pred_check_branch
        %290 = sbr.rel (%p288) target = $region40
      $region39: #{birnn_forward.3} parent=31 // pred_region
        %s291 = ssub.s32 7, %s16
        %p292 = scmp.lt.s32.totalorder %s291, 7
        %s293 = scalar_select %p292, %s291, 7
        %s294 = smul.addr %s293, 2
        %s295 = scalar_lea.vmem %s1, %s294
        %s296 = ssub.s32 7, %s16
      $region40: #{birnn_forward.3} parent=31 // pred_fallthru
        _
    $region32: #{birnn_forward.3} parent=5 // pred_fallthru
      _
    %p297 = scmp.le.s32.totalorder 1, %s16
    %p298 = scmp.lt.s32.totalorder %s16, 9
    %p299 = pnand %p297, %p298
    %p300 = pneg %p299
    // Predicated region
    $region41: #{birnn_forward.3} parent=5 // pred_check
      _
    $region42: #{birnn_forward.3} parent=5 // pred_check_branch
      %302 = sbr.rel (%p299) target = $region44
    $region43: #{birnn_forward.3} parent=5 // pred_region
      %s303 = ssub.s32 %s16, 1
      %p304 = scmp.lt.s32.totalorder %s21, 7
      %s305 = scalar_select %p304, %s21, 7
      %s306 = smul.addr %s305, 2
      %s307 = scalar_lea.vmem %s0, %s306
      %p308 = pneg %p42
      %p309 = pneg %p39
      %s310 = ssub.s32 7, %s21
      %p311 = scmp.lt.s32.totalorder %s310, 7
      %s312 = scalar_select %p311, %s310, 7
      %s313 = smul.addr %s312, 2
      %s314 = scalar_lea.vmem %s1, %s313
      %p315 = pneg %p70
      %p316 = pneg %p67
      %p317 = pneg %p91
      %p318 = pneg %p88
      %p319 = pneg %p112
      %p320 = pneg %p109
      %p321 = pneg %p133
      %p322 = pneg %p130
      %p323 = pneg %p154
      %p324 = pneg %p151
      %p325 = pneg %p180
      %p326 = pneg %p177
      %p327 = scmp.lt.s32.totalorder %s21, 7
      %s328 = scalar_select %p327, %s21, 7
      %s329 = smul.addr %s328, 2
      %s330 = scalar_lea.vmem %s6, %s329
      %p331 = pneg %p208
      %p332 = pneg %p205
      %s333 = ssub.s32 7, %s21
      %p334 = scmp.lt.s32.totalorder %s333, 7
      %s335 = scalar_select %p334, %s333, 7
      %s336 = smul.addr %s335, 2
      %s337 = scalar_lea.vmem %s7, %s336
      %p338 = pneg %p229
      %p339 = pneg %p226
      %p340 = pneg %p250
      %p341 = pneg %p247
      %p342 = scmp.lt.s32.totalorder %s21, 7
      %s343 = scalar_select %p342, %s21, 7
      %s344 = smul.addr %s343, 2
      %s345 = scalar_lea.vmem %s0, %s344
      %s346 = ssub.s32 7, %s21
      %p347 = scmp.lt.s32.totalorder %s346, 7
      %s348 = scalar_select %p347, %s346, 7
      %s349 = smul.addr %s348, 2
      %s350 = scalar_lea.vmem %s1, %s349
      %s351 = ssub.s32 7, %s21
      %p352 = scmp.lt.s32.totalorder %s21, 7
      %s353 = scalar_select %p352, %s21, 7
      %s354 = smul.addr %s353, 2
      %s355 = scalar_lea.vmem %s6, %s354
      %s356 = ssub.s32 7, %s21
      %p357 = scmp.lt.s32.totalorder %s356, 7
      %s358 = scalar_select %p357, %s356, 7
      %s359 = smul.addr %s358, 2
      %s360 = scalar_lea.vmem %s7, %s359
      %s361 = ssub.s32 7, %s21
      %p362 = scmp.eq.s32.totalorder %s21, 0
      // Predicated region
      $region45: #{birnn_forward.3} parent=43 // pred_check
        %p363 = pneg %p362
      $region46: #{birnn_forward.3} parent=43 // pred_check_branch
        %365 = sbr.rel (%p363) target = $region48
      $region47: #{birnn_forward.3} parent=43 // pred_region
        %vm366 = vcmask 254976
        %367 = vst.msk [vmem:[#allocation2] sm:$0x3] %vm366, 0.0
        %368 = vst.msk [vmem:[#allocation3] sm:$0x3] %vm366, 0.0
        %369 = vst.msk [vmem:[#allocation4] sm:$0x3] %vm366, 0.0
        %370 = vst.msk [vmem:[#allocation5] sm:$0x3] %vm366, 0.0
      $region48: #{birnn_forward.3} parent=43 // pred_fallthru
        _
      %v371 = vld [vmem:[%s345] sm:$0x3]
      %v372 = vld [vmem:[#allocation2] sm:$0x3]
      %v373 = vld [vmem:[#allocation3] sm:$0x3]
      %v374 = vld [vmem:[%s2] sm:$0xff]
      %v375 = vld [vmem:[%s2 + $0x8] sm:$0xff]
      %v376 = vld [vmem:[%s2 + $0x10] sm:$0xff]
      %v377 = vld [vmem:[%s2 + $0x18] sm:$0xff]
      %v378 = vld [vmem:[%s2 + $0x20] sm:$0xff]
      %v379 = vld [vmem:[%s2 + $0x28] sm:$0xff]
      %vm380 = vcmask 261120
      %v382 = vsel %vm380, %v372, 0
      %384 = vmatprep.subr.mxu0 0.0
      %385 = vmatpush1.msra.mxu0 %v376
      %386 = vmatprep.subr.mxu0 0.0
      %387 = vmatpush1.msra.mxu0 %v377
      %388 = vmatprep.subr.mxu0 0.0
      %389 = vmatpush1.msra.mxu0 %v378
      %390 = vmatprep.subr.mxu0 0.0
      %391 = vmatpush1.msra.mxu0 %v379
      %392 = vmatprep.subr.mxu0 0.0
      %393 = vmatpush1.msra.mxu0 0.0
      %394 = vmatprep.subr.mxu0 0.0
      %395 = vmatpush1.msra.mxu0 0.0
      %396 = vmatprep.subr.mxu0 0.0
      %397 = vmatpush1.msra.mxu0 0.0
      %398 = vmatprep.subr.mxu0 0.0
      %399 = vmatpush1.msra.mxu0 0.0
      %400 = vmatprep.subr.mxu0 0.0
      %401 = vmatpush1.msra.mxu0 0.0
      %402 = vmatprep.subr.mxu0 0.0
      %403 = vmatpush1.msra.mxu0 0.0
      %404 = vmatprep.subr.mxu0 0.0
      %405 = vmatpush1.msra.mxu0 0.0
      %406 = vmatprep.subr.mxu0 0.0
      %407 = vmatpush1.msra.mxu0 0.0
      %408 = vmatprep.subr.mxu0 0.0
      %409 = vmatpush1.msra.mxu0 0.0
      %410 = vmatprep.subr.mxu0 0.0
      %411 = vmatpush1.msra.mxu0 0.0
      %412 = vmatprep.subr.mxu0 0.0
      %413 = vmatpush1.msra.mxu0 0.0
      %414 = vmatprep.subr.mxu0 0.0
      %415 = vmatpush1.msra.mxu0 0.0
      %416 = vmatprep.subr.mxu0 0.0
      %417 = vmatpush1.msra.mxu0 0.0
      %418 = vmatprep.subr.mxu0 0.0
      %419 = vmatpush1.msra.mxu0 0.0
      %420 = vmatprep.subr.mxu0 0.0
      %421 = vmatpush1.msra.mxu0 0.0
      %422 = vmatprep.subr.mxu0 0.0
      %423 = vmatpush1.msra.mxu0 0.0
      %424 = vmatprep.subr.mxu0 0.0
      %425 = vmatpush1.msra.mxu0 0.0
      %426 = vmatprep.subr.mxu0 0.0
      %427 = vmatpush1.msra.mxu0 0.0
      %428 = vmatprep.subr.mxu0 0.0
      %429 = vmatpush1.msra.mxu0 0.0
      %430 = vmatprep.subr.mxu0 0.0
      %431 = vmatpush1.msra.mxu0 0.0
      %432 = vmatprep.subr.mxu0 0.0
      %433 = vmatpush1.msra.mxu0 0.0
      %434 = vmatprep.subr.mxu0 0.0
      %435 = vmatpush1.msra.mxu0 0.0
      %436 = vmatprep.subr.mxu0 0.0
      %437 = vmatpush1.msra.mxu0 0.0
      %438 = vmatprep.subr.mxu0 0.0
      %439 = vmatpush1.msra.mxu0 0.0
      %440 = vmatprep.subr.mxu0 0.0
      %441 = vmatpush1.msra.mxu0 0.0
      %442 = vmatprep.subr.mxu0 0.0
      %443 = vmatpush1.msra.mxu0 0.0
      %444 = vmatprep.subr.mxu0 0.0
      %445 = vmatpush1.msra.mxu0 0.0
      %446 = vmatprep.subr.mxu0 0.0
      %447 = vmatpush1.msra.mxu0 0.0
      %448 = vmatprep.mubr.f32.mxu0 0.0
      %449 = vmatmul.mubr.f32.gmra.mrb[0].mxu0 %v382
      %v450 = vpop.f32.mrb[0].mxu0
      %v451 = vadd.f32 0.0, %v450
      %v452 = vpop.f32.mrb[0].mxu0
      %453 = vdwg.mxu0
      %vm454 = vcmask 130048
      %v456 = vsel %vm454, %v371, 0
      %458 = vmatprep.subr.mxu0 0.0
      %459 = vmatpush1.msra.mxu0 %v374
      %460 = vmatprep.subr.mxu0 0.0
      %461 = vmatpush1.msra.mxu0 %v375
      %462 = vmatprep.subr.mxu0 0.0
      %463 = vmatpush1.msra.mxu0 0.0
      %464 = vmatprep.subr.mxu0 0.0
      %465 = vmatpush1.msra.mxu0 0.0
      %466 = vmatprep.subr.mxu0 0.0
      %467 = vmatpush1.msra.mxu0 0.0
      %468 = vmatprep.subr.mxu0 0.0
      %469 = vmatpush1.msra.mxu0 0.0
      %470 = vmatprep.subr.mxu0 0.0
      %471 = vmatpush1.msra.mxu0 0.0
      %472 = vmatprep.subr.mxu0 0.0
      %473 = vmatpush1.msra.mxu0 0.0
      %474 = vmatprep.subr.mxu0 0.0
      %475 = vmatpush1.msra.mxu0 0.0
      %476 = vmatprep.subr.mxu0 0.0
      %477 = vmatpush1.msra.mxu0 0.0
      %478 = vmatprep.subr.mxu0 0.0
      %479 = vmatpush1.msra.mxu0 0.0
      %480 = vmatprep.subr.mxu0 0.0
      %481 = vmatpush1.msra.mxu0 0.0
      %482 = vmatprep.subr.mxu0 0.0
      %483 = vmatpush1.msra.mxu0 0.0
      %484 = vmatprep.subr.mxu0 0.0
      %485 = vmatpush1.msra.mxu0 0.0
      %486 = vmatprep.subr.mxu0 0.0
      %487 = vmatpush1.msra.mxu0 0.0
      %488 = vmatprep.subr.mxu0 0.0
      %489 = vmatpush1.msra.mxu0 0.0
      %490 = vmatprep.subr.mxu0 0.0
      %491 = vmatpush1.msra.mxu0 0.0
      %492 = vmatprep.subr.mxu0 0.0
      %493 = vmatpush1.msra.mxu0 0.0
      %494 = vmatprep.subr.mxu0 0.0
      %495 = vmatpush1.msra.mxu0 0.0
      %496 = vmatprep.subr.mxu0 0.0
      %497 = vmatpush1.msra.mxu0 0.0
      %498 = vmatprep.subr.mxu0 0.0
      %499 = vmatpush1.msra.mxu0 0.0
      %500 = vmatprep.subr.mxu0 0.0
      %501 = vmatpush1.msra.mxu0 0.0
      %502 = vmatprep.subr.mxu0 0.0
      %503 = vmatpush1.msra.mxu0 0.0
      %504 = vmatprep.subr.mxu0 0.0
      %505 = vmatpush1.msra.mxu0 0.0
      %506 = vmatprep.subr.mxu0 0.0
      %507 = vmatpush1.msra.mxu0 0.0
      %508 = vmatprep.subr.mxu0 0.0
      %509 = vmatpush1.msra.mxu0 0.0
      %510 = vmatprep.subr.mxu0 0.0
      %511 = vmatpush1.msra.mxu0 0.0
      %512 = vmatprep.subr.mxu0 0.0
      %513 = vmatpush1.msra.mxu0 0.0
      %514 = vmatprep.subr.mxu0 0.0
      %515 = vmatpush1.msra.mxu0 0.0
      %516 = vmatprep.subr.mxu0 0.0
      %517 = vmatpush1.msra.mxu0 0.0
      %518 = vmatprep.subr.mxu0 0.0
      %519 = vmatpush1.msra.mxu0 0.0
      %520 = vmatprep.subr.mxu0 0.0
      %521 = vmatpush1.msra.mxu0 0.0
      %522 = vmatprep.mubr.f32.mxu0 0.0
      %523 = vmatmul.mubr.f32.gmra.mrb[0].mxu0 %v456
      %v524 = vpop.f32.mrb[0].mxu0
      %v525 = vadd.f32 %v451, %v524
      %v526 = vpop.f32.mrb[0].mxu0
      %527 = vdwg.mxu0
      %v528 = vld [vmem:[%s3] sm:$0x1]
      %v530 = vlaneseq
      %v531 = vshrl.u32 %v530, 7
      %v532 = vsub.s32 0, %v531
      %v533 = vrot.slane %v528, %v532
      %v535 = vadd.f32 %v525, %v533
      %v536 = vxor.u32 %v535, 2147483648
      %v537 = vmul.f32 %v536, 1.442695
      %v538 = vpow.pop %v537
      %v539 = vadd.f32 %v538, 1.0
      %v540 = vrcp.pop %v539
      %v541 = vmul.f32 1.0, %v540
      %v542 = vtanh.pop %v535
      %544 = vrot.lane.b32.xlu0 %v373, 32
      %v545 = vpop.permute.xlu0 %544
      %v547 = vmul.f32 %v541, %v545
      %549 = vrot.lane.b32.xlu0 %v542, 64
      %v550 = vpop.permute.xlu0 %549
      %v552 = vmul.f32 %v541, %v550
      %554 = vrot.lane.b32.xlu0 %v552, 32
      %v555 = vpop.permute.xlu0 %554
      %v557 = vadd.f32 %v547, %v555
      %v558 = vtanh.pop %v557
      %560 = vrot.lane.b32.xlu0 %v558, 64
      %v561 = vpop.permute.xlu0 %560
      %v563 = vmul.f32 %v541, %v561
      %v564 = vld [vmem:[%s350] sm:$0x3]
      %v565 = vld [vmem:[#allocation4] sm:$0x3]
      %v566 = vld [vmem:[#allocation5] sm:$0x3]
      %v567 = vld [vmem:[%s4] sm:$0xff]
      %v568 = vld [vmem:[%s4 + $0x8] sm:$0xff]
      %v569 = vld [vmem:[%s4 + $0x10] sm:$0xff]
      %v570 = vld [vmem:[%s4 + $0x18] sm:$0xff]
      %v571 = vld [vmem:[%s4 + $0x20] sm:$0xff]
      %v572 = vld [vmem:[%s4 + $0x28] sm:$0xff]
      %v574 = vsel %vm380, %v565, 0
      %576 = vmatprep.subr.mxu0 0.0
      %577 = vmatpush1.msra.mxu0 %v569
      %578 = vmatprep.subr.mxu0 0.0
      %579 = vmatpush1.msra.mxu0 %v570
      %580 = vmatprep.subr.mxu0 0.0
      %581 = vmatpush1.msra.mxu0 %v571
      %582 = vmatprep.subr.mxu0 0.0
      %583 = vmatpush1.msra.mxu0 %v572
      %584 = vmatprep.subr.mxu0 0.0
      %585 = vmatpush1.msra.mxu0 0.0
      %586 = vmatprep.subr.mxu0 0.0
      %587 = vmatpush1.msra.mxu0 0.0
      %588 = vmatprep.subr.mxu0 0.0
      %589 = vmatpush1.msra.mxu0 0.0
      %590 = vmatprep.subr.mxu0 0.0
      %591 = vmatpush1.msra.mxu0 0.0
      %592 = vmatprep.subr.mxu0 0.0
      %593 = vmatpush1.msra.mxu0 0.0
      %594 = vmatprep.subr.mxu0 0.0
      %595 = vmatpush1.msra.mxu0 0.0
      %596 = vmatprep.subr.mxu0 0.0
      %597 = vmatpush1.msra.mxu0 0.0
      %598 = vmatprep.subr.mxu0 0.0
      %599 = vmatpush1.msra.mxu0 0.0
      %600 = vmatprep.subr.mxu0 0.0
      %601 = vmatpush1.msra.mxu0 0.0
      %602 = vmatprep.subr.mxu0 0.0
      %603 = vmatpush1.msra.mxu0 0.0
      %604 = vmatprep.subr.mxu0 0.0
      %605 = vmatpush1.msra.mxu0 0.0
      %606 = vmatprep.subr.mxu0 0.0
      %607 = vmatpush1.msra.mxu0 0.0
      %608 = vmatprep.subr.mxu0 0.0
      %609 = vmatpush1.msra.mxu0 0.0
      %610 = vmatprep.subr.mxu0 0.0
      %611 = vmatpush1.msra.mxu0 0.0
      %612 = vmatprep.subr.mxu0 0.0
      %613 = vmatpush1.msra.mxu0 0.0
      %614 = vmatprep.subr.mxu0 0.0
      %615 = vmatpush1.msra.mxu0 0.0
      %616 = vmatprep.subr.mxu0 0.0
      %617 = vmatpush1.msra.mxu0 0.0
      %618 = vmatprep.subr.mxu0 0.0
      %619 = vmatpush1.msra.mxu0 0.0
      %620 = vmatprep.subr.mxu0 0.0
      %621 = vmatpush1.msra.mxu0 0.0
      %622 = vmatprep.subr.mxu0 0.0
      %623 = vmatpush1.msra.mxu0 0.0
      %624 = vmatprep.subr.mxu0 0.0
      %625 = vmatpush1.msra.mxu0 0.0
      %626 = vmatprep.subr.mxu0 0.0
      %627 = vmatpush1.msra.mxu0 0.0
      %628 = vmatprep.subr.mxu0 0.0
      %629 = vmatpush1.msra.mxu0 0.0
      %630 = vmatprep.subr.mxu0 0.0
      %631 = vmatpush1.msra.mxu0 0.0
      %632 = vmatprep.subr.mxu0 0.0
      %633 = vmatpush1.msra.mxu0 0.0
      %634 = vmatprep.subr.mxu0 0.0
      %635 = vmatpush1.msra.mxu0 0.0
      %636 = vmatprep.subr.mxu0 0.0
      %637 = vmatpush1.msra.mxu0 0.0
      %638 = vmatprep.subr.mxu0 0.0
      %639 = vmatpush1.msra.mxu0 0.0
      %640 = vmatprep.mubr.f32.mxu0 0.0
      %641 = vmatmul.mubr.f32.gmra.mrb[0].mxu0 %v574
      %v642 = vpop.f32.mrb[0].mxu0
      %v643 = vadd.f32 0.0, %v642
      %v644 = vpop.f32.mrb[0].mxu0
      %645 = vdwg.mxu0
      %v647 = vsel %vm454, %v564, 0
      %649 = vmatprep.subr.mxu0 0.0
      %650 = vmatpush1.msra.mxu0 %v567
      %651 = vmatprep.subr.mxu0 0.0
      %652 = vmatpush1.msra.mxu0 %v568
      %653 = vmatprep.subr.mxu0 0.0
      %654 = vmatpush1.msra.mxu0 0.0
      %655 = vmatprep.subr.mxu0 0.0
      %656 = vmatpush1.msra.mxu0 0.0
      %657 = vmatprep.subr.mxu0 0.0
      %658 = vmatpush1.msra.mxu0 0.0
      %659 = vmatprep.subr.mxu0 0.0
      %660 = vmatpush1.msra.mxu0 0.0
      %661 = vmatprep.subr.mxu0 0.0
      %662 = vmatpush1.msra.mxu0 0.0
      %663 = vmatprep.subr.mxu0 0.0
      %664 = vmatpush1.msra.mxu0 0.0
      %665 = vmatprep.subr.mxu0 0.0
      %666 = vmatpush1.msra.mxu0 0.0
      %667 = vmatprep.subr.mxu0 0.0
      %668 = vmatpush1.msra.mxu0 0.0
      %669 = vmatprep.subr.mxu0 0.0
      %670 = vmatpush1.msra.mxu0 0.0
      %671 = vmatprep.subr.mxu0 0.0
      %672 = vmatpush1.msra.mxu0 0.0
      %673 = vmatprep.subr.mxu0 0.0
      %674 = vmatpush1.msra.mxu0 0.0
      %675 = vmatprep.subr.mxu0 0.0
      %676 = vmatpush1.msra.mxu0 0.0
      %677 = vmatprep.subr.mxu0 0.0
      %678 = vmatpush1.msra.mxu0 0.0
      %679 = vmatprep.subr.mxu0 0.0
      %680 = vmatpush1.msra.mxu0 0.0
      %681 = vmatprep.subr.mxu0 0.0
      %682 = vmatpush1.msra.mxu0 0.0
      %683 = vmatprep.subr.mxu0 0.0
      %684 = vmatpush1.msra.mxu0 0.0
      %685 = vmatprep.subr.mxu0 0.0
      %686 = vmatpush1.msra.mxu0 0.0
      %687 = vmatprep.subr.mxu0 0.0
      %688 = vmatpush1.msra.mxu0 0.0
      %689 = vmatprep.subr.mxu0 0.0
      %690 = vmatpush1.msra.mxu0 0.0
      %691 = vmatprep.subr.mxu0 0.0
      %692 = vmatpush1.msra.mxu0 0.0
      %693 = vmatprep.subr.mxu0 0.0
      %694 = vmatpush1.msra.mxu0 0.0
      %695 = vmatprep.subr.mxu0 0.0
      %696 = vmatpush1.msra.mxu0 0.0
      %697 = vmatprep.subr.mxu0 0.0
      %698 = vmatpush1.msra.mxu0 0.0
      %699 = vmatprep.subr.mxu0 0.0
      %700 = vmatpush1.msra.mxu0 0.0
      %701 = vmatprep.subr.mxu0 0.0
      %702 = vmatpush1.msra.mxu0 0.0
      %703 = vmatprep.subr.mxu0 0.0
      %704 = vmatpush1.msra.mxu0 0.0
      %705 = vmatprep.subr.mxu0 0.0
      %706 = vmatpush1.msra.mxu0 0.0
      %707 = vmatprep.subr.mxu0 0.0
      %708 = vmatpush1.msra.mxu0 0.0
      %709 = vmatprep.subr.mxu0 0.0
      %710 = vmatpush1.msra.mxu0 0.0
      %711 = vmatprep.subr.mxu0 0.0
      %712 = vmatpush1.msra.mxu0 0.0
      %713 = vmatprep.mubr.f32.mxu0 0.0
      %714 = vmatmul.mubr.f32.gmra.mrb[0].mxu0 %v647
      %v715 = vpop.f32.mrb[0].mxu0
      %v716 = vadd.f32 %v643, %v715
      %v717 = vpop.f32.mrb[0].mxu0
      %718 = vdwg.mxu0
      %v719 = vld [vmem:[%s5] sm:$0x1]
      %v721 = vlaneseq
      %v722 = vshrl.u32 %v721, 7
      %v723 = vsub.s32 0, %v722
      %v724 = vrot.slane %v719, %v723
      %v726 = vadd.f32 %v716, %v724
      %v727 = vxor.u32 %v726, 2147483648
      %v728 = vmul.f32 %v727, 1.442695
      %v729 = vpow.pop %v728
      %v730 = vadd.f32 %v729, 1.0
      %v731 = vrcp.pop %v730
      %v732 = vmul.f32 1.0, %v731
      %v733 = vtanh.pop %v726
      %735 = vrot.lane.b32.xlu0 %v566, 32
      %v736 = vpop.permute.xlu0 %735
      %v738 = vmul.f32 %v732, %v736
      %740 = vrot.lane.b32.xlu0 %v733, 64
      %v741 = vpop.permute.xlu0 %740
      %v743 = vmul.f32 %v732, %v741
      %745 = vrot.lane.b32.xlu0 %v743, 32
      %v746 = vpop.permute.xlu0 %745
      %v748 = vadd.f32 %v738, %v746
      %v749 = vtanh.pop %v748
      %751 = vrot.lane.b32.xlu0 %v749, 64
      %v752 = vpop.permute.xlu0 %751
      %v754 = vmul.f32 %v732, %v752
      %756 = vrot.lane.b32.xlu0 %v563, 32
      %v757 = vpop.permute.xlu0 %756
      %vm759 = vcmask 254976
      %760 = vst.msk [vmem:[#allocation2] sm:$0x3] %vm759, %v757
      %762 = vrot.lane.b32.xlu0 %v557, 96
      %v763 = vpop.permute.xlu0 %762
      %765 = vst.msk [vmem:[#allocation3] sm:$0x3] %vm759, %v763
      %767 = vrot.lane.b32.xlu0 %v754, 32
      %v768 = vpop.permute.xlu0 %767
      %770 = vst.msk [vmem:[#allocation4] sm:$0x3] %vm759, %v768
      %772 = vrot.lane.b32.xlu0 %v748, 96
      %v773 = vpop.permute.xlu0 %772
      %775 = vst.msk [vmem:[#allocation5] sm:$0x3] %vm759, %v773
      %776 = vst.msk [vmem:[%s355] sm:$0x3] %vm759, %v757
      %777 = vst.msk [vmem:[%s360] sm:$0x3] %vm759, %v768
      %778 = vst.msk [vmem:[%s8] sm:$0x3] %vm759, %v763
      %779 = vst.msk [vmem:[%s9] sm:$0x3] %vm759, %v773
      %p780 = scmp.lt.s32.totalorder %s21, 7
      %s781 = scalar_select %p780, %s21, 7
      %s782 = smul.addr %s781, 2
      %s783 = scalar_lea.vmem %s6, %s782
      %s784 = ssub.s32 7, %s21
      %p785 = scmp.lt.s32.totalorder %s784, 7
      %s786 = scalar_select %p785, %s784, 7
      %s787 = smul.addr %s786, 2
      %s788 = scalar_lea.vmem %s7, %s787
      // Predicated region
      $region49: #{birnn_forward.3} parent=43 // pred_check
        %p789 = pneg %p177
      $region50: #{birnn_forward.3} parent=43 // pred_check_branch
        %791 = sbr.rel (%p789) target = $region52
      $region51: #{birnn_forward.3} parent=43 // pred_region
        _
      $region52: #{birnn_forward.3} parent=43 // pred_fallthru
        _
      // Predicated region
      $region53: #{birnn_forward.3} parent=43 // pred_check
        %p792 = pneg %p205
      $region54: #{birnn_forward.3} parent=43 // pred_check_branch
        %794 = sbr.rel (%p792) target = $region56
      $region55: #{birnn_forward.3} parent=43 // pred_region
        %s795 = ssub.s32 7, %s21
      $region56: #{birnn_forward.3} parent=43 // pred_fallthru
        _
      // Predicated region
      $region57: #{birnn_forward.3} parent=43 // pred_check
        %p796 = pneg %p226
      $region58: #{birnn_forward.3} parent=43 // pred_check_branch
        %798 = sbr.rel (%p796) target = $region60
      $region59: #{birnn_forward.3} parent=43 // pred_region
        _
      $region60: #{birnn_forward.3} parent=43 // pred_fallthru
        _
      // Predicated region
      $region61: #{birnn_forward.3} parent=43 // pred_check
        %p799 = pneg %p247
      $region62: #{birnn_forward.3} parent=43 // pred_check_branch
        %801 = sbr.rel (%p799) target = $region64
      $region63: #{birnn_forward.3} parent=43 // pred_region
        _
      $region64: #{birnn_forward.3} parent=43 // pred_fallthru
        _
      // Predicated region
      $region65: #{birnn_forward.3} parent=43 // pred_check
        %p802 = pneg %p226
      $region66: #{birnn_forward.3} parent=43 // pred_check_branch
        %804 = sbr.rel (%p802) target = $region68
      $region67: #{birnn_forward.3} parent=43 // pred_region
        _
      $region68: #{birnn_forward.3} parent=43 // pred_fallthru
        _
      // Predicated region
      $region69: #{birnn_forward.3} parent=43 // pred_check
        %p805 = pneg %p247
      $region70: #{birnn_forward.3} parent=43 // pred_check_branch
        %807 = sbr.rel (%p805) target = $region72
      $region71: #{birnn_forward.3} parent=43 // pred_region
        _
      $region72: #{birnn_forward.3} parent=43 // pred_fallthru
        _
    $region44: #{birnn_forward.3} parent=5 // pred_fallthru
      _
    %p808 = scmp.le.s32.totalorder 2, %s16
    // Predicated region
    $region73: #{birnn_forward.3} parent=5 // pred_check
      %p809 = pneg %p808
    $region74: #{birnn_forward.3} parent=5 // pred_check_branch
      %811 = sbr.rel (%p809) target = $region76
    $region75: #{birnn_forward.3} parent=5 // pred_region
      %s812 = ssub.s32 %s16, 2
      // Predicated region
      $region77: #{birnn_forward.3} parent=75 // pred_check
        %p813 = pneg %p183
      $region78: #{birnn_forward.3} parent=75 // pred_check_branch
        %815 = sbr.rel (%p813) target = $region80
      $region79: #{birnn_forward.3} parent=75 // pred_region
        %p816 = scmp.lt.s32.totalorder %s22, 7
        %s817 = scalar_select %p816, %s22, 7
        %s818 = smul.addr %s817, 2
        %s819 = scalar_lea.vmem %s6, %s818
      $region80: #{birnn_forward.3} parent=75 // pred_fallthru
        _
      // Predicated region
      $region81: #{birnn_forward.3} parent=75 // pred_check
        %p820 = pneg %p211
      $region82: #{birnn_forward.3} parent=75 // pred_check_branch
        %822 = sbr.rel (%p820) target = $region84
      $region83: #{birnn_forward.3} parent=75 // pred_region
        %s823 = ssub.s32 7, %s22
        %p824 = scmp.lt.s32.totalorder %s823, 7
        %s825 = scalar_select %p824, %s823, 7
        %s826 = smul.addr %s825, 2
        %s827 = scalar_lea.vmem %s7, %s826
      $region84: #{birnn_forward.3} parent=75 // pred_fallthru
        _
    $region76: #{birnn_forward.3} parent=5 // pred_fallthru
      _
  $region6: #{birnn_forward.3} parent=0 // loop_footer
    %s20 = sadd.s32 1, %s16
  $region7: #{birnn_forward.3} parent=0 // loop_footer_branch
    %15 = sbr.rel target = $region3
  $region8: #{birnn_forward.3} parent=0 // loop_exit
    _

// kernel: birnn_forward.4
$region0: #{birnn_forward.4}
  #allocation0 [shape = 'u32[]', space=smem, size = 0x4, offset = 0x4, fixed_abs, tag = 'smem constant byte address 0x4 - core index']
  #allocation1 [shape = 'u32[144,128]{1,0:T(1,128)}', space=vmem, size = 0x12000, scoped, tag = 'internal scratch']
  #allocation2 [shape = 'f32[2,32]{1,0:T(2,128)}', space=vmem, size = 0x400, scoped, tag = 'scratch operand']
  #allocation3 [shape = 'f32[2,32]{1,0:T(2,128)}', space=vmem, size = 0x400, scoped, tag = 'scratch operand']
  #allocation4 [shape = 'f32[2,32]{1,0:T(2,128)}', space=vmem, size = 0x400, scoped, tag = 'scratch operand']
  #allocation5 [shape = 'f32[2,32]{1,0:T(2,128)}', space=vmem, size = 0x400, scoped, tag = 'scratch operand']
  %s0 = inlined_call_operand.vmem [shape: f32[8,2,64], index: 0, kind: input, shape index: {}, may-alias: {0,1}]
  %s1 = inlined_call_operand.vmem [shape: f32[8,2,64], index: 1, kind: input, shape index: {}, may-alias: {0,1}]
  %s2 = inlined_call_operand.vmem [shape: f32[96,128], index: 2, kind: input, shape index: {}]
  %s3 = inlined_call_operand.vmem [shape: f32[1,128], index: 3, kind: input, shape index: {}]
  %s4 = inlined_call_operand.vmem [shape: f32[96,128], index: 4, kind: input, shape index: {}]
  %s5 = inlined_call_operand.vmem [shape: f32[1,128], index: 5, kind: input, shape index: {}]
  %s6 = inlined_call_operand.vmem [shape: f32[8,2,32], index: 6, kind: output, shape index: {0}]
  %s7 = inlined_call_operand.vmem [shape: f32[8,2,32], index: 7, kind: output, shape index: {1}]
  %s8 = inlined_call_operand.vmem [shape: f32[2,32], index: 8, kind: output, shape index: {2}]
  %s9 = inlined_call_operand.vmem [shape: f32[2,32], index: 9, kind: output, shape index: {3}]
  %10 = xla_tuple %s6, %s7, %s8, %s9
  %s11 = sld [smem:[#allocation0]]
  $region85: #{birnn_forward.4} parent=0
    _
  %s13 = ssub.s32 1, %s11
  %s14 = scalar_select 0, %s13, %s11
  loop: start=0, step=1, limit=10
  $region2: #{birnn_forward.4} parent=0 // loop_pre_header
    _
  $region3: #{birnn_forward.4} parent=0 // loop_header
    %s16 = sphi 0, %s20
    %p17 = scmp.ge.s32.totalorder %s16, 10
    %s26 = sphi 0, %s28
    %s29 = sphi 0, %s26
    %s30 = sphi 0, %s29
    %s46 = sphi 0, %s30
    %s54 = sphi 0, %s56
    %s57 = sphi 0, %s54
    %s58 = sphi 0, %s57
    %s74 = sphi 0, %s58
    %s78 = sphi 0, %s78
    %s80 = sphi 0, %s78
    %s81 = sphi 0, %s80
    %s95 = sphi 0, %s81
    %s99 = sphi 0, %s99
    %s101 = sphi 0, %s99
    %s102 = sphi 0, %s101
    %s116 = sphi 0, %s102
    %s120 = sphi 0, %s120
    %s122 = sphi 0, %s120
    %s123 = sphi 0, %s122
    %s137 = sphi 0, %s123
    %s141 = sphi 0, %s141
    %s143 = sphi 0, %s141
    %s144 = sphi 0, %s143
    %s158 = sphi 0, %s144
    %s164 = sphi 0, %s166
    %s167 = sphi 0, %s164
    %s168 = sphi 0, %s167
    %s184 = sphi 0, %s168
    %s192 = sphi 0, %s194
    %s195 = sphi 0, %s192
    %s196 = sphi 0, %s195
    %s212 = sphi 0, %s196
    %s216 = sphi 0, %s216
    %s218 = sphi 0, %s216
    %s219 = sphi 0, %s218
    %s233 = sphi 0, %s219
    %s237 = sphi 0, %s237
    %s239 = sphi 0, %s237
    %s240 = sphi 0, %s239
    %s254 = sphi 0, %s240
  $region4: #{birnn_forward.4} parent=0 // loop_header_branch
    %19 = sbr.rel (%p17) target = $region8
  $region5: #{birnn_forward.4} parent=0 // loop_body
    %s21 = ssub.s32 %s16, 1
    %s22 = ssub.s32 %s16, 2
    %s23 = sadd.s32 %s16, 1
    %s24 = ssub.s32 %s16, %s23
    %p25 = scmp.eq.s32.totalorder %s24, 0
    %s27 = sadd.s32 %s26, 1
    %s28 = scalar_select %p25, %s26, %s27
    %p31 = pneg %p25
    %p32 = scmp.eq.s32.totalorder %s16, 7
    %p33 = por %p31, %p32
    %p34 = scmp.ne.s32.totalorder %s26, %s29
    %p35 = scmp.eq.s32.totalorder %s16, 0
    %p36 = por %p34, %p35
    %p37 = scmp.ne.s32.totalorder %s26, %s29
    %p38 = scmp.eq.s32.totalorder %s21, 7
    %p39 = por %p37, %p38
    %p40 = scmp.ne.s32.totalorder %s29, %s30
    %p41 = scmp.eq.s32.totalorder %s21, 0
    %p42 = por %p40, %p41
    %p43 = scmp.ne.s32.totalorder %s29, %s30
    %p44 = scmp.eq.s32.totalorder %s22, 7
    %p45 = por %p43, %p44
    %p47 = scmp.ne.s32.totalorder %s30, %s46
    %p48 = scmp.eq.s32.totalorder %s22, 0
    %p49 = por %p47, %p48
    %s50 = ssub.s32 7, %s16
    %s51 = ssub.s32 7, %s23
    %s52 = ssub.s32 %s50, %s51
    %p53 = scmp.eq.s32.totalorder %s52, 0
    %s55 = sadd.s32 %s54, 1
    %s56 = scalar_select %p53, %s54, %s55
    %p59 = pneg %p53
    %p60 = scmp.eq.s32.totalorder %s16, 7
    %p61 = por %p59, %p60
    %p62 = scmp.ne.s32.totalorder %s54, %s57
    %p63 = scmp.eq.s32.totalorder %s16, 0
    %p64 = por %p62, %p63
    %p65 = scmp.ne.s32.totalorder %s54, %s57
    %p66 = scmp.eq.s32.totalorder %s21, 7
    %p67 = por %p65, %p66
    %p68 = scmp.ne.s32.totalorder %s57, %s58
    %p69 = scmp.eq.s32.totalorder %s21, 0
    %p70 = por %p68, %p69
    %p71 = scmp.ne.s32.totalorder %s57, %s58
    %p72 = scmp.eq.s32.totalorder %s22, 7
    %p73 = por %p71, %p72
    %p75 = scmp.ne.s32.totalorder %s58, %s74
    %p76 = scmp.eq.s32.totalorder %s22, 0
    %p77 = por %p75, %p76
    %s79 = sadd.s32 %s78, 1
    %p82 = scmp.eq.s32.totalorder %s16, 7
    %p83 = scmp.ne.s32.totalorder %s78, %s80
    %p84 = scmp.eq.s32.totalorder %s16, 0
    %p85 = por %p83, %p84
    %p86 = scmp.ne.s32.totalorder %s78, %s80
    %p87 = scmp.eq.s32.totalorder %s21, 7
    %p88 = por %p86, %p87
    %p89 = scmp.ne.s32.totalorder %s80, %s81
    %p90 = scmp.eq.s32.totalorder %s21, 0
    %p91 = por %p89, %p90
    %p92 = scmp.ne.s32.totalorder %s80, %s81
    %p93 = scmp.eq.s32.totalorder %s22, 7
    %p94 = por %p92, %p93
    %p96 = scmp.ne.s32.totalorder %s81, %s95
    %p97 = scmp.eq.s32.totalorder %s22, 0
    %p98 = por %p96, %p97
    %s100 = sadd.s32 %s99, 1
    %p103 = scmp.eq.s32.totalorder %s16, 7
    %p104 = scmp.ne.s32.totalorder %s99, %s101
    %p105 = scmp.eq.s32.totalorder %s16, 0
    %p106 = por %p104, %p105
    %p107 = scmp.ne.s32.totalorder %s99, %s101
    %p108 = scmp.eq.s32.totalorder %s21, 7
    %p109 = por %p107, %p108
    %p110 = scmp.ne.s32.totalorder %s101, %s102
    %p111 = scmp.eq.s32.totalorder %s21, 0
    %p112 = por %p110, %p111
    %p113 = scmp.ne.s32.totalorder %s101, %s102
    %p114 = scmp.eq.s32.totalorder %s22, 7
    %p115 = por %p113, %p114
    %p117 = scmp.ne.s32.totalorder %s102, %s116
    %p118 = scmp.eq.s32.totalorder %s22, 0
    %p119 = por %p117, %p118
    %s121 = sadd.s32 %s120, 1
    %p124 = scmp.eq.s32.totalorder %s16, 7
    %p125 = scmp.ne.s32.totalorder %s120, %s122
    %p126 = scmp.eq.s32.totalorder %s16, 0
    %p127 = por %p125, %p126
    %p128 = scmp.ne.s32.totalorder %s120, %s122
    %p129 = scmp.eq.s32.totalorder %s21, 7
    %p130 = por %p128, %p129
    %p131 = scmp.ne.s32.totalorder %s122, %s123
    %p132 = scmp.eq.s32.totalorder %s21, 0
    %p133 = por %p131, %p132
    %p134 = scmp.ne.s32.totalorder %s122, %s123
    %p135 = scmp.eq.s32.totalorder %s22, 7
    %p136 = por %p134, %p135
    %p138 = scmp.ne.s32.totalorder %s123, %s137
    %p139 = scmp.eq.s32.totalorder %s22, 0
    %p140 = por %p138, %p139
    %s142 = sadd.s32 %s141, 1
    %p145 = scmp.eq.s32.totalorder %s16, 7
    %p146 = scmp.ne.s32.totalorder %s141, %s143
    %p147 = scmp.eq.s32.totalorder %s16, 0
    %p148 = por %p146, %p147
    %p149 = scmp.ne.s32.totalorder %s141, %s143
    %p150 = scmp.eq.s32.totalorder %s21, 7
    %p151 = por %p149, %p150
    %p152 = scmp.ne.s32.totalorder %s143, %s144
    %p153 = scmp.eq.s32.totalorder %s21, 0
    %p154 = por %p152, %p153
    %p155 = scmp.ne.s32.totalorder %s143, %s144
    %p156 = scmp.eq.s32.totalorder %s22, 7
    %p157 = por %p155, %p156
    %p159 = scmp.ne.s32.totalorder %s144, %s158
    %p160 = scmp.eq.s32.totalorder %s22, 0
    %p161 = por %p159, %p160
    %s162 = ssub.s32 %s16, %s23
    %p163 = scmp.eq.s32.totalorder %s162, 0
    %s165 = sadd.s32 %s164, 1
    %s166 = scalar_select %p163, %s164, %s165
    %p169 = pneg %p163
    %p170 = scmp.eq.s32.totalorder %s16, 7
    %p171 = por %p169, %p170
    %p172 = scmp.ne.s32.totalorder %s164, %s167
    %p173 = scmp.eq.s32.totalorder %s16, 0
    %p174 = por %p172, %p173
    %p175 = scmp.ne.s32.totalorder %s164, %s167
    %p176 = scmp.eq.s32.totalorder %s21, 7
    %p177 = por %p175, %p176
    %p178 = scmp.ne.s32.totalorder %s167, %s168
    %p179 = scmp.eq.s32.totalorder %s21, 0
    %p180 = por %p178, %p179
    %p181 = scmp.ne.s32.totalorder %s167, %s168
    %p182 = scmp.eq.s32.totalorder %s22, 7
    %p183 = por %p181, %p182
    %p185 = scmp.ne.s32.totalorder %s168, %s184
    %p186 = scmp.eq.s32.totalorder %s22, 0
    %p187 = por %p185, %p186
    %s188 = ssub.s32 7, %s16
    %s189 = ssub.s32 7, %s23
    %s190 = ssub.s32 %s188, %s189
    %p191 = scmp.eq.s32.totalorder %s190, 0
    %s193 = sadd.s32 %s192, 1
    %s194 = scalar_select %p191, %s192, %s193
    %p197 = pneg %p191
    %p198 = scmp.eq.s32.totalorder %s16, 7
    %p199 = por %p197, %p198
    %p200 = scmp.ne.s32.totalorder %s192, %s195
    %p201 = scmp.eq.s32.totalorder %s16, 0
    %p202 = por %p200, %p201
    %p203 = scmp.ne.s32.totalorder %s192, %s195
    %p204 = scmp.eq.s32.totalorder %s21, 7
    %p205 = por %p203, %p204
    %p206 = scmp.ne.s32.totalorder %s195, %s196
    %p207 = scmp.eq.s32.totalorder %s21, 0
    %p208 = por %p206, %p207
    %p209 = scmp.ne.s32.totalorder %s195, %s196
    %p210 = scmp.eq.s32.totalorder %s22, 7
    %p211 = por %p209, %p210
    %p213 = scmp.ne.s32.totalorder %s196, %s212
    %p214 = scmp.eq.s32.totalorder %s22, 0
    %p215 = por %p213, %p214
    %s217 = sadd.s32 %s216, 1
    %p220 = scmp.eq.s32.totalorder %s16, 7
    %p221 = scmp.ne.s32.totalorder %s216, %s218
    %p222 = scmp.eq.s32.totalorder %s16, 0
    %p223 = por %p221, %p222
    %p224 = scmp.ne.s32.totalorder %s216, %s218
    %p225 = scmp.eq.s32.totalorder %s21, 7
    %p226 = por %p224, %p225
    %p227 = scmp.ne.s32.totalorder %s218, %s219
    %p228 = scmp.eq.s32.totalorder %s21, 0
    %p229 = por %p227, %p228
    %p230 = scmp.ne.s32.totalorder %s218, %s219
    %p231 = scmp.eq.s32.totalorder %s22, 7
    %p232 = por %p230, %p231
    %p234 = scmp.ne.s32.totalorder %s219, %s233
    %p235 = scmp.eq.s32.totalorder %s22, 0
    %p236 = por %p234, %p235
    %s238 = sadd.s32 %s237, 1
    %p241 = scmp.eq.s32.totalorder %s16, 7
    %p242 = scmp.ne.s32.totalorder %s237, %s239
    %p243 = scmp.eq.s32.totalorder %s16, 0
    %p244 = por %p242, %p243
    %p245 = scmp.ne.s32.totalorder %s237, %s239
    %p246 = scmp.eq.s32.totalorder %s21, 7
    %p247 = por %p245, %p246
    %p248 = scmp.ne.s32.totalorder %s239, %s240
    %p249 = scmp.eq.s32.totalorder %s21, 0
    %p250 = por %p248, %p249
    %p251 = scmp.ne.s32.totalorder %s239, %s240
    %p252 = scmp.eq.s32.totalorder %s22, 7
    %p253 = por %p251, %p252
    %p255 = scmp.ne.s32.totalorder %s240, %s254
    %p256 = scmp.eq.s32.totalorder %s22, 0
    %p257 = por %p255, %p256
    %p258 = scmp.le.s32.totalorder 1, %s16
    %p259 = scmp.lt.s32.totalorder %s16, 9
    %p260 = pnand %p258, %p259
    %p261 = pneg %p260
    // Predicated region
    $region9: #{birnn_forward.4} parent=5 // pred_check
      _
    $region10: #{birnn_forward.4} parent=5 // pred_check_branch
      %263 = sbr.rel (%p260) target = $region12
    $region11: #{birnn_forward.4} parent=5 // pred_region
      %s264 = ssub.s32 %s16, 1
      // Predicated region
      $region13: #{birnn_forward.4} parent=11 // pred_check
        %p265 = pneg %p91
      $region14: #{birnn_forward.4} parent=11 // pred_check_branch
        %267 = sbr.rel (%p265) target = $region16
      $region15: #{birnn_forward.4} parent=11 // pred_region
        _
      $region16: #{birnn_forward.4} parent=11 // pred_fallthru
        _
      // Predicated region
      $region17: #{birnn_forward.4} parent=11 // pred_check
        %p268 = pneg %p112
      $region18: #{birnn_forward.4} parent=11 // pred_check_branch
        %270 = sbr.rel (%p268) target = $region20
      $region19: #{birnn_forward.4} parent=11 // pred_region
        _
      $region20: #{birnn_forward.4} parent=11 // pred_fallthru
        _
      // Predicated region
      $region21: #{birnn_forward.4} parent=11 // pred_check
        %p271 = pneg %p133
      $region22: #{birnn_forward.4} parent=11 // pred_check_branch
        %273 = sbr.rel (%p271) target = $region24
      $region23: #{birnn_forward.4} parent=11 // pred_region
        _
      $region24: #{birnn_forward.4} parent=11 // pred_fallthru
        _
      // Predicated region
      $region25: #{birnn_forward.4} parent=11 // pred_check
        %p274 = pneg %p154
      $region26: #{birnn_forward.4} parent=11 // pred_check_branch
        %276 = sbr.rel (%p274) target = $region28
      $region27: #{birnn_forward.4} parent=11 // pred_region
        _
      $region28: #{birnn_forward.4} parent=11 // pred_fallthru
        _
    $region12: #{birnn_forward.4} parent=5 // pred_fallthru
      _
    %p277 = scmp.lt.s32.totalorder %s16, 8
    // Predicated region
    $region29: #{birnn_forward.4} parent=5 // pred_check
      %p278 = pneg %p277
    $region30: #{birnn_forward.4} parent=5 // pred_check_branch
      %280 = sbr.rel (%p278) target = $region32
    $region31: #{birnn_forward.4} parent=5 // pred_region
      // Predicated region
      $region33: #{birnn_forward.4} parent=31 // pred_check
        %p281 = pneg %p36
      $region34: #{birnn_forward.4} parent=31 // pred_check_branch
        %283 = sbr.rel (%p281) target = $region36
      $region35: #{birnn_forward.4} parent=31 // pred_region
        %p284 = scmp.lt.s32.totalorder %s16, 7
        %s285 = scalar_select %p284, %s16, 7
        %s286 = smul.addr %s285, 2
        %s287 = scalar_lea.vmem %s0, %s286
      $region36: #{birnn_forward.4} parent=31 // pred_fallthru
        _
      // Predicated region
      $region37: #{birnn_forward.4} parent=31 // pred_check
        %p288 = pneg %p64
      $region38: #{birnn_forward.4} parent=31 // pred_check_branch
        %290 = sbr.rel (%p288) target = $region40
      $region39: #{birnn_forward.4} parent=31 // pred_region
        %s291 = ssub.s32 7, %s16
        %p292 = scmp.lt.s32.totalorder %s291, 7
        %s293 = scalar_select %p292, %s291, 7
        %s294 = smul.addr %s293, 2
        %s295 = scalar_lea.vmem %s1, %s294
        %s296 = ssub.s32 7, %s16
      $region40: #{birnn_forward.4} parent=31 // pred_fallthru
        _
    $region32: #{birnn_forward.4} parent=5 // pred_fallthru
      _
    %p297 = scmp.le.s32.totalorder 1, %s16
    %p298 = scmp.lt.s32.totalorder %s16, 9
    %p299 = pnand %p297, %p298
    %p300 = pneg %p299
    // Predicated region
    $region41: #{birnn_forward.4} parent=5 // pred_check
      _
    $region42: #{birnn_forward.4} parent=5 // pred_check_branch
      %302 = sbr.rel (%p299) target = $region44
    $region43: #{birnn_forward.4} parent=5 // pred_region
      %s303 = ssub.s32 %s16, 1
      %p304 = scmp.lt.s32.totalorder %s21, 7
      %s305 = scalar_select %p304, %s21, 7
      %s306 = smul.addr %s305, 2
      %s307 = scalar_lea.vmem %s0, %s306
      %p308 = pneg %p42
      %p309 = pneg %p39
      %s310 = ssub.s32 7, %s21
      %p311 = scmp.lt.s32.totalorder %s310, 7
      %s312 = scalar_select %p311, %s310, 7
      %s313 = smul.addr %s312, 2
      %s314 = scalar_lea.vmem %s1, %s313
      %p315 = pneg %p70
      %p316 = pneg %p67
      %p317 = pneg %p91
      %p318 = pneg %p88
      %p319 = pneg %p112
      %p320 = pneg %p109
      %p321 = pneg %p133
      %p322 = pneg %p130
      %p323 = pneg %p154
      %p324 = pneg %p151
      %p325 = pneg %p180
      %p326 = pneg %p177
      %p327 = scmp.lt.s32.totalorder %s21, 7
      %s328 = scalar_select %p327, %s21, 7
      %s329 = smul.addr %s328, 2
      %s330 = scalar_lea.vmem %s6, %s329
      %p331 = pneg %p208
      %p332 = pneg %p205
      %s333 = ssub.s32 7, %s21
      %p334 = scmp.lt.s32.totalorder %s333, 7
      %s335 = scalar_select %p334, %s333, 7
      %s336 = smul.addr %s335, 2
      %s337 = scalar_lea.vmem %s7, %s336
      %p338 = pneg %p229
      %p339 = pneg %p226
      %p340 = pneg %p250
      %p341 = pneg %p247
      %p342 = scmp.lt.s32.totalorder %s21, 7
      %s343 = scalar_select %p342, %s21, 7
      %s344 = smul.addr %s343, 2
      %s345 = scalar_lea.vmem %s0, %s344
      %s346 = ssub.s32 7, %s21
      %p347 = scmp.lt.s32.totalorder %s346, 7
      %s348 = scalar_select %p347, %s346, 7
      %s349 = smul.addr %s348, 2
      %s350 = scalar_lea.vmem %s1, %s349
      %s351 = ssub.s32 7, %s21
      %p352 = scmp.lt.s32.totalorder %s21, 7
      %s353 = scalar_select %p352, %s21, 7
      %s354 = smul.addr %s353, 2
      %s355 = scalar_lea.vmem %s6, %s354
      %s356 = ssub.s32 7, %s21
      %p357 = scmp.lt.s32.totalorder %s356, 7
      %s358 = scalar_select %p357, %s356, 7
      %s359 = smul.addr %s358, 2
      %s360 = scalar_lea.vmem %s7, %s359
      %s361 = ssub.s32 7, %s21
      %p362 = scmp.eq.s32.totalorder %s21, 0
      // Predicated region
      $region45: #{birnn_forward.4} parent=43 // pred_check
        %p363 = pneg %p362
      $region46: #{birnn_forward.4} parent=43 // pred_check_branch
        %365 = sbr.rel (%p363) target = $region48
      $region47: #{birnn_forward.4} parent=43 // pred_region
        %vm366 = vcmask 254976
        %367 = vst.msk [vmem:[#allocation2] sm:$0x3] %vm366, 0.0
        %368 = vst.msk [vmem:[#allocation3] sm:$0x3] %vm366, 0.0
        %369 = vst.msk [vmem:[#allocation4] sm:$0x3] %vm366, 0.0
        %370 = vst.msk [vmem:[#allocation5] sm:$0x3] %vm366, 0.0
      $region48: #{birnn_forward.4} parent=43 // pred_fallthru
        _
      %v371 = vld [vmem:[%s345] sm:$0x3]
      %v372 = vld [vmem:[#allocation2] sm:$0x3]
      %v373 = vld [vmem:[#allocation3] sm:$0x3]
      %v374 = vld [vmem:[%s2] sm:$0xff]
      %v375 = vld [vmem:[%s2 + $0x8] sm:$0xff]
      %v376 = vld [vmem:[%s2 + $0x10] sm:$0xff]
      %v377 = vld [vmem:[%s2 + $0x18] sm:$0xff]
      %v378 = vld [vmem:[%s2 + $0x20] sm:$0xff]
      %v379 = vld [vmem:[%s2 + $0x28] sm:$0xff]
      %v380 = vld [vmem:[%s2 + $0x30] sm:$0xff]
      %v381 = vld [vmem:[%s2 + $0x38] sm:$0xff]
      %v382 = vld [vmem:[%s2 + $0x40] sm:$0xff]
      %v383 = vld [vmem:[%s2 + $0x48] sm:$0xff]
      %v384 = vld [vmem:[%s2 + $0x50] sm:$0xff]
      %v385 = vld [vmem:[%s2 + $0x58] sm:$0xff]
      %vm386 = vcmask 261120
      %v388 = vsel %vm386, %v372, 0
      %390 = vmatprep.subr.mxu0 0.0
      %391 = vmatpush1.msra.mxu0 %v382
      %392 = vmatprep.subr.mxu0 0.0
      %393 = vmatpush1.msra.mxu0 %v383
      %394 = vmatprep.subr.mxu0 0.0
      %395 = vmatpush1.msra.mxu0 %v384
      %396 = vmatprep.subr.mxu0 0.0
      %397 = vmatpush1.msra.mxu0 %v385
      %398 = vmatprep.subr.mxu0 0.0
      %399 = vmatpush1.msra.mxu0 0.0
      %400 = vmatprep.subr.mxu0 0.0
      %401 = vmatpush1.msra.mxu0 0.0
      %402 = vmatprep.subr.mxu0 0.0
      %403 = vmatpush1.msra.mxu0 0.0
      %404 = vmatprep.subr.mxu0 0.0
      %405 = vmatpush1.msra.mxu0 0.0
      %406 = vmatprep.subr.mxu0 0.0
      %407 = vmatpush1.msra.mxu0 0.0
      %408 = vmatprep.subr.mxu0 0.0
      %409 = vmatpush1.msra.mxu0 0.0
      %410 = vmatprep.subr.mxu0 0.0
      %411 = vmatpush1.msra.mxu0 0.0
      %412 = vmatprep.subr.mxu0 0.0
      %413 = vmatpush1.msra.mxu0 0.0
      %414 = vmatprep.subr.mxu0 0.0
      %415 = vmatpush1.msra.mxu0 0.0
      %416 = vmatprep.subr.mxu0 0.0
      %417 = vmatpush1.msra.mxu0 0.0
      %418 = vmatprep.subr.mxu0 0.0
      %419 = vmatpush1.msra.mxu0 0.0
      %420 = vmatprep.subr.mxu0 0.0
      %421 = vmatpush1.msra.mxu0 0.0
      %422 = vmatprep.subr.mxu0 0.0
      %423 = vmatpush1.msra.mxu0 0.0
      %424 = vmatprep.subr.mxu0 0.0
      %425 = vmatpush1.msra.mxu0 0.0
      %426 = vmatprep.subr.mxu0 0.0
      %427 = vmatpush1.msra.mxu0 0.0
      %428 = vmatprep.subr.mxu0 0.0
      %429 = vmatpush1.msra.mxu0 0.0
      %430 = vmatprep.subr.mxu0 0.0
      %431 = vmatpush1.msra.mxu0 0.0
      %432 = vmatprep.subr.mxu0 0.0
      %433 = vmatpush1.msra.mxu0 0.0
      %434 = vmatprep.subr.mxu0 0.0
      %435 = vmatpush1.msra.mxu0 0.0
      %436 = vmatprep.subr.mxu0 0.0
      %437 = vmatpush1.msra.mxu0 0.0
      %438 = vmatprep.subr.mxu0 0.0
      %439 = vmatpush1.msra.mxu0 0.0
      %440 = vmatprep.subr.mxu0 0.0
      %441 = vmatpush1.msra.mxu0 0.0
      %442 = vmatprep.subr.mxu0 0.0
      %443 = vmatpush1.msra.mxu0 0.0
      %444 = vmatprep.subr.mxu0 0.0
      %445 = vmatpush1.msra.mxu0 0.0
      %446 = vmatprep.subr.mxu0 0.0
      %447 = vmatpush1.msra.mxu0 0.0
      %448 = vmatprep.subr.mxu0 0.0
      %449 = vmatpush1.msra.mxu0 0.0
      %450 = vmatprep.subr.mxu0 0.0
      %451 = vmatpush1.msra.mxu0 0.0
      %452 = vmatprep.subr.mxu0 0.0
      %453 = vmatpush1.msra.mxu0 0.0
      %454 = vmatprep.mubr.f32.mxu0 0.0
      %455 = vmatmul.mubr.f32.gmra.mrb[0].mxu0 %v388
      %v456 = vpop.f32.mrb[0].mxu0
      %v457 = vadd.f32 0.0, %v456
      %v458 = vpop.f32.mrb[0].mxu0
      %459 = vdwg.mxu0
      %vm460 = vcmask 523264
      %v462 = vsel %vm460, %v371, 0
      %464 = vmatprep.subr.mxu0 0.0
      %465 = vmatpush1.msra.mxu0 %v374
      %466 = vmatprep.subr.mxu0 0.0
      %467 = vmatpush1.msra.mxu0 %v375
      %468 = vmatprep.subr.mxu0 0.0
      %469 = vmatpush1.msra.mxu0 %v376
      %470 = vmatprep.subr.mxu0 0.0
      %471 = vmatpush1.msra.mxu0 %v377
      %472 = vmatprep.subr.mxu0 0.0
      %473 = vmatpush1.msra.mxu0 %v378
      %474 = vmatprep.subr.mxu0 0.0
      %475 = vmatpush1.msra.mxu0 %v379
      %476 = vmatprep.subr.mxu0 0.0
      %477 = vmatpush1.msra.mxu0 %v380
      %478 = vmatprep.subr.mxu0 0.0
      %479 = vmatpush1.msra.mxu0 %v381
      %480 = vmatprep.subr.mxu0 0.0
      %481 = vmatpush1.msra.mxu0 0.0
      %482 = vmatprep.subr.mxu0 0.0
      %483 = vmatpush1.msra.mxu0 0.0
      %484 = vmatprep.subr.mxu0 0.0
      %485 = vmatpush1.msra.mxu0 0.0
      %486 = vmatprep.subr.mxu0 0.0
      %487 = vmatpush1.msra.mxu0 0.0
      %488 = vmatprep.subr.mxu0 0.0
      %489 = vmatpush1.msra.mxu0 0.0
      %490 = vmatprep.subr.mxu0 0.0
      %491 = vmatpush1.msra.mxu0 0.0
      %492 = vmatprep.subr.mxu0 0.0
      %493 = vmatpush1.msra.mxu0 0.0
      %494 = vmatprep.subr.mxu0 0.0
      %495 = vmatpush1.msra.mxu0 0.0
      %496 = vmatprep.subr.mxu0 0.0
      %497 = vmatpush1.msra.mxu0 0.0
      %498 = vmatprep.subr.mxu0 0.0
      %499 = vmatpush1.msra.mxu0 0.0
      %500 = vmatprep.subr.mxu0 0.0
      %501 = vmatpush1.msra.mxu0 0.0
      %502 = vmatprep.subr.mxu0 0.0
      %503 = vmatpush1.msra.mxu0 0.0
      %504 = vmatprep.subr.mxu0 0.0
      %505 = vmatpush1.msra.mxu0 0.0
      %506 = vmatprep.subr.mxu0 0.0
      %507 = vmatpush1.msra.mxu0 0.0
      %508 = vmatprep.subr.mxu0 0.0
      %509 = vmatpush1.msra.mxu0 0.0
      %510 = vmatprep.subr.mxu0 0.0
      %511 = vmatpush1.msra.mxu0 0.0
      %512 = vmatprep.subr.mxu0 0.0
      %513 = vmatpush1.msra.mxu0 0.0
      %514 = vmatprep.subr.mxu0 0.0
      %515 = vmatpush1.msra.mxu0 0.0
      %516 = vmatprep.subr.mxu0 0.0
      %517 = vmatpush1.msra.mxu0 0.0
      %518 = vmatprep.subr.mxu0 0.0
      %519 = vmatpush1.msra.mxu0 0.0
      %520 = vmatprep.subr.mxu0 0.0
      %521 = vmatpush1.msra.mxu0 0.0
      %522 = vmatprep.subr.mxu0 0.0
      %523 = vmatpush1.msra.mxu0 0.0
      %524 = vmatprep.subr.mxu0 0.0
      %525 = vmatpush1.msra.mxu0 0.0
      %526 = vmatprep.subr.mxu0 0.0
      %527 = vmatpush1.msra.mxu0 0.0
      %528 = vmatprep.mubr.f32.mxu0 0.0
      %529 = vmatmul.mubr.f32.gmra.mrb[0].mxu0 %v462
      %v530 = vpop.f32.mrb[0].mxu0
      %v531 = vadd.f32 %v457, %v530
      %v532 = vpop.f32.mrb[0].mxu0
      %533 = vdwg.mxu0
      %v534 = vld [vmem:[%s3] sm:$0x1]
      %v536 = vlaneseq
      %v537 = vshrl.u32 %v536, 7
      %v538 = vsub.s32 0, %v537
      %v539 = vrot.slane %v534, %v538
      %v541 = vadd.f32 %v531, %v539
      %v542 = vxor.u32 %v541, 2147483648
      %v543 = vmul.f32 %v542, 1.442695
      %v544 = vpow.pop %v543
      %v545 = vadd.f32 %v544, 1.0
      %v546 = vrcp.pop %v545
      %v547 = vmul.f32 1.0, %v546
      %v548 = vtanh.pop %v541
      %550 = vrot.lane.b32.xlu0 %v373, 32
      %v551 = vpop.permute.xlu0 %550
      %v553 = vmul.f32 %v547, %v551
      %555 = vrot.lane.b32.xlu0 %v548, 64
      %v556 = vpop.permute.xlu0 %555
      %v558 = vmul.f32 %v547, %v556
      %560 = vrot.lane.b32.xlu0 %v558, 32
      %v561 = vpop.permute.xlu0 %560
      %v563 = vadd.f32 %v553, %v561
      %v564 = vtanh.pop %v563
      %566 = vrot.lane.b32.xlu0 %v564, 64
      %v567 = vpop.permute.xlu0 %566
      %v569 = vmul.f32 %v547, %v567
      %v570 = vld [vmem:[%s350] sm:$0x3]
      %v571 = vld [vmem:[#allocation4] sm:$0x3]
      %v572 = vld [vmem:[#allocation5] sm:$0x3]
      %v573 = vld [vmem:[%s4] sm:$0xff]
      %v574 = vld [vmem:[%s4 + $0x8] sm:$0xff]
      %v575 = vld [vmem:[%s4 + $0x10] sm:$0xff]
      %v576 = vld [vmem:[%s4 + $0x18] sm:$0xff]
      %v577 = vld [vmem:[%s4 + $0x20] sm:$0xff]
      %v578 = vld [vmem:[%s4 + $0x28] sm:$0xff]
      %v579 = vld [vmem:[%s4 + $0x30] sm:$0xff]
      %v580 = vld [vmem:[%s4 + $0x38] sm:$0xff]
      %v581 = vld [vmem:[%s4 + $0x40] sm:$0xff]
      %v582 = vld [vmem:[%s4 + $0x48] sm:$0xff]
      %v583 = vld [vmem:[%s4 + $0x50] sm:$0xff]
      %v584 = vld [vmem:[%s4 + $0x58] sm:$0xff]
      %v586 = vsel %vm386, %v571, 0
      %588 = vmatprep.subr.mxu0 0.0
      %589 = vmatpush1.msra.mxu0 %v581
      %590 = vmatprep.subr.mxu0 0.0
      %591 = vmatpush1.msra.mxu0 %v582
      %592 = vmatprep.subr.mxu0 0.0
      %593 = vmatpush1.msra.mxu0 %v583
      %594 = vmatprep.subr.mxu0 0.0
      %595 = vmatpush1.msra.mxu0 %v584
      %596 = vmatprep.subr.mxu0 0.0
      %597 = vmatpush1.msra.mxu0 0.0
      %598 = vmatprep.subr.mxu0 0.0
      %599 = vmatpush1.msra.mxu0 0.0
      %600 = vmatprep.subr.mxu0 0.0
      %601 = vmatpush1.msra.mxu0 0.0
      %602 = vmatprep.subr.mxu0 0.0
      %603 = vmatpush1.msra.mxu0 0.0
      %604 = vmatprep.subr.mxu0 0.0
      %605 = vmatpush1.msra.mxu0 0.0
      %606 = vmatprep.subr.mxu0 0.0
      %607 = vmatpush1.msra.mxu0 0.0
      %608 = vmatprep.subr.mxu0 0.0
      %609 = vmatpush1.msra.mxu0 0.0
      %610 = vmatprep.subr.mxu0 0.0
      %611 = vmatpush1.msra.mxu0 0.0
      %612 = vmatprep.subr.mxu0 0.0
      %613 = vmatpush1.msra.mxu0 0.0
      %614 = vmatprep.subr.mxu0 0.0
      %615 = vmatpush1.msra.mxu0 0.0
      %616 = vmatprep.subr.mxu0 0.0
      %617 = vmatpush1.msra.mxu0 0.0
      %618 = vmatprep.subr.mxu0 0.0
      %619 = vmatpush1.msra.mxu0 0.0
      %620 = vmatprep.subr.mxu0 0.0
      %621 = vmatpush1.msra.mxu0 0.0
      %622 = vmatprep.subr.mxu0 0.0
      %623 = vmatpush1.msra.mxu0 0.0
      %624 = vmatprep.subr.mxu0 0.0
      %625 = vmatpush1.msra.mxu0 0.0
      %626 = vmatprep.subr.mxu0 0.0
      %627 = vmatpush1.msra.mxu0 0.0
      %628 = vmatprep.subr.mxu0 0.0
      %629 = vmatpush1.msra.mxu0 0.0
      %630 = vmatprep.subr.mxu0 0.0
      %631 = vmatpush1.msra.mxu0 0.0
      %632 = vmatprep.subr.mxu0 0.0
      %633 = vmatpush1.msra.mxu0 0.0
      %634 = vmatprep.subr.mxu0 0.0
      %635 = vmatpush1.msra.mxu0 0.0
      %636 = vmatprep.subr.mxu0 0.0
      %637 = vmatpush1.msra.mxu0 0.0
      %638 = vmatprep.subr.mxu0 0.0
      %639 = vmatpush1.msra.mxu0 0.0
      %640 = vmatprep.subr.mxu0 0.0
      %641 = vmatpush1.msra.mxu0 0.0
      %642 = vmatprep.subr.mxu0 0.0
      %643 = vmatpush1.msra.mxu0 0.0
      %644 = vmatprep.subr.mxu0 0.0
      %645 = vmatpush1.msra.mxu0 0.0
      %646 = vmatprep.subr.mxu0 0.0
      %647 = vmatpush1.msra.mxu0 0.0
      %648 = vmatprep.subr.mxu0 0.0
      %649 = vmatpush1.msra.mxu0 0.0
      %650 = vmatprep.subr.mxu0 0.0
      %651 = vmatpush1.msra.mxu0 0.0
      %652 = vmatprep.mubr.f32.mxu0 0.0
      %653 = vmatmul.mubr.f32.gmra.mrb[0].mxu0 %v586
      %v654 = vpop.f32.mrb[0].mxu0
      %v655 = vadd.f32 0.0, %v654
      %v656 = vpop.f32.mrb[0].mxu0
      %657 = vdwg.mxu0
      %v659 = vsel %vm460, %v570, 0
      %661 = vmatprep.subr.mxu0 0.0
      %662 = vmatpush1.msra.mxu0 %v573
      %663 = vmatprep.subr.mxu0 0.0
      %664 = vmatpush1.msra.mxu0 %v574
      %665 = vmatprep.subr.mxu0 0.0
      %666 = vmatpush1.msra.mxu0 %v575
      %667 = vmatprep.subr.mxu0 0.0
      %668 = vmatpush1.msra.mxu0 %v576
      %669 = vmatprep.subr.mxu0 0.0
      %670 = vmatpush1.msra.mxu0 %v577
      %671 = vmatprep.subr.mxu0 0.0
      %672 = vmatpush1.msra.mxu0 %v578
      %673 = vmatprep.subr.mxu0 0.0
      %674 = vmatpush1.msra.mxu0 %v579
      %675 = vmatprep.subr.mxu0 0.0
      %676 = vmatpush1.msra.mxu0 %v580
      %677 = vmatprep.subr.mxu0 0.0
      %678 = vmatpush1.msra.mxu0 0.0
      %679 = vmatprep.subr.mxu0 0.0
      %680 = vmatpush1.msra.mxu0 0.0
      %681 = vmatprep.subr.mxu0 0.0
      %682 = vmatpush1.msra.mxu0 0.0
      %683 = vmatprep.subr.mxu0 0.0
      %684 = vmatpush1.msra.mxu0 0.0
      %685 = vmatprep.subr.mxu0 0.0
      %686 = vmatpush1.msra.mxu0 0.0
      %687 = vmatprep.subr.mxu0 0.0
      %688 = vmatpush1.msra.mxu0 0.0
      %689 = vmatprep.subr.mxu0 0.0
      %690 = vmatpush1.msra.mxu0 0.0
      %691 = vmatprep.subr.mxu0 0.0
      %692 = vmatpush1.msra.mxu0 0.0
      %693 = vmatprep.subr.mxu0 0.0
      %694 = vmatpush1.msra.mxu0 0.0
      %695 = vmatprep.subr.mxu0 0.0
      %696 = vmatpush1.msra.mxu0 0.0
      %697 = vmatprep.subr.mxu0 0.0
      %698 = vmatpush1.msra.mxu0 0.0
      %699 = vmatprep.subr.mxu0 0.0
      %700 = vmatpush1.msra.mxu0 0.0
      %701 = vmatprep.subr.mxu0 0.0
      %702 = vmatpush1.msra.mxu0 0.0
      %703 = vmatprep.subr.mxu0 0.0
      %704 = vmatpush1.msra.mxu0 0.0
      %705 = vmatprep.subr.mxu0 0.0
      %706 = vmatpush1.msra.mxu0 0.0
      %707 = vmatprep.subr.mxu0 0.0
      %708 = vmatpush1.msra.mxu0 0.0
      %709 = vmatprep.subr.mxu0 0.0
      %710 = vmatpush1.msra.mxu0 0.0
      %711 = vmatprep.subr.mxu0 0.0
      %712 = vmatpush1.msra.mxu0 0.0
      %713 = vmatprep.subr.mxu0 0.0
      %714 = vmatpush1.msra.mxu0 0.0
      %715 = vmatprep.subr.mxu0 0.0
      %716 = vmatpush1.msra.mxu0 0.0
      %717 = vmatprep.subr.mxu0 0.0
      %718 = vmatpush1.msra.mxu0 0.0
      %719 = vmatprep.subr.mxu0 0.0
      %720 = vmatpush1.msra.mxu0 0.0
      %721 = vmatprep.subr.mxu0 0.0
      %722 = vmatpush1.msra.mxu0 0.0
      %723 = vmatprep.subr.mxu0 0.0
      %724 = vmatpush1.msra.mxu0 0.0
      %725 = vmatprep.mubr.f32.mxu0 0.0
      %726 = vmatmul.mubr.f32.gmra.mrb[0].mxu0 %v659
      %v727 = vpop.f32.mrb[0].mxu0
      %v728 = vadd.f32 %v655, %v727
      %v729 = vpop.f32.mrb[0].mxu0
      %730 = vdwg.mxu0
      %v731 = vld [vmem:[%s5] sm:$0x1]
      %v733 = vlaneseq
      %v734 = vshrl.u32 %v733, 7
      %v735 = vsub.s32 0, %v734
      %v736 = vrot.slane %v731, %v735
      %v738 = vadd.f32 %v728, %v736
      %v739 = vxor.u32 %v738, 2147483648
      %v740 = vmul.f32 %v739, 1.442695
      %v741 = vpow.pop %v740
      %v742 = vadd.f32 %v741, 1.0
      %v743 = vrcp.pop %v742
      %v744 = vmul.f32 1.0, %v743
      %v745 = vtanh.pop %v738
      %747 = vrot.lane.b32.xlu0 %v572, 32
      %v748 = vpop.permute.xlu0 %747
      %v750 = vmul.f32 %v744, %v748
      %752 = vrot.lane.b32.xlu0 %v745, 64
      %v753 = vpop.permute.xlu0 %752
      %v755 = vmul.f32 %v744, %v753
      %757 = vrot.lane.b32.xlu0 %v755, 32
      %v758 = vpop.permute.xlu0 %757
      %v760 = vadd.f32 %v750, %v758
      %v761 = vtanh.pop %v760
      %763 = vrot.lane.b32.xlu0 %v761, 64
      %v764 = vpop.permute.xlu0 %763
      %v766 = vmul.f32 %v744, %v764
      %768 = vrot.lane.b32.xlu0 %v569, 32
      %v769 = vpop.permute.xlu0 %768
      %vm771 = vcmask 254976
      %772 = vst.msk [vmem:[#allocation2] sm:$0x3] %vm771, %v769
      %774 = vrot.lane.b32.xlu0 %v563, 96
      %v775 = vpop.permute.xlu0 %774
      %777 = vst.msk [vmem:[#allocation3] sm:$0x3] %vm771, %v775
      %779 = vrot.lane.b32.xlu0 %v766, 32
      %v780 = vpop.permute.xlu0 %779
      %782 = vst.msk [vmem:[#allocation4] sm:$0x3] %vm771, %v780
      %784 = vrot.lane.b32.xlu0 %v760, 96
      %v785 = vpop.permute.xlu0 %784
      %787 = vst.msk [vmem:[#allocation5] sm:$0x3] %vm771, %v785
      %788 = vst.msk [vmem:[%s355] sm:$0x3] %vm771, %v769
      %789 = vst.msk [vmem:[%s360] sm:$0x3] %vm771, %v780
      %790 = vst.msk [vmem:[%s8] sm:$0x3] %vm771, %v775
      %791 = vst.msk [vmem:[%s9] sm:$0x3] %vm771, %v785
      %p792 = scmp.lt.s32.totalorder %s21, 7
      %s793 = scalar_select %p792, %s21, 7
      %s794 = smul.addr %s793, 2
      %s795 = scalar_lea.vmem %s6, %s794
      %s796 = ssub.s32 7, %s21
      %p797 = scmp.lt.s32.totalorder %s796, 7
      %s798 = scalar_select %p797, %s796, 7
      %s799 = smul.addr %s798, 2
      %s800 = scalar_lea.vmem %s7, %s799
      // Predicated region
      $region49: #{birnn_forward.4} parent=43 // pred_check
        %p801 = pneg %p177
      $region50: #{birnn_forward.4} parent=43 // pred_check_branch
        %803 = sbr.rel (%p801) target = $region52
      $region51: #{birnn_forward.4} parent=43 // pred_region
        _
      $region52: #{birnn_forward.4} parent=43 // pred_fallthru
        _
      // Predicated region
      $region53: #{birnn_forward.4} parent=43 // pred_check
        %p804 = pneg %p205
      $region54: #{birnn_forward.4} parent=43 // pred_check_branch
        %806 = sbr.rel (%p804) target = $region56
      $region55: #{birnn_forward.4} parent=43 // pred_region
        %s807 = ssub.s32 7, %s21
      $region56: #{birnn_forward.4} parent=43 // pred_fallthru
        _
      // Predicated region
      $region57: #{birnn_forward.4} parent=43 // pred_check
        %p808 = pneg %p226
      $region58: #{birnn_forward.4} parent=43 // pred_check_branch
        %810 = sbr.rel (%p808) target = $region60
      $region59: #{birnn_forward.4} parent=43 // pred_region
        _
      $region60: #{birnn_forward.4} parent=43 // pred_fallthru
        _
      // Predicated region
      $region61: #{birnn_forward.4} parent=43 // pred_check
        %p811 = pneg %p247
      $region62: #{birnn_forward.4} parent=43 // pred_check_branch
        %813 = sbr.rel (%p811) target = $region64
      $region63: #{birnn_forward.4} parent=43 // pred_region
        _
      $region64: #{birnn_forward.4} parent=43 // pred_fallthru
        _
      // Predicated region
      $region65: #{birnn_forward.4} parent=43 // pred_check
        %p814 = pneg %p226
      $region66: #{birnn_forward.4} parent=43 // pred_check_branch
        %816 = sbr.rel (%p814) target = $region68
      $region67: #{birnn_forward.4} parent=43 // pred_region
        _
      $region68: #{birnn_forward.4} parent=43 // pred_fallthru
        _
      // Predicated region
      $region69: #{birnn_forward.4} parent=43 // pred_check
        %p817 = pneg %p247
      $region70: #{birnn_forward.4} parent=43 // pred_check_branch
        %819 = sbr.rel (%p817) target = $region72
      $region71: #{birnn_forward.4} parent=43 // pred_region
        _
      $region72: #{birnn_forward.4} parent=43 // pred_fallthru
        _
    $region44: #{birnn_forward.4} parent=5 // pred_fallthru
      _
    %p820 = scmp.le.s32.totalorder 2, %s16
    // Predicated region
    $region73: #{birnn_forward.4} parent=5 // pred_check
      %p821 = pneg %p820
    $region74: #{birnn_forward.4} parent=5 // pred_check_branch
      %823 = sbr.rel (%p821) target = $region76
    $region75: #{birnn_forward.4} parent=5 // pred_region
      %s824 = ssub.s32 %s16, 2
      // Predicated region
      $region77: #{birnn_forward.4} parent=75 // pred_check
        %p825 = pneg %p183
      $region78: #{birnn_forward.4} parent=75 // pred_check_branch
        %827 = sbr.rel (%p825) target = $region80
      $region79: #{birnn_forward.4} parent=75 // pred_region
        %p828 = scmp.lt.s32.totalorder %s22, 7
        %s829 = scalar_select %p828, %s22, 7
        %s830 = smul.addr %s829, 2
        %s831 = scalar_lea.vmem %s6, %s830
      $region80: #{birnn_forward.4} parent=75 // pred_fallthru
        _
      // Predicated region
      $region81: #{birnn_forward.4} parent=75 // pred_check
        %p832 = pneg %p211
      $region82: #{birnn_forward.4} parent=75 // pred_check_branch
        %834 = sbr.rel (%p832) target = $region84
      $region83: #{birnn_forward.4} parent=75 // pred_region
        %s835 = ssub.s32 7, %s22
        %p836 = scmp.lt.s32.totalorder %s835, 7
        %s837 = scalar_select %p836, %s835, 7
        %s838 = smul.addr %s837, 2
        %s839 = scalar_lea.vmem %s7, %s838
      $region84: #{birnn_forward.4} parent=75 // pred_fallthru
        _
    $region76: #{birnn_forward.4} parent=5 // pred_fallthru
      _
  $region6: #{birnn_forward.4} parent=0 // loop_footer
    %s20 = sadd.s32 1, %s16
  $region7: #{birnn_forward.4} parent=0 // loop_footer_branch
    %15 = sbr.rel target = $region3
  $region8: #{birnn_forward.4} parent=0 // loop_exit
    _

// kernel: birnn_forward.5
$region0: #{birnn_forward.5}
  #allocation0 [shape = 'u32[]', space=smem, size = 0x4, offset = 0x4, fixed_abs, tag = 'smem constant byte address 0x4 - core index']
  #allocation1 [shape = 'u32[144,128]{1,0:T(1,128)}', space=vmem, size = 0x12000, scoped, tag = 'internal scratch']
  #allocation2 [shape = 'f32[2,16]{1,0:T(2,128)}', space=vmem, size = 0x400, scoped, tag = 'scratch operand']
  #allocation3 [shape = 'f32[2,2,64]{2,1,0:T(2,128)}', space=vmem, size = 0x800, scoped, tag = 'scratch operand']
  #allocation4 [shape = 'f32[2,2,64]{2,1,0:T(2,128)}', space=vmem, size = 0x800, scoped, tag = 'scratch operand']
  %s0 = inlined_call_operand.vmem [shape: f32[2,16], index: 0, kind: input, shape index: {}]
  %s1 = inlined_call_operand.vmem [shape: f32[2,2,64], index: 1, kind: input, shape index: {}]
  %s2 = inlined_call_operand.vmem [shape: f32[2,2,64], index: 2, kind: input, shape index: {}]
  %s3 = inlined_call_operand.vmem [shape: f32[80,256], index: 3, kind: input, shape index: {}]
  %s4 = inlined_call_operand.vmem [shape: f32[1,256], index: 4, kind: input, shape index: {}]
  %s5 = inlined_call_operand.vmem [shape: f32[128,256], index: 5, kind: input, shape index: {}]
  %s6 = inlined_call_operand.vmem [shape: f32[1,256], index: 6, kind: input, shape index: {}]
  %s7 = inlined_call_operand.vmem [shape: f32[64,128], index: 7, kind: input, shape index: {}]
  %s8 = inlined_call_operand.vmem [shape: f32[1,128], index: 8, kind: input, shape index: {}]
  %s9 = inlined_call_operand.vmem [shape: f32[128,16], index: 9, kind: input, shape index: {}]
  %s10 = inlined_call_operand.hbm [shape: f32[8,2,128], index: 10, kind: output, shape index: {}]
  %s11 = sld [smem:[#allocation0]]
  $region77: #{birnn_forward.5} parent=0
    _
  %s13 = ssub.s32 1, %s11
  %s14 = scalar_select 0, %s13, %s11
  $region1: #{birnn_forward.5} parent=0
    #allocation5 [shape = 'u8[2048]{0}', space=vmem, size = 0x800, scoped, tag = 'output window, operand 0']
    #allocation6 [shape = 's32[2]{0}', space=sflag, size = 0x8, scoped, tag = 'scoped memory for birnn_forward.5']
    %15 = vsyncpa [#allocation6], 0
    %s16 = scalar_lea.sflag [#allocation6], 1
    %17 = vsyncpa %s16, 0
    loop: start=0, step=1, limit=10
    $region2: #{birnn_forward.5} parent=1 // loop_pre_header
      _
    $region3: #{birnn_forward.5} parent=1 // loop_header
      %s19 = sphi 0, %s23
      %p20 = scmp.ge.s32.totalorder %s19, 10
      %s27 = sphi 0, %s27
      %s29 = sphi 0, %s27
      %s30 = sphi 0, %s29
      %s44 = sphi 0, %s30
      %s48 = sphi 0, %s48
      %s50 = sphi 0, %s48
      %s51 = sphi 0, %s50
      %s65 = sphi 0, %s51
      %s69 = sphi 0, %s69
      %s71 = sphi 0, %s69
      %s72 = sphi 0, %s71
      %s86 = sphi 0, %s72
      %s90 = sphi 0, %s90
      %s92 = sphi 0, %s90
      %s93 = sphi 0, %s92
      %s107 = sphi 0, %s93
      %s111 = sphi 0, %s111
      %s113 = sphi 0, %s111
      %s114 = sphi 0, %s113
      %s128 = sphi 0, %s114
      %s132 = sphi 0, %s132
      %s134 = sphi 0, %s132
      %s135 = sphi 0, %s134
      %s149 = sphi 0, %s135
      %s153 = sphi 0, %s153
      %s155 = sphi 0, %s153
      %s156 = sphi 0, %s155
      %s170 = sphi 0, %s156
      %s174 = sphi 0, %s174
      %s176 = sphi 0, %s174
      %s177 = sphi 0, %s176
      %s191 = sphi 0, %s177
      %s195 = sphi 0, %s195
      %s197 = sphi 0, %s195
      %s198 = sphi 0, %s197
      %s212 = sphi 0, %s198
      %s216 = sphi 0, %s216
      %s218 = sphi 0, %s216
      %s219 = sphi 0, %s218
      %s233 = sphi 0, %s219
      %s239 = sphi 0, %s241
      %s242 = sphi 0, %s239
      %s243 = sphi 0, %s242
      %s259 = sphi 0, %s243
    $region4: #{birnn_forward.5} parent=1 // loop_header_branch
      %22 = sbr.rel (%p20) target = $region8
    $region5: #{birnn_forward.5} parent=1 // loop_body
      %s24 = ssub.s32 %s19, 1
      %s25 = ssub.s32 %s19, 2
      %s26 = sadd.s32 %s19, 1
      %s28 = sadd.s32 %s27, 1
      %p31 = scmp.eq.s32.totalorder %s19, 7
      %p32 = scmp.ne.s32.totalorder %s27, %s29
      %p33 = scmp.eq.s32.totalorder %s19, 0
      %p34 = por %p32, %p33
      %p35 = scmp.ne.s32.totalorder %s27, %s29
      %p36 = scmp.eq.s32.totalorder %s24, 7
      %p37 = por %p35, %p36
      %p38 = scmp.ne.s32.totalorder %s29, %s30
      %p39 = scmp.eq.s32.totalorder %s24, 0
      %p40 = por %p38, %p39
      %p41 = scmp.ne.s32.totalorder %s29, %s30
      %p42 = scmp.eq.s32.totalorder %s25, 7
      %p43 = por %p41, %p42
      %p45 = scmp.ne.s32.totalorder %s30, %s44
      %p46 = scmp.eq.s32.totalorder %s25, 0
      %p47 = por %p45, %p46
      %s49 = sadd.s32 %s48, 1
      %p52 = scmp.eq.s32.totalorder %s19, 7
      %p53 = scmp.ne.s32.totalorder %s48, %s50
      %p54 = scmp.eq.s32.totalorder %s19, 0
      %p55 = por %p53, %p54
      %p56 = scmp.ne.s32.totalorder %s48, %s50
      %p57 = scmp.eq.s32.totalorder %s24, 7
      %p58 = por %p56, %p57
      %p59 = scmp.ne.s32.totalorder %s50, %s51
      %p60 = scmp.eq.s32.totalorder %s24, 0
      %p61 = por %p59, %p60
      %p62 = scmp.ne.s32.totalorder %s50, %s51
      %p63 = scmp.eq.s32.totalorder %s25, 7
      %p64 = por %p62, %p63
      %p66 = scmp.ne.s32.totalorder %s51, %s65
      %p67 = scmp.eq.s32.totalorder %s25, 0
      %p68 = por %p66, %p67
      %s70 = sadd.s32 %s69, 1
      %p73 = scmp.eq.s32.totalorder %s19, 7
      %p74 = scmp.ne.s32.totalorder %s69, %s71
      %p75 = scmp.eq.s32.totalorder %s19, 0
      %p76 = por %p74, %p75
      %p77 = scmp.ne.s32.totalorder %s69, %s71
      %p78 = scmp.eq.s32.totalorder %s24, 7
      %p79 = por %p77, %p78
      %p80 = scmp.ne.s32.totalorder %s71, %s72
      %p81 = scmp.eq.s32.totalorder %s24, 0
      %p82 = por %p80, %p81
      %p83 = scmp.ne.s32.totalorder %s71, %s72
      %p84 = scmp.eq.s32.totalorder %s25, 7
      %p85 = por %p83, %p84
      %p87 = scmp.ne.s32.totalorder %s72, %s86
      %p88 = scmp.eq.s32.totalorder %s25, 0
      %p89 = por %p87, %p88
      %s91 = sadd.s32 %s90, 1
      %p94 = scmp.eq.s32.totalorder %s19, 7
      %p95 = scmp.ne.s32.totalorder %s90, %s92
      %p96 = scmp.eq.s32.totalorder %s19, 0
      %p97 = por %p95, %p96
      %p98 = scmp.ne.s32.totalorder %s90, %s92
      %p99 = scmp.eq.s32.totalorder %s24, 7
      %p100 = por %p98, %p99
      %p101 = scmp.ne.s32.totalorder %s92, %s93
      %p102 = scmp.eq.s32.totalorder %s24, 0
      %p103 = por %p101, %p102
      %p104 = scmp.ne.s32.totalorder %s92, %s93
      %p105 = scmp.eq.s32.totalorder %s25, 7
      %p106 = por %p104, %p105
      %p108 = scmp.ne.s32.totalorder %s93, %s107
      %p109 = scmp.eq.s32.totalorder %s25, 0
      %p110 = por %p108, %p109
      %s112 = sadd.s32 %s111, 1
      %p115 = scmp.eq.s32.totalorder %s19, 7
      %p116 = scmp.ne.s32.totalorder %s111, %s113
      %p117 = scmp.eq.s32.totalorder %s19, 0
      %p118 = por %p116, %p117
      %p119 = scmp.ne.s32.totalorder %s111, %s113
      %p120 = scmp.eq.s32.totalorder %s24, 7
      %p121 = por %p119, %p120
      %p122 = scmp.ne.s32.totalorder %s113, %s114
      %p123 = scmp.eq.s32.totalorder %s24, 0
      %p124 = por %p122, %p123
      %p125 = scmp.ne.s32.totalorder %s113, %s114
      %p126 = scmp.eq.s32.totalorder %s25, 7
      %p127 = por %p125, %p126
      %p129 = scmp.ne.s32.totalorder %s114, %s128
      %p130 = scmp.eq.s32.totalorder %s25, 0
      %p131 = por %p129, %p130
      %s133 = sadd.s32 %s132, 1
      %p136 = scmp.eq.s32.totalorder %s19, 7
      %p137 = scmp.ne.s32.totalorder %s132, %s134
      %p138 = scmp.eq.s32.totalorder %s19, 0
      %p139 = por %p137, %p138
      %p140 = scmp.ne.s32.totalorder %s132, %s134
      %p141 = scmp.eq.s32.totalorder %s24, 7
      %p142 = por %p140, %p141
      %p143 = scmp.ne.s32.totalorder %s134, %s135
      %p144 = scmp.eq.s32.totalorder %s24, 0
      %p145 = por %p143, %p144
      %p146 = scmp.ne.s32.totalorder %s134, %s135
      %p147 = scmp.eq.s32.totalorder %s25, 7
      %p148 = por %p146, %p147
      %p150 = scmp.ne.s32.totalorder %s135, %s149
      %p151 = scmp.eq.s32.totalorder %s25, 0
      %p152 = por %p150, %p151
      %s154 = sadd.s32 %s153, 1
      %p157 = scmp.eq.s32.totalorder %s19, 7
      %p158 = scmp.ne.s32.totalorder %s153, %s155
      %p159 = scmp.eq.s32.totalorder %s19, 0
      %p160 = por %p158, %p159
      %p161 = scmp.ne.s32.totalorder %s153, %s155
      %p162 = scmp.eq.s32.totalorder %s24, 7
      %p163 = por %p161, %p162
      %p164 = scmp.ne.s32.totalorder %s155, %s156
      %p165 = scmp.eq.s32.totalorder %s24, 0
      %p166 = por %p164, %p165
      %p167 = scmp.ne.s32.totalorder %s155, %s156
      %p168 = scmp.eq.s32.totalorder %s25, 7
      %p169 = por %p167, %p168
      %p171 = scmp.ne.s32.totalorder %s156, %s170
      %p172 = scmp.eq.s32.totalorder %s25, 0
      %p173 = por %p171, %p172
      %s175 = sadd.s32 %s174, 1
      %p178 = scmp.eq.s32.totalorder %s19, 7
      %p179 = scmp.ne.s32.totalorder %s174, %s176
      %p180 = scmp.eq.s32.totalorder %s19, 0
      %p181 = por %p179, %p180
      %p182 = scmp.ne.s32.totalorder %s174, %s176
      %p183 = scmp.eq.s32.totalorder %s24, 7
      %p184 = por %p182, %p183
      %p185 = scmp.ne.s32.totalorder %s176, %s177
      %p186 = scmp.eq.s32.totalorder %s24, 0
      %p187 = por %p185, %p186
      %p188 = scmp.ne.s32.totalorder %s176, %s177
      %p189 = scmp.eq.s32.totalorder %s25, 7
      %p190 = por %p188, %p189
      %p192 = scmp.ne.s32.totalorder %s177, %s191
      %p193 = scmp.eq.s32.totalorder %s25, 0
      %p194 = por %p192, %p193
      %s196 = sadd.s32 %s195, 1
      %p199 = scmp.eq.s32.totalorder %s19, 7
      %p200 = scmp.ne.s32.totalorder %s195, %s197
      %p201 = scmp.eq.s32.totalorder %s19, 0
      %p202 = por %p200, %p201
      %p203 = scmp.ne.s32.totalorder %s195, %s197
      %p204 = scmp.eq.s32.totalorder %s24, 7
      %p205 = por %p203, %p204
      %p206 = scmp.ne.s32.totalorder %s197, %s198
      %p207 = scmp.eq.s32.totalorder %s24, 0
      %p208 = por %p206, %p207
      %p209 = scmp.ne.s32.totalorder %s197, %s198
      %p210 = scmp.eq.s32.totalorder %s25, 7
      %p211 = por %p209, %p210
      %p213 = scmp.ne.s32.totalorder %s198, %s212
      %p214 = scmp.eq.s32.totalorder %s25, 0
      %p215 = por %p213, %p214
      %s217 = sadd.s32 %s216, 1
      %p220 = scmp.eq.s32.totalorder %s19, 7
      %p221 = scmp.ne.s32.totalorder %s216, %s218
      %p222 = scmp.eq.s32.totalorder %s19, 0
      %p223 = por %p221, %p222
      %p224 = scmp.ne.s32.totalorder %s216, %s218
      %p225 = scmp.eq.s32.totalorder %s24, 7
      %p226 = por %p224, %p225
      %p227 = scmp.ne.s32.totalorder %s218, %s219
      %p228 = scmp.eq.s32.totalorder %s24, 0
      %p229 = por %p227, %p228
      %p230 = scmp.ne.s32.totalorder %s218, %s219
      %p231 = scmp.eq.s32.totalorder %s25, 7
      %p232 = por %p230, %p231
      %p234 = scmp.ne.s32.totalorder %s219, %s233
      %p235 = scmp.eq.s32.totalorder %s25, 0
      %p236 = por %p234, %p235
      %s237 = ssub.s32 %s19, %s26
      %p238 = scmp.eq.s32.totalorder %s237, 0
      %s240 = sadd.s32 %s239, 1
      %s241 = scalar_select %p238, %s239, %s240
      %p244 = pneg %p238
      %p245 = scmp.eq.s32.totalorder %s19, 7
      %p246 = por %p244, %p245
      %p247 = scmp.ne.s32.totalorder %s239, %s242
      %p248 = scmp.eq.s32.totalorder %s19, 0
      %p249 = por %p247, %p248
      %p250 = scmp.ne.s32.totalorder %s239, %s242
      %p251 = scmp.eq.s32.totalorder %s24, 7
      %p252 = por %p250, %p251
      %p253 = scmp.ne.s32.totalorder %s242, %s243
      %p254 = scmp.eq.s32.totalorder %s24, 0
      %p255 = por %p253, %p254
      %p256 = scmp.ne.s32.totalorder %s242, %s243
      %p257 = scmp.eq.s32.totalorder %s25, 7
      %p258 = por %p256, %p257
      %p260 = scmp.ne.s32.totalorder %s243, %s259
      %p261 = scmp.eq.s32.totalorder %s25, 0
      %p262 = por %p260, %p261
      %p263 = scmp.le.s32.totalorder 1, %s19
      %p264 = scmp.lt.s32.totalorder %s19, 9
      %p265 = pnand %p263, %p264
      %p266 = pneg %p265
      // Predicated region
      $region9: #{birnn_forward.5} parent=5 // pred_check
        _
      $region10: #{birnn_forward.5} parent=5 // pred_check_branch
        %268 = sbr.rel (%p265) target = $region12
      $region11: #{birnn_forward.5} parent=5 // pred_region
        %s269 = ssub.s32 %s19, 1
        // Predicated region
        $region13: #{birnn_forward.5} parent=11 // pred_check
          %p270 = pneg %p40
        $region14: #{birnn_forward.5} parent=11 // pred_check_branch
          %272 = sbr.rel (%p270) target = $region16
        $region15: #{birnn_forward.5} parent=11 // pred_region
          _
        $region16: #{birnn_forward.5} parent=11 // pred_fallthru
          _
        // Predicated region
        $region17: #{birnn_forward.5} parent=11 // pred_check
          %p273 = pneg %p61
        $region18: #{birnn_forward.5} parent=11 // pred_check_branch
          %275 = sbr.rel (%p273) target = $region20
        $region19: #{birnn_forward.5} parent=11 // pred_region
          _
        $region20: #{birnn_forward.5} parent=11 // pred_fallthru
          _
        // Predicated region
        $region21: #{birnn_forward.5} parent=11 // pred_check
          %p276 = pneg %p82
        $region22: #{birnn_forward.5} parent=11 // pred_check_branch
          %278 = sbr.rel (%p276) target = $region24
        $region23: #{birnn_forward.5} parent=11 // pred_region
          _
        $region24: #{birnn_forward.5} parent=11 // pred_fallthru
          _
        // Predicated region
        $region25: #{birnn_forward.5} parent=11 // pred_check
          %p279 = pneg %p103
        $region26: #{birnn_forward.5} parent=11 // pred_check_branch
          %281 = sbr.rel (%p279) target = $region28
        $region27: #{birnn_forward.5} parent=11 // pred_region
          _
        $region28: #{birnn_forward.5} parent=11 // pred_fallthru
          _
        // Predicated region
        $region29: #{birnn_forward.5} parent=11 // pred_check
          %p282 = pneg %p124
        $region30: #{birnn_forward.5} parent=11 // pred_check_branch
          %284 = sbr.rel (%p282) target = $region32
        $region31: #{birnn_forward.5} parent=11 // pred_region
          _
        $region32: #{birnn_forward.5} parent=11 // pred_fallthru
          _
        // Predicated region
        $region33: #{birnn_forward.5} parent=11 // pred_check
          %p285 = pneg %p145
        $region34: #{birnn_forward.5} parent=11 // pred_check_branch
          %287 = sbr.rel (%p285) target = $region36
        $region35: #{birnn_forward.5} parent=11 // pred_region
          _
        $region36: #{birnn_forward.5} parent=11 // pred_fallthru
          _
        // Predicated region
        $region37: #{birnn_forward.5} parent=11 // pred_check
          %p288 = pneg %p166
        $region38: #{birnn_forward.5} parent=11 // pred_check_branch
          %290 = sbr.rel (%p288) target = $region40
        $region39: #{birnn_forward.5} parent=11 // pred_region
          _
        $region40: #{birnn_forward.5} parent=11 // pred_fallthru
          _
        // Predicated region
        $region41: #{birnn_forward.5} parent=11 // pred_check
          %p291 = pneg %p187
        $region42: #{birnn_forward.5} parent=11 // pred_check_branch
          %293 = sbr.rel (%p291) target = $region44
        $region43: #{birnn_forward.5} parent=11 // pred_region
          _
        $region44: #{birnn_forward.5} parent=11 // pred_fallthru
          _
        // Predicated region
        $region45: #{birnn_forward.5} parent=11 // pred_check
          %p294 = pneg %p208
        $region46: #{birnn_forward.5} parent=11 // pred_check_branch
          %296 = sbr.rel (%p294) target = $region48
        $region47: #{birnn_forward.5} parent=11 // pred_region
          _
        $region48: #{birnn_forward.5} parent=11 // pred_fallthru
          _
        // Predicated region
        $region49: #{birnn_forward.5} parent=11 // pred_check
          %p297 = pneg %p229
        $region50: #{birnn_forward.5} parent=11 // pred_check_branch
          %299 = sbr.rel (%p297) target = $region52
        $region51: #{birnn_forward.5} parent=11 // pred_region
          _
        $region52: #{birnn_forward.5} parent=11 // pred_fallthru
          _
      $region12: #{birnn_forward.5} parent=5 // pred_fallthru
        _
      %p300 = scmp.lt.s32.totalorder %s19, 8
      // Predicated region
      $region53: #{birnn_forward.5} parent=5 // pred_check
        %p301 = pneg %p300
      $region54: #{birnn_forward.5} parent=5 // pred_check_branch
        %303 = sbr.rel (%p301) target = $region56
      $region55: #{birnn_forward.5} parent=5 // pred_region
        _
      $region56: #{birnn_forward.5} parent=5 // pred_fallthru
        _
      %p304 = scmp.le.s32.totalorder 1, %s19
      %p305 = scmp.lt.s32.totalorder %s19, 9
      %p306 = pnand %p304, %p305
      %p307 = pneg %p306
      // Predicated region
      $region57: #{birnn_forward.5} parent=5 // pred_check
        _
      $region58: #{birnn_forward.5} parent=5 // pred_check_branch
        %309 = sbr.rel (%p306) target = $region60
      $region59: #{birnn_forward.5} parent=5 // pred_region
        %s310 = ssub.s32 %s19, 1
        %p311 = pneg %p40
        %p312 = pneg %p37
        %p313 = pneg %p61
        %p314 = pneg %p58
        %p315 = pneg %p82
        %p316 = pneg %p79
        %p317 = pneg %p103
        %p318 = pneg %p100
        %p319 = pneg %p124
        %p320 = pneg %p121
        %p321 = pneg %p145
        %p322 = pneg %p142
        %p323 = pneg %p166
        %p324 = pneg %p163
        %p325 = pneg %p187
        %p326 = pneg %p184
        %p327 = pneg %p208
        %p328 = pneg %p205
        %p329 = pneg %p229
        %p330 = pneg %p226
        %p331 = pneg %p255
        %p332 = pneg %p252
        %s333 = sand.u32 %s242, 1
        %s334 = scalar_lea.sflag [#allocation6], %s333
        %s335 = sand.u32 %s242, 1
        %s336 = smul.addr %s335, 2
        %s337 = scalar_lea.vmem [#allocation5], %s336
        %p338 = scmp.eq.s32.totalorder %s24, 0
        // Predicated region
        $region61: #{birnn_forward.5} parent=59 // pred_check
          %p339 = pneg %p338
        $region62: #{birnn_forward.5} parent=59 // pred_check_branch
          %341 = sbr.rel (%p339) target = $region64
        $region63: #{birnn_forward.5} parent=59 // pred_region
          %v342 = vld [vmem:[%s0] sm:$0x3]
          %vm343 = vcmask 123904
          %344 = vst.msk [vmem:[#allocation2] sm:$0x3] %vm343, %v342
          %v345 = vld [vmem:[%s1] sm:$0x3]
          %v346 = vld [vmem:[%s1 + $0x2] sm:$0x3]
          %vm347 = vcmask 517120
          %348 = vst.msk [vmem:[#allocation3] sm:$0x3] %vm347, %v345
          %349 = vst.msk [vmem:[#allocation3 + $0x2] sm:$0x3] %vm347, %v346
          %v350 = vld [vmem:[%s2] sm:$0x3]
          %v351 = vld [vmem:[%s2 + $0x2] sm:$0x3]
          %352 = vst.msk [vmem:[#allocation4] sm:$0x3] %vm347, %v350
          %353 = vst.msk [vmem:[#allocation4 + $0x2] sm:$0x3] %vm347, %v351
        $region64: #{birnn_forward.5} parent=59 // pred_fallthru
          _
        %v354 = vld [vmem:[#allocation2] sm:$0x3]
        %v355 = vld [vmem:[#allocation3] sm:$0x3]
        %v356 = vld [vmem:[#allocation4] sm:$0x3]
        %v357 = vld [vmem:[%s3] sm:$0xff]
        %v358 = vld [vmem:[%s3 + $0x8] sm:$0xff]
        %v359 = vld [vmem:[%s3 + $0x10] sm:$0xff]
        %v360 = vld [vmem:[%s3 + $0x18] sm:$0xff]
        %v361 = vld [vmem:[%s3 + $0x20] sm:$0xff]
        %v362 = vld [vmem:[%s3 + $0x28] sm:$0xff]
        %v363 = vld [vmem:[%s3 + $0x30] sm:$0xff]
        %v364 = vld [vmem:[%s3 + $0x38] sm:$0xff]
        %v365 = vld [vmem:[%s3 + $0x40] sm:$0xff]
        %v366 = vld [vmem:[%s3 + $0x48] sm:$0xff]
        %v367 = vld [vmem:[%s3 + $0x50] sm:$0xff]
        %v368 = vld [vmem:[%s3 + $0x58] sm:$0xff]
        %v369 = vld [vmem:[%s3 + $0x60] sm:$0xff]
        %v370 = vld [vmem:[%s3 + $0x68] sm:$0xff]
        %v371 = vld [vmem:[%s3 + $0x70] sm:$0xff]
        %v372 = vld [vmem:[%s3 + $0x78] sm:$0xff]
        %v373 = vld [vmem:[%s3 + $0x80] sm:$0xff]
        %v374 = vld [vmem:[%s3 + $0x88] sm:$0xff]
        %v375 = vld [vmem:[%s3 + $0x90] sm:$0xff]
        %v376 = vld [vmem:[%s3 + $0x98] sm:$0xff]
        %vm377 = vcmask 523264
        %v379 = vsel %vm377, %v355, 0
        %381 = vmatprep.subr.mxu0 %v362
        %382 = vmatpush1.msra.mxu0 %v361
        %383 = vmatprep.subr.mxu0 %v364
        %384 = vmatpush1.msra.mxu0 %v363
        %385 = vmatprep.subr.mxu0 %v366
        %386 = vmatpush1.msra.mxu0 %v365
        %387 = vmatprep.subr.mxu0 %v368
        %388 = vmatpush1.msra.mxu0 %v367
        %389 = vmatprep.subr.mxu0 %v370
        %390 = vmatpush1.msra.mxu0 %v369
        %391 = vmatprep.subr.mxu0 %v372
        %392 = vmatpush1.msra.mxu0 %v371
        %393 = vmatprep.subr.mxu0 %v374
        %394 = vmatpush1.msra.mxu0 %v373
        %395 = vmatprep.subr.mxu0 %v376
        %396 = vmatpush1.msra.mxu0 %v375
        %397 = vmatprep.subr.mxu0 0.0
        %398 = vmatpush1.msra.mxu0 0.0
        %399 = vmatprep.subr.mxu0 0.0
        %400 = vmatpush1.msra.mxu0 0.0
        %401 = vmatprep.subr.mxu0 0.0
        %402 = vmatpush1.msra.mxu0 0.0
        %403 = vmatprep.subr.mxu0 0.0
        %404 = vmatpush1.msra.mxu0 0.0
        %405 = vmatprep.subr.mxu0 0.0
        %406 = vmatpush1.msra.mxu0 0.0
        %407 = vmatprep.subr.mxu0 0.0
        %408 = vmatpush1.msra.mxu0 0.0
        %409 = vmatprep.subr.mxu0 0.0
        %410 = vmatpush1.msra.mxu0 0.0
        %411 = vmatprep.subr.mxu0 0.0
        %412 = vmatpush1.msra.mxu0 0.0
        %413 = vmatprep.subr.mxu0 0.0
        %414 = vmatpush1.msra.mxu0 0.0
        %415 = vmatprep.subr.mxu0 0.0
        %416 = vmatpush1.msra.mxu0 0.0
        %417 = vmatprep.subr.mxu0 0.0
        %418 = vmatpush1.msra.mxu0 0.0
        %419 = vmatprep.subr.mxu0 0.0
        %420 = vmatpush1.msra.mxu0 0.0
        %421 = vmatprep.subr.mxu0 0.0
        %422 = vmatpush1.msra.mxu0 0.0
        %423 = vmatprep.subr.mxu0 0.0
        %424 = vmatpush1.msra.mxu0 0.0
        %425 = vmatprep.subr.mxu0 0.0
        %426 = vmatpush1.msra.mxu0 0.0
        %427 = vmatprep.subr.mxu0 0.0
        %428 = vmatpush1.msra.mxu0 0.0
        %429 = vmatprep.subr.mxu0 0.0
        %430 = vmatpush1.msra.mxu0 0.0
        %431 = vmatprep.subr.mxu0 0.0
        %432 = vmatpush1.msra.mxu0 0.0
        %433 = vmatprep.subr.mxu0 0.0
        %434 = vmatpush1.msra.mxu0 0.0
        %435 = vmatprep.subr.mxu0 0.0
        %436 = vmatpush1.msra.mxu0 0.0
        %437 = vmatprep.subr.mxu0 0.0
        %438 = vmatpush1.msra.mxu0 0.0
        %439 = vmatprep.subr.mxu0 0.0
        %440 = vmatpush1.msra.mxu0 0.0
        %441 = vmatprep.subr.mxu0 0.0
        %442 = vmatpush1.msra.mxu0 0.0
        %443 = vmatprep.subr.mxu0 0.0
        %444 = vmatpush1.msra.mxu0 0.0
        %445 = vmatprep.mubr.f32.mxu0 0.0
        %446 = vmatmul.mubr.f32.gmra.mrb[0].mxu0 %v379
        %v447 = vpop.f32.mrb[0].mxu0
        %v448 = vadd.f32 0.0, %v447
        %v449 = vpop.f32.mrb[0].mxu0
        %v450 = vadd.f32 0.0, %v449
        %451 = vdwg.mxu0
        %vm452 = vcmask 130048
        %v454 = vsel %vm452, %v354, 0
        %456 = vmatprep.subr.mxu0 %v358
        %457 = vmatpush1.msra.mxu0 %v357
        %458 = vmatprep.subr.mxu0 %v360
        %459 = vmatpush1.msra.mxu0 %v359
        %460 = vmatprep.subr.mxu0 0.0
        %461 = vmatpush1.msra.mxu0 0.0
        %462 = vmatprep.subr.mxu0 0.0
        %463 = vmatpush1.msra.mxu0 0.0
        %464 = vmatprep.subr.mxu0 0.0
        %465 = vmatpush1.msra.mxu0 0.0
        %466 = vmatprep.subr.mxu0 0.0
        %467 = vmatpush1.msra.mxu0 0.0
        %468 = vmatprep.subr.mxu0 0.0
        %469 = vmatpush1.msra.mxu0 0.0
        %470 = vmatprep.subr.mxu0 0.0
        %471 = vmatpush1.msra.mxu0 0.0
        %472 = vmatprep.subr.mxu0 0.0
        %473 = vmatpush1.msra.mxu0 0.0
        %474 = vmatprep.subr.mxu0 0.0
        %475 = vmatpush1.msra.mxu0 0.0
        %476 = vmatprep.subr.mxu0 0.0
        %477 = vmatpush1.msra.mxu0 0.0
        %478 = vmatprep.subr.mxu0 0.0
        %479 = vmatpush1.msra.mxu0 0.0
        %480 = vmatprep.subr.mxu0 0.0
        %481 = vmatpush1.msra.mxu0 0.0
        %482 = vmatprep.subr.mxu0 0.0
        %483 = vmatpush1.msra.mxu0 0.0
        %484 = vmatprep.subr.mxu0 0.0
        %485 = vmatpush1.msra.mxu0 0.0
        %486 = vmatprep.subr.mxu0 0.0
        %487 = vmatpush1.msra.mxu0 0.0
        %488 = vmatprep.subr.mxu0 0.0
        %489 = vmatpush1.msra.mxu0 0.0
        %490 = vmatprep.subr.mxu0 0.0
        %491 = vmatpush1.msra.mxu0 0.0
        %492 = vmatprep.subr.mxu0 0.0
        %493 = vmatpush1.msra.mxu0 0.0
        %494 = vmatprep.subr.mxu0 0.0
        %495 = vmatpush1.msra.mxu0 0.0
        %496 = vmatprep.subr.mxu0 0.0
        %497 = vmatpush1.msra.mxu0 0.0
        %498 = vmatprep.subr.mxu0 0.0
        %499 = vmatpush1.msra.mxu0 0.0
        %500 = vmatprep.subr.mxu0 0.0
        %501 = vmatpush1.msra.mxu0 0.0
        %502 = vmatprep.subr.mxu0 0.0
        %503 = vmatpush1.msra.mxu0 0.0
        %504 = vmatprep.subr.mxu0 0.0
        %505 = vmatpush1.msra.mxu0 0.0
        %506 = vmatprep.subr.mxu0 0.0
        %507 = vmatpush1.msra.mxu0 0.0
        %508 = vmatprep.subr.mxu0 0.0
        %509 = vmatpush1.msra.mxu0 0.0
        %510 = vmatprep.subr.mxu0 0.0
        %511 = vmatpush1.msra.mxu0 0.0
        %512 = vmatprep.subr.mxu0 0.0
        %513 = vmatpush1.msra.mxu0 0.0
        %514 = vmatprep.subr.mxu0 0.0
        %515 = vmatpush1.msra.mxu0 0.0
        %516 = vmatprep.subr.mxu0 0.0
        %517 = vmatpush1.msra.mxu0 0.0
        %518 = vmatprep.subr.mxu0 0.0
        %519 = vmatpush1.msra.mxu0 0.0
        %520 = vmatprep.mubr.f32.mxu0 0.0
        %521 = vmatmul.mubr.f32.gmra.mrb[0].mxu0 %v454
        %v522 = vpop.f32.mrb[0].mxu0
        %v523 = vadd.f32 %v448, %v522
        %v524 = vpop.f32.mrb[0].mxu0
        %v525 = vadd.f32 %v450, %v524
        %526 = vdwg.mxu0
        %v527 = vld [vmem:[%s4] sm:$0x3]
        %v529 = vlaneseq
        %v530 = vshrl.u32 %v529, 7
        %v531 = vsub.s32 0, %v530
        %v532 = vrot.slane %v527, %v531
        %v533 = vlaneseq
        %v534 = vshrl.u32 %v533, 7
        %v535 = vsub.s32 1, %v534
        %v536 = vrot.slane %v527, %v535
        %v539 = vadd.f32 %v523, %v532
        %v540 = vadd.f32 %v525, %v536
        %v541 = vxor.u32 %v539, 2147483648
        %v542 = vmul.f32 %v541, 1.442695
        %v543 = vpow.pop %v542
        %v544 = vadd.f32 %v543, 1.0
        %v545 = vrcp.pop %v544
        %v546 = vmul.f32 1.0, %v545
        %v547 = vtanh.pop %v540
        %v548 = vxor.u32 %v540, 2147483648
        %v549 = vmul.f32 %v548, 1.442695
        %v550 = vpow.pop %v549
        %v551 = vadd.f32 %v550, 1.0
        %v552 = vrcp.pop %v551
        %v553 = vmul.f32 1.0, %v552
        %555 = vrot.lane.b32.xlu0 %v356, 64
        %v556 = vpop.permute.xlu0 %555
        %v558 = vmul.f32 %v546, %v556
        %v559 = vmul.f32 %v546, %v547
        %561 = vrot.lane.b32.xlu0 %v559, 64
        %v562 = vpop.permute.xlu0 %561
        %v564 = vadd.f32 %v558, %v562
        %v565 = vtanh.pop %v564
        %v566 = vmul.f32 %v553, %v565
        %568 = vrot.lane.b32.xlu0 %v566, 64
        %v569 = vpop.permute.xlu0 %568
        %vm571 = vcmask 517120
        %572 = vst.msk [vmem:[#allocation3] sm:$0x3] %vm571, %v569
        %574 = vrot.lane.b32.xlu0 %v564, 64
        %v575 = vpop.permute.xlu0 %574
        %577 = vst.msk [vmem:[#allocation4] sm:$0x3] %vm571, %v575
        %s578 = scalar_lea.vmem [#allocation3], 2
        %v579 = vld [vmem:[%s578] sm:$0x3]
        %s580 = scalar_lea.vmem [#allocation4], 2
        %v581 = vld [vmem:[%s580] sm:$0x3]
        %v582 = vld [vmem:[%s5] sm:$0xff]
        %v583 = vld [vmem:[%s5 + $0x8] sm:$0xff]
        %v584 = vld [vmem:[%s5 + $0x10] sm:$0xff]
        %v585 = vld [vmem:[%s5 + $0x18] sm:$0xff]
        %v586 = vld [vmem:[%s5 + $0x20] sm:$0xff]
        %v587 = vld [vmem:[%s5 + $0x28] sm:$0xff]
        %v588 = vld [vmem:[%s5 + $0x30] sm:$0xff]
        %v589 = vld [vmem:[%s5 + $0x38] sm:$0xff]
        %v590 = vld [vmem:[%s5 + $0x40] sm:$0xff]
        %v591 = vld [vmem:[%s5 + $0x48] sm:$0xff]
        %v592 = vld [vmem:[%s5 + $0x50] sm:$0xff]
        %v593 = vld [vmem:[%s5 + $0x58] sm:$0xff]
        %v594 = vld [vmem:[%s5 + $0x60] sm:$0xff]
        %v595 = vld [vmem:[%s5 + $0x68] sm:$0xff]
        %v596 = vld [vmem:[%s5 + $0x70] sm:$0xff]
        %v597 = vld [vmem:[%s5 + $0x78] sm:$0xff]
        %v598 = vld [vmem:[%s5 + $0x80] sm:$0xff]
        %v599 = vld [vmem:[%s5 + $0x88] sm:$0xff]
        %v600 = vld [vmem:[%s5 + $0x90] sm:$0xff]
        %v601 = vld [vmem:[%s5 + $0x98] sm:$0xff]
        %v602 = vld [vmem:[%s5 + $0xa0] sm:$0xff]
        %v603 = vld [vmem:[%s5 + $0xa8] sm:$0xff]
        %v604 = vld [vmem:[%s5 + $0xb0] sm:$0xff]
        %v605 = vld [vmem:[%s5 + $0xb8] sm:$0xff]
        %v606 = vld [vmem:[%s5 + $0xc0] sm:$0xff]
        %v607 = vld [vmem:[%s5 + $0xc8] sm:$0xff]
        %v608 = vld [vmem:[%s5 + $0xd0] sm:$0xff]
        %v609 = vld [vmem:[%s5 + $0xd8] sm:$0xff]
        %v610 = vld [vmem:[%s5 + $0xe0] sm:$0xff]
        %v611 = vld [vmem:[%s5 + $0xe8] sm:$0xff]
        %v612 = vld [vmem:[%s5 + $0xf0] sm:$0xff]
        %v613 = vld [vmem:[%s5 + $0xf8] sm:$0xff]
        %v615 = vsel %vm377, %v579, 0
        %617 = vmatprep.subr.mxu0 %v599
        %618 = vmatpush1.msra.mxu0 %v598
        %619 = vmatprep.subr.mxu0 %v601
        %620 = vmatpush1.msra.mxu0 %v600
        %621 = vmatprep.subr.mxu0 %v603
        %622 = vmatpush1.msra.mxu0 %v602
        %623 = vmatprep.subr.mxu0 %v605
        %624 = vmatpush1.msra.mxu0 %v604
        %625 = vmatprep.subr.mxu0 %v607
        %626 = vmatpush1.msra.mxu0 %v606
        %627 = vmatprep.subr.mxu0 %v609
        %628 = vmatpush1.msra.mxu0 %v608
        %629 = vmatprep.subr.mxu0 %v611
        %630 = vmatpush1.msra.mxu0 %v610
        %631 = vmatprep.subr.mxu0 %v613
        %632 = vmatpush1.msra.mxu0 %v612
        %633 = vmatprep.subr.mxu0 0.0
        %634 = vmatpush1.msra.mxu0 0.0
        %635 = vmatprep.subr.mxu0 0.0
        %636 = vmatpush1.msra.mxu0 0.0
        %637 = vmatprep.subr.mxu0 0.0
        %638 = vmatpush1.msra.mxu0 0.0
        %639 = vmatprep.subr.mxu0 0.0
        %640 = vmatpush1.msra.mxu0 0.0
        %641 = vmatprep.subr.mxu0 0.0
        %642 = vmatpush1.msra.mxu0 0.0
        %643 = vmatprep.subr.mxu0 0.0
        %644 = vmatpush1.msra.mxu0 0.0
        %645 = vmatprep.subr.mxu0 0.0
        %646 = vmatpush1.msra.mxu0 0.0
        %647 = vmatprep.subr.mxu0 0.0
        %648 = vmatpush1.msra.mxu0 0.0
        %649 = vmatprep.subr.mxu0 0.0
        %650 = vmatpush1.msra.mxu0 0.0
        %651 = vmatprep.subr.mxu0 0.0
        %652 = vmatpush1.msra.mxu0 0.0
        %653 = vmatprep.subr.mxu0 0.0
        %654 = vmatpush1.msra.mxu0 0.0
        %655 = vmatprep.subr.mxu0 0.0
        %656 = vmatpush1.msra.mxu0 0.0
        %657 = vmatprep.subr.mxu0 0.0
        %658 = vmatpush1.msra.mxu0 0.0
        %659 = vmatprep.subr.mxu0 0.0
        %660 = vmatpush1.msra.mxu0 0.0
        %661 = vmatprep.subr.mxu0 0.0
        %662 = vmatpush1.msra.mxu0 0.0
        %663 = vmatprep.subr.mxu0 0.0
        %664 = vmatpush1.msra.mxu0 0.0
        %665 = vmatprep.subr.mxu0 0.0
        %666 = vmatpush1.msra.mxu0 0.0
        %667 = vmatprep.subr.mxu0 0.0
        %668 = vmatpush1.msra.mxu0 0.0
        %669 = vmatprep.subr.mxu0 0.0
        %670 = vmatpush1.msra.mxu0 0.0
        %671 = vmatprep.subr.mxu0 0.0
        %672 = vmatpush1.msra.mxu0 0.0
        %673 = vmatprep.subr.mxu0 0.0
        %674 = vmatpush1.msra.mxu0 0.0
        %675 = vmatprep.subr.mxu0 0.0
        %676 = vmatpush1.msra.mxu0 0.0
        %677 = vmatprep.subr.mxu0 0.0
        %678 = vmatpush1.msra.mxu0 0.0
        %679 = vmatprep.subr.mxu0 0.0
        %680 = vmatpush1.msra.mxu0 0.0
        %681 = vmatprep.mubr.f32.mxu0 0.0
        %682 = vmatmul.mubr.f32.gmra.mrb[0].mxu0 %v615
        %v683 = vpop.f32.mrb[0].mxu0
        %v684 = vadd.f32 0.0, %v683
        %v685 = vpop.f32.mrb[0].mxu0
        %v686 = vadd.f32 0.0, %v685
        %687 = vdwg.mxu0
        %v688 = vsel %vm377, %v569, 0
        %690 = vmatprep.subr.mxu0 %v583
        %691 = vmatpush1.msra.mxu0 %v582
        %692 = vmatprep.subr.mxu0 %v585
        %693 = vmatpush1.msra.mxu0 %v584
        %694 = vmatprep.subr.mxu0 %v587
        %695 = vmatpush1.msra.mxu0 %v586
        %696 = vmatprep.subr.mxu0 %v589
        %697 = vmatpush1.msra.mxu0 %v588
        %698 = vmatprep.subr.mxu0 %v591
        %699 = vmatpush1.msra.mxu0 %v590
        %700 = vmatprep.subr.mxu0 %v593
        %701 = vmatpush1.msra.mxu0 %v592
        %702 = vmatprep.subr.mxu0 %v595
        %703 = vmatpush1.msra.mxu0 %v594
        %704 = vmatprep.subr.mxu0 %v597
        %705 = vmatpush1.msra.mxu0 %v596
        %706 = vmatprep.subr.mxu0 0.0
        %707 = vmatpush1.msra.mxu0 0.0
        %708 = vmatprep.subr.mxu0 0.0
        %709 = vmatpush1.msra.mxu0 0.0
        %710 = vmatprep.subr.mxu0 0.0
        %711 = vmatpush1.msra.mxu0 0.0
        %712 = vmatprep.subr.mxu0 0.0
        %713 = vmatpush1.msra.mxu0 0.0
        %714 = vmatprep.subr.mxu0 0.0
        %715 = vmatpush1.msra.mxu0 0.0
        %716 = vmatprep.subr.mxu0 0.0
        %717 = vmatpush1.msra.mxu0 0.0
        %718 = vmatprep.subr.mxu0 0.0
        %719 = vmatpush1.msra.mxu0 0.0
        %720 = vmatprep.subr.mxu0 0.0
        %721 = vmatpush1.msra.mxu0 0.0
        %722 = vmatprep.subr.mxu0 0.0
        %723 = vmatpush1.msra.mxu0 0.0
        %724 = vmatprep.subr.mxu0 0.0
        %725 = vmatpush1.msra.mxu0 0.0
        %726 = vmatprep.subr.mxu0 0.0
        %727 = vmatpush1.msra.mxu0 0.0
        %728 = vmatprep.subr.mxu0 0.0
        %729 = vmatpush1.msra.mxu0 0.0
        %730 = vmatprep.subr.mxu0 0.0
        %731 = vmatpush1.msra.mxu0 0.0
        %732 = vmatprep.subr.mxu0 0.0
        %733 = vmatpush1.msra.mxu0 0.0
        %734 = vmatprep.subr.mxu0 0.0
        %735 = vmatpush1.msra.mxu0 0.0
        %736 = vmatprep.subr.mxu0 0.0
        %737 = vmatpush1.msra.mxu0 0.0
        %738 = vmatprep.subr.mxu0 0.0
        %739 = vmatpush1.msra.mxu0 0.0
        %740 = vmatprep.subr.mxu0 0.0
        %741 = vmatpush1.msra.mxu0 0.0
        %742 = vmatprep.subr.mxu0 0.0
        %743 = vmatpush1.msra.mxu0 0.0
        %744 = vmatprep.subr.mxu0 0.0
        %745 = vmatpush1.msra.mxu0 0.0
        %746 = vmatprep.subr.mxu0 0.0
        %747 = vmatpush1.msra.mxu0 0.0
        %748 = vmatprep.subr.mxu0 0.0
        %749 = vmatpush1.msra.mxu0 0.0
        %750 = vmatprep.subr.mxu0 0.0
        %751 = vmatpush1.msra.mxu0 0.0
        %752 = vmatprep.subr.mxu0 0.0
        %753 = vmatpush1.msra.mxu0 0.0
        %754 = vmatprep.mubr.f32.mxu0 0.0
        %755 = vmatmul.mubr.f32.gmra.mrb[0].mxu0 %v688
        %v756 = vpop.f32.mrb[0].mxu0
        %v757 = vadd.f32 %v684, %v756
        %v758 = vpop.f32.mrb[0].mxu0
        %v759 = vadd.f32 %v686, %v758
        %760 = vdwg.mxu0
        %v761 = vld [vmem:[%s6] sm:$0x3]
        %v763 = vlaneseq
        %v764 = vshrl.u32 %v763, 7
        %v765 = vsub.s32 0, %v764
        %v766 = vrot.slane %v761, %v765
        %v767 = vlaneseq
        %v768 = vshrl.u32 %v767, 7
        %v769 = vsub.s32 1, %v768
        %v770 = vrot.slane %v761, %v769
        %v773 = vadd.f32 %v757, %v766
        %v774 = vadd.f32 %v759, %v770
        %v775 = vxor.u32 %v773, 2147483648
        %v776 = vmul.f32 %v775, 1.442695
        %v777 = vpow.pop %v776
        %v778 = vadd.f32 %v777, 1.0
        %v779 = vrcp.pop %v778
        %v780 = vmul.f32 1.0, %v779
        %v781 = vtanh.pop %v774
        %v782 = vxor.u32 %v774, 2147483648
        %v783 = vmul.f32 %v782, 1.442695
        %v784 = vpow.pop %v783
        %v785 = vadd.f32 %v784, 1.0
        %v786 = vrcp.pop %v785
        %v787 = vmul.f32 1.0, %v786
        %789 = vrot.lane.b32.xlu0 %v581, 64
        %v790 = vpop.permute.xlu0 %789
        %v792 = vmul.f32 %v780, %v790
        %v793 = vmul.f32 %v780, %v781
        %795 = vrot.lane.b32.xlu0 %v793, 64
        %v796 = vpop.permute.xlu0 %795
        %v798 = vadd.f32 %v792, %v796
        %v799 = vtanh.pop %v798
        %v800 = vmul.f32 %v787, %v799
        %802 = vrot.lane.b32.xlu0 %v800, 64
        %v803 = vpop.permute.xlu0 %802
        %805 = vst.msk [vmem:[%s578] sm:$0x3] %vm571, %v803
        %807 = vrot.lane.b32.xlu0 %v798, 64
        %v808 = vpop.permute.xlu0 %807
        %810 = vst.msk [vmem:[%s580] sm:$0x3] %vm571, %v808
        %v811 = vld [vmem:[%s7] sm:$0xff]
        %v812 = vld [vmem:[%s7 + $0x8] sm:$0xff]
        %v813 = vld [vmem:[%s7 + $0x10] sm:$0xff]
        %v814 = vld [vmem:[%s7 + $0x18] sm:$0xff]
        %v815 = vld [vmem:[%s7 + $0x20] sm:$0xff]
        %v816 = vld [vmem:[%s7 + $0x28] sm:$0xff]
        %v817 = vld [vmem:[%s7 + $0x30] sm:$0xff]
        %v818 = vld [vmem:[%s7 + $0x38] sm:$0xff]
        %v819 = vld [vmem:[%s8] sm:$0x1]
        %v821 = vlaneseq
        %v822 = vshrl.u32 %v821, 7
        %v823 = vsub.s32 0, %v822
        %v824 = vrot.slane %v819, %v823
        %v826 = vsel %vm377, %v803, 0
        %828 = vmatprep.subr.mxu0 0.0
        %829 = vmatpush1.msra.mxu0 %v811
        %830 = vmatprep.subr.mxu0 0.0
        %831 = vmatpush1.msra.mxu0 %v812
        %832 = vmatprep.subr.mxu0 0.0
        %833 = vmatpush1.msra.mxu0 %v813
        %834 = vmatprep.subr.mxu0 0.0
        %835 = vmatpush1.msra.mxu0 %v814
        %836 = vmatprep.subr.mxu0 0.0
        %837 = vmatpush1.msra.mxu0 %v815
        %838 = vmatprep.subr.mxu0 0.0
        %839 = vmatpush1.msra.mxu0 %v816
        %840 = vmatprep.subr.mxu0 0.0
        %841 = vmatpush1.msra.mxu0 %v817
        %842 = vmatprep.subr.mxu0 0.0
        %843 = vmatpush1.msra.mxu0 %v818
        %844 = vmatprep.subr.mxu0 0.0
        %845 = vmatpush1.msra.mxu0 0.0
        %846 = vmatprep.subr.mxu0 0.0
        %847 = vmatpush1.msra.mxu0 0.0
        %848 = vmatprep.subr.mxu0 0.0
        %849 = vmatpush1.msra.mxu0 0.0
        %850 = vmatprep.subr.mxu0 0.0
        %851 = vmatpush1.msra.mxu0 0.0
        %852 = vmatprep.subr.mxu0 0.0
        %853 = vmatpush1.msra.mxu0 0.0
        %854 = vmatprep.subr.mxu0 0.0
        %855 = vmatpush1.msra.mxu0 0.0
        %856 = vmatprep.subr.mxu0 0.0
        %857 = vmatpush1.msra.mxu0 0.0
        %858 = vmatprep.subr.mxu0 0.0
        %859 = vmatpush1.msra.mxu0 0.0
        %860 = vmatprep.subr.mxu0 0.0
        %861 = vmatpush1.msra.mxu0 0.0
        %862 = vmatprep.subr.mxu0 0.0
        %863 = vmatpush1.msra.mxu0 0.0
        %864 = vmatprep.subr.mxu0 0.0
        %865 = vmatpush1.msra.mxu0 0.0
        %866 = vmatprep.subr.mxu0 0.0
        %867 = vmatpush1.msra.mxu0 0.0
        %868 = vmatprep.subr.mxu0 0.0
        %869 = vmatpush1.msra.mxu0 0.0
        %870 = vmatprep.subr.mxu0 0.0
        %871 = vmatpush1.msra.mxu0 0.0
        %872 = vmatprep.subr.mxu0 0.0
        %873 = vmatpush1.msra.mxu0 0.0
        %874 = vmatprep.subr.mxu0 0.0
        %875 = vmatpush1.msra.mxu0 0.0
        %876 = vmatprep.subr.mxu0 0.0
        %877 = vmatpush1.msra.mxu0 0.0
        %878 = vmatprep.subr.mxu0 0.0
        %879 = vmatpush1.msra.mxu0 0.0
        %880 = vmatprep.subr.mxu0 0.0
        %881 = vmatpush1.msra.mxu0 0.0
        %882 = vmatprep.subr.mxu0 0.0
        %883 = vmatpush1.msra.mxu0 0.0
        %884 = vmatprep.subr.mxu0 0.0
        %885 = vmatpush1.msra.mxu0 0.0
        %886 = vmatprep.subr.mxu0 0.0
        %887 = vmatpush1.msra.mxu0 0.0
        %888 = vmatprep.subr.mxu0 0.0
        %889 = vmatpush1.msra.mxu0 0.0
        %890 = vmatprep.subr.mxu0 0.0
        %891 = vmatpush1.msra.mxu0 0.0
        %892 = vmatprep.mubr.f32.mxu0 0.0
        %893 = vmatmul.mubr.f32.gmra.mrb[0].mxu0 %v826
        %v894 = vpop.f32.mrb[0].mxu0
        %v895 = vadd.f32 %v824, %v894
        %v896 = vpop.f32.mrb[0].mxu0
        %897 = vdwg.mxu0
        %vm898 = vcmask 1041408
        %v899 = vsel %vm898, %v895, -inf
        %900 = vmax.xlane.f32.xlu0 %v899
        %v901 = vpop.xlane.xlu0 %900
        %v902 = vsub.f32 %v895, %v901
        %v903 = vmul.f32 %v902, 1.442695
        %v904 = vpow.pop %v903
        %v905 = vsel %vm898, %v904, 0.0
        %906 = vadd.xlane.f32.xlu0 %v905
        %v907 = vpop.xlane.xlu0 %906
        %v908 = vlog2.pop %v907
        %v909 = vmul.f32 %v908, 0.6931472
        %v910 = vsub.f32 %v902, %v909
        %911 = vst [vmem:[%s337] sm:$0x3] %v910
        %v912 = vlaneseq
        %v913 = vand.u32 %v912, 127
        %vm914 = vcmp.eq.f32.partialorder %v895, %v901
        %v915 = vsel %vm914, %v913, 128
        %v916 = vsel %vm898, %v915, 2147483647
        %v917 = vand.u32 %v916, 65535
        %v918 = vshra.s32 %v916, 16
        %v919 = vcvt.s32.f32 %v917
        %v920 = vcvt.s32.f32 %v918
        %921 = vmin.xlane.f32.xlu0 %v920
        %v922 = vpop.xlane.xlu0 %921
        %vm923 = vcmp.eq.f32.partialorder %v920, %v922
        %v924 = vsel %vm923, %v919, inf
        %925 = vmin.xlane.f32.xlu0 %v924
        %v926 = vpop.xlane.xlu0 %925
        %v927 = vcvt.f32.s32 %v926
        %v928 = vcvt.f32.s32 %v922
        %v929 = vshll.u32 %v928, 16
        %v930 = vadd.s32 %v929, %v927
        %vm931 = vcmp.eq.s32.totalorder %v913, %v930
        %v932 = vsel %vm931, 1, 0
        %v933 = vcvt.s32.f32 %v932
        %v934 = vld [vmem:[%s9] sm:$0xff]
        %v935 = vld [vmem:[%s9 + $0x8] sm:$0xff]
        %v936 = vld [vmem:[%s9 + $0x10] sm:$0xff]
        %v937 = vld [vmem:[%s9 + $0x18] sm:$0xff]
        %v938 = vld [vmem:[%s9 + $0x20] sm:$0xff]
        %v939 = vld [vmem:[%s9 + $0x28] sm:$0xff]
        %v940 = vld [vmem:[%s9 + $0x30] sm:$0xff]
        %v941 = vld [vmem:[%s9 + $0x38] sm:$0xff]
        %v942 = vld [vmem:[%s9 + $0x40] sm:$0xff]
        %v943 = vld [vmem:[%s9 + $0x48] sm:$0xff]
        %v944 = vld [vmem:[%s9 + $0x50] sm:$0xff]
        %v945 = vld [vmem:[%s9 + $0x58] sm:$0xff]
        %v946 = vld [vmem:[%s9 + $0x60] sm:$0xff]
        %v947 = vld [vmem:[%s9 + $0x68] sm:$0xff]
        %v948 = vld [vmem:[%s9 + $0x70] sm:$0xff]
        %v949 = vld [vmem:[%s9 + $0x78] sm:$0xff]
        %950 = vmatprep.subr.mxu0 0.0
        %951 = vmatpush1.msra.mxu0 %v934
        %952 = vmatprep.subr.mxu0 0.0
        %953 = vmatpush1.msra.mxu0 %v935
        %954 = vmatprep.subr.mxu0 0.0
        %955 = vmatpush1.msra.mxu0 %v936
        %956 = vmatprep.subr.mxu0 0.0
        %957 = vmatpush1.msra.mxu0 %v937
        %958 = vmatprep.subr.mxu0 0.0
        %959 = vmatpush1.msra.mxu0 %v938
        %960 = vmatprep.subr.mxu0 0.0
        %961 = vmatpush1.msra.mxu0 %v939
        %962 = vmatprep.subr.mxu0 0.0
        %963 = vmatpush1.msra.mxu0 %v940
        %964 = vmatprep.subr.mxu0 0.0
        %965 = vmatpush1.msra.mxu0 %v941
        %966 = vmatprep.subr.mxu0 0.0
        %967 = vmatpush1.msra.mxu0 %v942
        %968 = vmatprep.subr.mxu0 0.0
        %969 = vmatpush1.msra.mxu0 %v943
        %970 = vmatprep.subr.mxu0 0.0
        %971 = vmatpush1.msra.mxu0 %v944
        %972 = vmatprep.subr.mxu0 0.0
        %973 = vmatpush1.msra.mxu0 %v945
        %974 = vmatprep.subr.mxu0 0.0
        %975 = vmatpush1.msra.mxu0 %v946
        %976 = vmatprep.subr.mxu0 0.0
        %977 = vmatpush1.msra.mxu0 %v947
        %978 = vmatprep.subr.mxu0 0.0
        %979 = vmatpush1.msra.mxu0 %v948
        %980 = vmatprep.subr.mxu0 0.0
        %981 = vmatpush1.msra.mxu0 %v949
        %982 = vmatprep.subr.mxu0 0.0
        %983 = vmatpush1.msra.mxu0 0.0
        %984 = vmatprep.subr.mxu0 0.0
        %985 = vmatpush1.msra.mxu0 0.0
        %986 = vmatprep.subr.mxu0 0.0
        %987 = vmatpush1.msra.mxu0 0.0
        %988 = vmatprep.subr.mxu0 0.0
        %989 = vmatpush1.msra.mxu0 0.0
        %990 = vmatprep.subr.mxu0 0.0
        %991 = vmatpush1.msra.mxu0 0.0
        %992 = vmatprep.subr.mxu0 0.0
        %993 = vmatpush1.msra.mxu0 0.0
        %994 = vmatprep.subr.mxu0 0.0
        %995 = vmatpush1.msra.mxu0 0.0
        %996 = vmatprep.subr.mxu0 0.0
        %997 = vmatpush1.msra.mxu0 0.0
        %998 = vmatprep.subr.mxu0 0.0
        %999 = vmatpush1.msra.mxu0 0.0
        %1000 = vmatprep.subr.mxu0 0.0
        %1001 = vmatpush1.msra.mxu0 0.0
        %1002 = vmatprep.subr.mxu0 0.0
        %1003 = vmatpush1.msra.mxu0 0.0
        %1004 = vmatprep.subr.mxu0 0.0
        %1005 = vmatpush1.msra.mxu0 0.0
        %1006 = vmatprep.subr.mxu0 0.0
        %1007 = vmatpush1.msra.mxu0 0.0
        %1008 = vmatprep.subr.mxu0 0.0
        %1009 = vmatpush1.msra.mxu0 0.0
        %1010 = vmatprep.subr.mxu0 0.0
        %1011 = vmatpush1.msra.mxu0 0.0
        %1012 = vmatprep.subr.mxu0 0.0
        %1013 = vmatpush1.msra.mxu0 0.0
        %1014 = vmatprep.mubr.f32.mxu0 0.0
        %1015 = vmatmul.mubr.f32.gmra.mrb[0].mxu0 %v933
        %v1016 = vpop.f32.mrb[0].mxu0
        %v1017 = vadd.f32 0.0, %v1016
        %v1018 = vpop.f32.mrb[0].mxu0
        %1019 = vdwg.mxu0
        %vm1020 = vcmask 123904
        %1021 = vst.msk [vmem:[#allocation2] sm:$0x3] %vm1020, %v1017
        %s1022 = sand.u32 %s242, 1
        %s1023 = scalar_lea.sflag [#allocation6], %s1022
        %s1024 = sand.u32 %s242, 1
        %s1025 = smul.addr %s1024, 2
        %s1026 = scalar_lea.vmem [#allocation5], %s1025
        // Predicated region
        $region65: #{birnn_forward.5} parent=59 // pred_check
          %p1027 = pneg %p252
        $region66: #{birnn_forward.5} parent=59 // pred_check_branch
          %1029 = sbr.rel (%p1027) target = $region68
        $region67: #{birnn_forward.5} parent=59 // pred_region
          %s1031 = ssub.s32 32, 32
          %1032 = vsyncadd %s1023, %s1031
          %s1033 = smul.addr %s24, 32
          %s1034 = scalar_lea.hbm %s10, %s1033
          %s1036 = sshll.u32 %s1026, 4
          %s1037 = int_to_ptr.vmem [resolvable:$true] %s1036
          %1039 = dma.vmem_to_hbm [thread:$0]  %s1037, 32, %s1034, %s1023
        $region68: #{birnn_forward.5} parent=59 // pred_fallthru
          _
      $region60: #{birnn_forward.5} parent=5 // pred_fallthru
        _
      %p1040 = scmp.le.s32.totalorder 2, %s19
      // Predicated region
      $region69: #{birnn_forward.5} parent=5 // pred_check
        %p1041 = pneg %p1040
      $region70: #{birnn_forward.5} parent=5 // pred_check_branch
        %1043 = sbr.rel (%p1041) target = $region72
      $region71: #{birnn_forward.5} parent=5 // pred_region
        %s1044 = ssub.s32 %s19, 2
        // Predicated region
        $region73: #{birnn_forward.5} parent=71 // pred_check
          %p1045 = pneg %p258
        $region74: #{birnn_forward.5} parent=71 // pred_check_branch
          %1047 = sbr.rel (%p1045) target = $region76
        $region75: #{birnn_forward.5} parent=71 // pred_region
          %s1048 = sand.u32 %s243, 1
          %s1049 = scalar_lea.sflag [#allocation6], %s1048
          %s1050 = sand.u32 %s243, 1
          %s1051 = smul.addr %s1050, 2
          %s1052 = scalar_lea.vmem [#allocation5], %s1051
          %1053 = dma.done %s1049, 32
        $region76: #{birnn_forward.5} parent=71 // pred_fallthru
          _
      $region72: #{birnn_forward.5} parent=5 // pred_fallthru
        _
    $region6: #{birnn_forward.5} parent=1 // loop_footer
      %s23 = sadd.s32 1, %s19
    $region7: #{birnn_forward.5} parent=1 // loop_footer_branch
      %18 = sbr.rel target = $region3
    $region8: #{birnn_forward.5} parent=1 // loop_exit
      _
    %1054 = vsyncpa [#allocation6], 1
    %s1055 = scalar_lea.sflag [#allocation6], 1
    %1056 = vsyncpa %s1055, 1

</llo_original>
